<compile_context>
chip_gen: v5e
topology: v5e:2x2
jax: 0.10.0
libtpu: 0.0.40
codegen_flags: <defaults>
</compile_context>

<pallas_src>
import functools
import math

import jax
import jax.numpy as jnp
from jax.experimental import pallas as pl
from jax.experimental.pallas import tpu as pltpu


# ----------------------------------------------------------------------------
# Kernel: full encoder block for a slab of S independent sequences.
#   x_ref    : (S, L, D)   [or (L, D) when the wrapper grids one seq per step]
#   wqkv_ref : (3, H, D, hd)  fused (module QKV + MHA in_proj) per-head weights,
#              Q entry already scaled by 1/sqrt(hd)
#   bqkv_ref : (3, H, hd)     fused per-head biases
#   wout_ref : (H, hd, D)     out_proj weight split per head (transposed, (in, out))
#   wmlp_ref : (2, D, D)      MLP weights, transposed to (in, out)
#   vec_ref  : (7, D)         [b_out, b_mlp1, b_mlp2, ln1_g, ln1_b, ln2_g, ln2_b]
#   o_ref    : same shape as x_ref
# ----------------------------------------------------------------------------
def encoder_kernel(x_ref, wqkv_ref, bqkv_ref, wout_ref, wmlp_ref, vec_ref, o_ref,
                   *, num_heads, head_dim):
    H, hd = num_heads, head_dim

    xv = x_ref[...].astype(jnp.float32)
    squeeze_out = xv.ndim == 2
    if squeeze_out:
        xv = xv[None]                                  # (1, L, D)
    S, L, D = xv.shape
    HS, SL = H * S, S * L

    x_tok = xv.reshape(SL, D)                          # token-major slab

    # ---- fused QKV projections, batched over (head, sequence) --------------
    xb = jnp.broadcast_to(xv[None], (H, S, L, D)).reshape(HS, L, D)
    dn = (((2,), (1,)), ((0,), (0,)))                  # batched (., K) x (K, .) matmul

    def proj(i):
        w = jnp.broadcast_to(wqkv_ref[i][:, None], (H, S, D, hd)).reshape(HS, D, hd)
        b = jnp.broadcast_to(bqkv_ref[i][:, None, None, :],
                             (H, S, L, hd)).reshape(HS, L, hd)
        return jax.lax.dot_general(xb, w, dn, preferred_element_type=jnp.float32) + b

    q = proj(0)                                        # (HS, L, hd), pre-scaled
    k = proj(1)
    v = proj(2)

    # ---- scaled dot-product attention (scale already folded into q) --------
    dn_qk = (((2,), (2,)), ((0,), (0,)))
    s = jax.lax.dot_general(q, k, dn_qk, preferred_element_type=jnp.float32)   # (HS, L, L)
    s = s - jnp.max(s, axis=-1, keepdims=True)
    p = jnp.exp(s)
    p = p * pl.reciprocal(jnp.sum(p, axis=-1, keepdims=True), approx=True)
    ctx = jax.lax.dot_general(p, v, dn, preferred_element_type=jnp.float32)    # (HS, L, hd)

    # ---- out_proj: head-batched matmul + reduction over heads --------------
    wo = jnp.broadcast_to(wout_ref[...][:, None], (H, S, hd, D)).reshape(HS, hd, D)
    o_hs = jax.lax.dot_general(ctx, wo, dn, preferred_element_type=jnp.float32)  # (HS, L, D)
    o_4d = o_hs.reshape(H, S, L, D)
    attn = o_4d[0]
    for h in range(1, H):                              # small static unroll (VPU adds)
        attn = attn + o_4d[h]
    attn_tok = attn.reshape(SL, D) + vec_ref[0][None, :]

    def layer_norm(y, g, b):
        mu = jnp.mean(y, axis=-1, keepdims=True)
        var = jnp.mean((y - mu) ** 2, axis=-1, keepdims=True)
        return (y - mu) * jax.lax.rsqrt(var + 1e-5) * g[None, :] + b[None, :]

    def lin(z, w, b):
        return jnp.dot(z, w, preferred_element_type=jnp.float32) + b[None, :]

    # residual + LayerNorm1   (dropout_1 == identity in eval mode)
    x_skip = layer_norm(x_tok + attn_tok, vec_ref[3], vec_ref[4])

    # two-layer MLP: Linear -> ReLU -> Linear
    h1 = jnp.maximum(lin(x_skip, wmlp_ref[0], vec_ref[1]), 0.0)
    mlp = lin(h1, wmlp_ref[1], vec_ref[2])

    # residual + LayerNorm2   (dropout_2 == identity in eval mode)
    out = layer_norm(x_skip + mlp, vec_ref[5], vec_ref[6])

    out = out.reshape(S, L, D)
    if squeeze_out:
        out = out[0]
    o_ref[...] = out.astype(o_ref.dtype)


# ----------------------------------------------------------------------------
# Wrapper: permutes folded into BlockSpec index_maps (no XLA-side transposes)
# ----------------------------------------------------------------------------
def transformer_encoder(input_tensor, params, *, along_dim, num_heads):
    B, d1, d2, D = input_tensor.shape
    assert D % num_heads == 0
    head_dim = D // num_heads
    wqkv, bqkv, wout, wmlp, vecs = params

    if along_dim == "src":
        # Sequences run along d2; one grid step owns all d1 sequences of one
        # batch element -> kernel block (d1, d2, D) == (S, L, D).
        grid = (B,)
        x_spec = pl.BlockSpec((None, d1, d2, D), lambda b: (b, 0, 0, 0))
    else:
        # Sequences run along d1; one (b, j) sequence per grid step.
        grid = (B, d2)
        x_spec = pl.BlockSpec((None, d1, None, D), lambda b, j: (b, 0, j, 0))

    def const_spec(arr):
        rank = arr.ndim
        return pl.BlockSpec(arr.shape, lambda *_: (0,) * rank)

    kernel = functools.partial(encoder_kernel, num_heads=num_heads, head_dim=head_dim)

    return pl.pallas_call(
        kernel,
        out_shape=jax.ShapeDtypeStruct(input_tensor.shape, input_tensor.dtype),
        grid=grid,
        in_specs=[x_spec,
                  const_spec(wqkv), const_spec(bqkv), const_spec(wout),
                  const_spec(wmlp), const_spec(vecs)],
        out_specs=x_spec,
        compiler_params=pltpu.CompilerParams(
            dimension_semantics=("parallel",) * len(grid)),
    )(input_tensor, wqkv, bqkv, wout, wmlp, vecs)


# ----------------------------------------------------------------------------
# Deterministic synthetic parameters (PyTorch layout) + offline fusion
# ----------------------------------------------------------------------------
def make_raw_params(key, D):
    ks = iter(jax.random.split(key, 18))
    std = 0.05

    def rnd(shape):
        return jax.random.normal(next(ks), shape, jnp.float32) * std

    return {
        "Wq": rnd((D, D)), "bq": rnd((D,)),
        "Wk": rnd((D, D)), "bk": rnd((D,)),
        "Wv": rnd((D, D)), "bv": rnd((D,)),
        "Win": rnd((3 * D, D)), "bin": rnd((3 * D,)),   # MHA in_proj
        "Wout": rnd((D, D)), "bout": rnd((D,)),         # MHA out_proj
        "Wm1": rnd((D, D)), "bm1": rnd((D,)),
        "Wm2": rnd((D, D)), "bm2": rnd((D,)),
        "g1": 1.0 + rnd((D,)), "be1": rnd((D,)),
        "g2": 1.0 + rnd((D,)), "be2": rnd((D,)),
    }


def fuse_params(raw, D, num_heads):
    """Fold Q/K/V Linears into MHA in_proj, fold 1/sqrt(hd) into Q, split per head."""
    H = num_heads
    hd = D // H
    scale = 1.0 / math.sqrt(hd)

    def fuse(W1, b1, W2, b2):
        # y = (x @ W1.T + b1) @ W2.T + b2 == x @ (W1.T @ W2.T) + (b1 @ W2.T + b2)
        return W1.T @ W2.T, b1 @ W2.T + b2

    Wfq, bfq = fuse(raw["Wq"], raw["bq"], raw["Win"][:D], raw["bin"][:D])
    Wfq, bfq = Wfq * scale, bfq * scale
    Wfk, bfk = fuse(raw["Wk"], raw["bk"], raw["Win"][D:2 * D], raw["bin"][D:2 * D])
    Wfv, bfv = fuse(raw["Wv"], raw["bv"], raw["Win"][2 * D:], raw["bin"][2 * D:])

    def per_head(Wf, bf):          # (D_in, D_out) head-major columns -> (H, D_in, hd)
        return Wf.reshape(D, H, hd).transpose(1, 0, 2), bf.reshape(H, hd)

    wq, bq = per_head(Wfq, bfq)
    wk, bk = per_head(Wfk, bfk)
    wv, bv = per_head(Wfv, bfv)
    wqkv = jnp.stack([wq, wk, wv])                      # (3, H, D, hd)
    bqkv = jnp.stack([bq, bk, bv])                      # (3, H, hd)

    wout = raw["Wout"].T.reshape(H, hd, D)              # (H, hd, D)
    wmlp = jnp.stack([raw["Wm1"].T, raw["Wm2"].T])      # (2, D, D)
    vecs = jnp.stack([raw["bout"], raw["bm1"], raw["bm2"],
                      raw["g1"], raw["be1"], raw["g2"], raw["be2"]])   # (7, D)
    return wqkv, bqkv, wout, wmlp, vecs


# ----------------------------------------------------------------------------
# Pure-JAX reference mirroring the PyTorch module (eval mode), for validation
# ----------------------------------------------------------------------------
def reference_forward(x, raw, *, along_dim, num_heads):
    B, d1, d2, D = x.shape
    H = num_heads
    hd = D // H
    if along_dim == "src":
        t = jnp.transpose(x, (2, 0, 1, 3)).reshape(d2, B * d1, D)
    else:
        t = jnp.transpose(x, (1, 0, 2, 3)).reshape(d1, B * d2, D)
    L, N, _ = t.shape

    def lin(z, W, b):
        return z @ W.T + b

    q = lin(t, raw["Wq"], raw["bq"])
    k = lin(t, raw["Wk"], raw["bk"])
    v = lin(t, raw["Wv"], raw["bv"])

    qi = lin(q, raw["Win"][:D], raw["bin"][:D]) * (1.0 / math.sqrt(hd))
    ki = lin(k, raw["Win"][D:2 * D], raw["bin"][D:2 * D])
    vi = lin(v, raw["Win"][2 * D:], raw["bin"][2 * D:])

    def heads(z):                  # (L, N, D) -> (N, H, L, hd)
        return z.reshape(L, N, H, hd).transpose(1, 2, 0, 3)

    qh, kh, vh = heads(qi), heads(ki), heads(vi)
    s = qh @ jnp.swapaxes(kh, -1, -2)
    p = jax.nn.softmax(s, axis=-1)
    ctx = (p @ vh).transpose(2, 0, 1, 3).reshape(L, N, D)
    attn = lin(ctx, raw["Wout"], raw["bout"])

    def layer_norm(y, g, b):
        mu = jnp.mean(y, -1, keepdims=True)
        var = jnp.mean((y - mu) ** 2, -1, keepdims=True)
        return (y - mu) * jax.lax.rsqrt(var + 1e-5) * g + b

    xs = layer_norm(t + attn, raw["g1"], raw["be1"])
    mlp = lin(jnp.maximum(lin(xs, raw["Wm1"], raw["bm1"]), 0.0), raw["Wm2"], raw["bm2"])
    out = layer_norm(xs + mlp, raw["g2"], raw["be2"])

    if along_dim == "src":
        return out.reshape(d2, B, d1, D).transpose(1, 2, 0, 3)
    return out.reshape(d1, B, d2, D).transpose(1, 0, 2, 3)


if __name__ == "__main__":
    # Small shapes: batch=2, d1=4, d2=8, feature_dim=32, 4 heads, along_dim='src'
    B, D1, D2, D = 2, 4, 8, 32
    NUM_HEADS = 4
    ALONG_DIM = "src"

    key = jax.random.PRNGKey(0)
    k_x, k_p = jax.random.split(key)
    x = jax.random.normal(k_x, (B, D1, D2, D), jnp.float32)
    raw = make_raw_params(k_p, D)
    params = fuse_params(raw, D, NUM_HEADS)

    y = transformer_encoder(x, params, along_dim=ALONG_DIM, num_heads=NUM_HEADS)
    y = jax.block_until_ready(y)

    assert y.shape == x.shape, (y.shape, x.shape)
    assert bool(jnp.all(jnp.isfinite(y)))

    y_ref = reference_forward(x, raw, along_dim=ALONG_DIM, num_heads=NUM_HEADS)
    max_err = float(jnp.max(jnp.abs(y - y_ref)))
    assert max_err < 2e-2, f"max abs error vs reference: {max_err}"
    print("KERNEL_OK")
</pallas_src>

<mosaic_0001>
module attributes {stable_mosaic.version = 11 : i64} {
  func.func @encoder_kernel(%arg0: i32, %arg1: memref<1x4x8x32xf32, #tpu.memory_space<vmem>>, %arg2: memref<3x4x32x8xf32, #tpu.memory_space<vmem>>, %arg3: memref<3x4x8xf32, #tpu.memory_space<vmem>>, %arg4: memref<4x8x32xf32, #tpu.memory_space<vmem>>, %arg5: memref<2x32x32xf32, #tpu.memory_space<vmem>>, %arg6: memref<7x32xf32, #tpu.memory_space<vmem>>, %arg7: memref<1x4x8x32xf32, #tpu.memory_space<vmem>>) attributes {dimension_semantics = [#tpu.dimension_semantics<parallel>], iteration_bounds = array<i64: 2>, scalar_prefetch = 0 : i64, scratch_operands = 0 : i64, tpu.core_type = #tpu.core_type<tc>, window_params = [{transform_indices = @transform_0, window_bounds = array<i64: 1, 4, 8, 32>}, {pipeline_mode = #tpu.pipeline_mode<synchronous>, transform_indices = @transform_1, window_bounds = array<i64: 3, 4, 32, 8>}, {pipeline_mode = #tpu.pipeline_mode<synchronous>, transform_indices = @transform_2, window_bounds = array<i64: 3, 4, 8>}, {pipeline_mode = #tpu.pipeline_mode<synchronous>, transform_indices = @transform_3, window_bounds = array<i64: 4, 8, 32>}, {pipeline_mode = #tpu.pipeline_mode<synchronous>, transform_indices = @transform_4, window_bounds = array<i64: 2, 32, 32>}, {pipeline_mode = #tpu.pipeline_mode<synchronous>, transform_indices = @transform_5, window_bounds = array<i64: 7, 32>}, {transform_indices = @transform_6, window_bounds = array<i64: 1, 4, 8, 32>}]} {
    %c0 = arith.constant 0 : index
    %c0_0 = arith.constant 0 : index
    %c0_1 = arith.constant 0 : index
    %c0_2 = arith.constant 0 : index
    %0 = vector.load %arg1[%c0, %c0_0, %c0_1, %c0_2] : memref<1x4x8x32xf32, #tpu.memory_space<vmem>>, vector<1x4x8x32xf32>
    %1 = vector.shape_cast %0 : vector<1x4x8x32xf32> to vector<4x8x32xf32>
    %2 = vector.shape_cast %1 : vector<4x8x32xf32> to vector<32x32xf32>
    %3 = vector.shape_cast %1 : vector<4x8x32xf32> to vector<1x4x8x32xf32>
    %4 = vector.shape_cast %3 : vector<1x4x8x32xf32> to vector<1x4x8x32xf32>
    %5 = vector.broadcast %4 : vector<1x4x8x32xf32> to vector<4x4x8x32xf32>
    %6 = vector.shape_cast %5 : vector<4x4x8x32xf32> to vector<16x8x32xf32>
    %c0_3 = arith.constant 0 : index
    %c0_4 = arith.constant 0 : index
    %c0_5 = arith.constant 0 : index
    %c0_6 = arith.constant 0 : index
    %7 = vector.load %arg2[%c0_3, %c0_4, %c0_5, %c0_6] : memref<3x4x32x8xf32, #tpu.memory_space<vmem>>, vector<1x4x32x8xf32>
    %8 = vector.shape_cast %7 : vector<1x4x32x8xf32> to vector<4x32x8xf32>
    %9 = vector.shape_cast %8 : vector<4x32x8xf32> to vector<4x1x32x8xf32>
    %10 = vector.shape_cast %9 : vector<4x1x32x8xf32> to vector<4x1x32x8xf32>
    %11 = vector.broadcast %10 : vector<4x1x32x8xf32> to vector<4x4x32x8xf32>
    %12 = vector.shape_cast %11 : vector<4x4x32x8xf32> to vector<16x32x8xf32>
    %c0_7 = arith.constant 0 : index
    %c0_8 = arith.constant 0 : index
    %c0_9 = arith.constant 0 : index
    %13 = vector.load %arg3[%c0_7, %c0_8, %c0_9] : memref<3x4x8xf32, #tpu.memory_space<vmem>>, vector<1x4x8xf32>
    %14 = vector.shape_cast %13 : vector<1x4x8xf32> to vector<4x8xf32>
    %15 = vector.shape_cast %14 : vector<4x8xf32> to vector<4x1x1x8xf32>
    %16 = vector.shape_cast %15 : vector<4x1x1x8xf32> to vector<4x1x1x8xf32>
    %17 = vector.broadcast %16 : vector<4x1x1x8xf32> to vector<4x4x8x8xf32>
    %18 = vector.shape_cast %17 : vector<4x4x8x8xf32> to vector<16x8x8xf32>
    %cst = arith.constant dense<0.000000e+00> : vector<16x8x8xf32>
    %19 = tpu.matmul %6, %12, %cst {dimension_numbers = #tpu.dot_dimension_numbers<[2], [1], [1], [2], [0, 0, 0, 1, 1, 2], [0], [0]>} : vector<16x8x32xf32>, vector<16x32x8xf32>, vector<16x8x8xf32> -> vector<16x8x8xf32>
    %20 = arith.addf %19, %18 : vector<16x8x8xf32>
    %c1 = arith.constant 1 : index
    %c0_10 = arith.constant 0 : index
    %c0_11 = arith.constant 0 : index
    %c0_12 = arith.constant 0 : index
    %21 = vector.load %arg2[%c1, %c0_10, %c0_11, %c0_12] : memref<3x4x32x8xf32, #tpu.memory_space<vmem>>, vector<1x4x32x8xf32>
    %22 = vector.shape_cast %21 : vector<1x4x32x8xf32> to vector<4x32x8xf32>
    %23 = vector.shape_cast %22 : vector<4x32x8xf32> to vector<4x1x32x8xf32>
    %24 = vector.shape_cast %23 : vector<4x1x32x8xf32> to vector<4x1x32x8xf32>
    %25 = vector.broadcast %24 : vector<4x1x32x8xf32> to vector<4x4x32x8xf32>
    %26 = vector.shape_cast %25 : vector<4x4x32x8xf32> to vector<16x32x8xf32>
    %c1_13 = arith.constant 1 : index
    %c0_14 = arith.constant 0 : index
    %c0_15 = arith.constant 0 : index
    %27 = vector.load %arg3[%c1_13, %c0_14, %c0_15] : memref<3x4x8xf32, #tpu.memory_space<vmem>>, vector<1x4x8xf32>
    %28 = vector.shape_cast %27 : vector<1x4x8xf32> to vector<4x8xf32>
    %29 = vector.shape_cast %28 : vector<4x8xf32> to vector<4x1x1x8xf32>
    %30 = vector.shape_cast %29 : vector<4x1x1x8xf32> to vector<4x1x1x8xf32>
    %31 = vector.broadcast %30 : vector<4x1x1x8xf32> to vector<4x4x8x8xf32>
    %32 = vector.shape_cast %31 : vector<4x4x8x8xf32> to vector<16x8x8xf32>
    %cst_16 = arith.constant dense<0.000000e+00> : vector<16x8x8xf32>
    %33 = tpu.matmul %6, %26, %cst_16 {dimension_numbers = #tpu.dot_dimension_numbers<[2], [1], [1], [2], [0, 0, 0, 1, 1, 2], [0], [0]>} : vector<16x8x32xf32>, vector<16x32x8xf32>, vector<16x8x8xf32> -> vector<16x8x8xf32>
    %34 = arith.addf %33, %32 : vector<16x8x8xf32>
    %c2 = arith.constant 2 : index
    %c0_17 = arith.constant 0 : index
    %c0_18 = arith.constant 0 : index
    %c0_19 = arith.constant 0 : index
    %35 = vector.load %arg2[%c2, %c0_17, %c0_18, %c0_19] : memref<3x4x32x8xf32, #tpu.memory_space<vmem>>, vector<1x4x32x8xf32>
    %36 = vector.shape_cast %35 : vector<1x4x32x8xf32> to vector<4x32x8xf32>
    %37 = vector.shape_cast %36 : vector<4x32x8xf32> to vector<4x1x32x8xf32>
    %38 = vector.shape_cast %37 : vector<4x1x32x8xf32> to vector<4x1x32x8xf32>
    %39 = vector.broadcast %38 : vector<4x1x32x8xf32> to vector<4x4x32x8xf32>
    %40 = vector.shape_cast %39 : vector<4x4x32x8xf32> to vector<16x32x8xf32>
    %c2_20 = arith.constant 2 : index
    %c0_21 = arith.constant 0 : index
    %c0_22 = arith.constant 0 : index
    %41 = vector.load %arg3[%c2_20, %c0_21, %c0_22] : memref<3x4x8xf32, #tpu.memory_space<vmem>>, vector<1x4x8xf32>
    %42 = vector.shape_cast %41 : vector<1x4x8xf32> to vector<4x8xf32>
    %43 = vector.shape_cast %42 : vector<4x8xf32> to vector<4x1x1x8xf32>
    %44 = vector.shape_cast %43 : vector<4x1x1x8xf32> to vector<4x1x1x8xf32>
    %45 = vector.broadcast %44 : vector<4x1x1x8xf32> to vector<4x4x8x8xf32>
    %46 = vector.shape_cast %45 : vector<4x4x8x8xf32> to vector<16x8x8xf32>
    %cst_23 = arith.constant dense<0.000000e+00> : vector<16x8x8xf32>
    %47 = tpu.matmul %6, %40, %cst_23 {dimension_numbers = #tpu.dot_dimension_numbers<[2], [1], [1], [2], [0, 0, 0, 1, 1, 2], [0], [0]>} : vector<16x8x32xf32>, vector<16x32x8xf32>, vector<16x8x8xf32> -> vector<16x8x8xf32>
    %48 = arith.addf %47, %46 : vector<16x8x8xf32>
    %cst_24 = arith.constant dense<0.000000e+00> : vector<16x8x8xf32>
    %49 = tpu.matmul %20, %34, %cst_24 {dimension_numbers = #tpu.dot_dimension_numbers<[2], [2], [1], [1], [0, 0, 0, 1, 1, 1], [0], [0]>} : vector<16x8x8xf32>, vector<16x8x8xf32>, vector<16x8x8xf32> -> vector<16x8x8xf32>
    %cst_25 = arith.constant dense<0xFF800000> : vector<16x8xf32>
    %50 = vector.multi_reduction <maximumf>, %49, %cst_25 [2] : vector<16x8x8xf32> to vector<16x8xf32>
    %51 = vector.shape_cast %50 : vector<16x8xf32> to vector<16x8x1xf32>
    %52 = vector.broadcast %51 : vector<16x8x1xf32> to vector<16x8x8xf32>
    %53 = arith.subf %49, %52 : vector<16x8x8xf32>
    %54 = math.exp %53 : vector<16x8x8xf32>
    %cst_26 = arith.constant dense<0.000000e+00> : vector<16x8xf32>
    %55 = vector.multi_reduction <add>, %54, %cst_26 [2] : vector<16x8x8xf32> to vector<16x8xf32>
    %56 = vector.shape_cast %55 : vector<16x8xf32> to vector<16x8x1xf32>
    %57 = tpu.reciprocal %56 {approx = true} : vector<16x8x1xf32> -> vector<16x8x1xf32>
    %58 = vector.broadcast %57 : vector<16x8x1xf32> to vector<16x8x8xf32>
    %59 = arith.mulf %54, %58 : vector<16x8x8xf32>
    %cst_27 = arith.constant dense<0.000000e+00> : vector<16x8x8xf32>
    %60 = tpu.matmul %59, %48, %cst_27 {dimension_numbers = #tpu.dot_dimension_numbers<[2], [1], [1], [2], [0, 0, 0, 1, 1, 2], [0], [0]>} : vector<16x8x8xf32>, vector<16x8x8xf32>, vector<16x8x8xf32> -> vector<16x8x8xf32>
    %c0_28 = arith.constant 0 : index
    %c0_29 = arith.constant 0 : index
    %c0_30 = arith.constant 0 : index
    %61 = vector.load %arg4[%c0_28, %c0_29, %c0_30] : memref<4x8x32xf32, #tpu.memory_space<vmem>>, vector<4x8x32xf32>
    %62 = vector.shape_cast %61 : vector<4x8x32xf32> to vector<4x1x8x32xf32>
    %63 = vector.shape_cast %62 : vector<4x1x8x32xf32> to vector<4x1x8x32xf32>
    %64 = vector.broadcast %63 : vector<4x1x8x32xf32> to vector<4x4x8x32xf32>
    %65 = vector.shape_cast %64 : vector<4x4x8x32xf32> to vector<16x8x32xf32>
    %cst_31 = arith.constant dense<0.000000e+00> : vector<16x8x32xf32>
    %66 = tpu.matmul %60, %65, %cst_31 {dimension_numbers = #tpu.dot_dimension_numbers<[2], [1], [1], [2], [0, 0, 0, 1, 1, 2], [0], [0]>} : vector<16x8x8xf32>, vector<16x8x32xf32>, vector<16x8x32xf32> -> vector<16x8x32xf32>
    %67 = vector.shape_cast %66 : vector<16x8x32xf32> to vector<4x4x8x32xf32>
    %68 = vector.extract_strided_slice %67 {offsets = [0, 0, 0, 0], sizes = [1, 4, 8, 32], strides = [1, 1, 1, 1]} : vector<4x4x8x32xf32> to vector<1x4x8x32xf32>
    %69 = vector.shape_cast %68 : vector<1x4x8x32xf32> to vector<4x8x32xf32>
    %70 = vector.extract_strided_slice %67 {offsets = [1, 0, 0, 0], sizes = [1, 4, 8, 32], strides = [1, 1, 1, 1]} : vector<4x4x8x32xf32> to vector<1x4x8x32xf32>
    %71 = vector.shape_cast %70 : vector<1x4x8x32xf32> to vector<4x8x32xf32>
    %72 = arith.addf %69, %71 : vector<4x8x32xf32>
    %73 = vector.extract_strided_slice %67 {offsets = [2, 0, 0, 0], sizes = [1, 4, 8, 32], strides = [1, 1, 1, 1]} : vector<4x4x8x32xf32> to vector<1x4x8x32xf32>
    %74 = vector.shape_cast %73 : vector<1x4x8x32xf32> to vector<4x8x32xf32>
    %75 = arith.addf %72, %74 : vector<4x8x32xf32>
    %76 = vector.extract_strided_slice %67 {offsets = [3, 0, 0, 0], sizes = [1, 4, 8, 32], strides = [1, 1, 1, 1]} : vector<4x4x8x32xf32> to vector<1x4x8x32xf32>
    %77 = vector.shape_cast %76 : vector<1x4x8x32xf32> to vector<4x8x32xf32>
    %78 = arith.addf %75, %77 : vector<4x8x32xf32>
    %79 = vector.shape_cast %78 : vector<4x8x32xf32> to vector<32x32xf32>
    %c0_32 = arith.constant 0 : index
    %c0_33 = arith.constant 0 : index
    %80 = vector.load %arg6[%c0_32, %c0_33] : memref<7x32xf32, #tpu.memory_space<vmem>>, vector<1x32xf32>
    %81 = vector.shape_cast %80 : vector<1x32xf32> to vector<32xf32>
    %82 = vector.shape_cast %81 : vector<32xf32> to vector<1x32xf32>
    %83 = vector.broadcast %82 : vector<1x32xf32> to vector<32x32xf32>
    %84 = arith.addf %79, %83 : vector<32x32xf32>
    %85 = arith.addf %2, %84 : vector<32x32xf32>
    %c3 = arith.constant 3 : index
    %c0_34 = arith.constant 0 : index
    %86 = vector.load %arg6[%c3, %c0_34] : memref<7x32xf32, #tpu.memory_space<vmem>>, vector<1x32xf32>
    %87 = vector.shape_cast %86 : vector<1x32xf32> to vector<32xf32>
    %c4 = arith.constant 4 : index
    %c0_35 = arith.constant 0 : index
    %88 = vector.load %arg6[%c4, %c0_35] : memref<7x32xf32, #tpu.memory_space<vmem>>, vector<1x32xf32>
    %89 = vector.shape_cast %88 : vector<1x32xf32> to vector<32xf32>
    %cst_36 = arith.constant dense<0.000000e+00> : vector<32xf32>
    %90 = vector.multi_reduction <add>, %85, %cst_36 [1] : vector<32x32xf32> to vector<32xf32>
    %91 = vector.shape_cast %90 : vector<32xf32> to vector<32x1xf32>
    %cst_37 = arith.constant 3.200000e+01 : f32
    %92 = vector.broadcast %cst_37 : f32 to vector<32x1xf32>
    %93 = arith.divf %91, %92 : vector<32x1xf32>
    %94 = vector.broadcast %93 : vector<32x1xf32> to vector<32x32xf32>
    %95 = arith.subf %85, %94 : vector<32x32xf32>
    %96 = arith.mulf %95, %95 : vector<32x32xf32>
    %cst_38 = arith.constant dense<0.000000e+00> : vector<32xf32>
    %97 = vector.multi_reduction <add>, %96, %cst_38 [1] : vector<32x32xf32> to vector<32xf32>
    %98 = vector.shape_cast %97 : vector<32xf32> to vector<32x1xf32>
    %cst_39 = arith.constant 3.200000e+01 : f32
    %99 = vector.broadcast %cst_39 : f32 to vector<32x1xf32>
    %100 = arith.divf %98, %99 : vector<32x1xf32>
    %101 = vector.broadcast %93 : vector<32x1xf32> to vector<32x32xf32>
    %102 = arith.subf %85, %101 : vector<32x32xf32>
    %cst_40 = arith.constant 9.99999974E-6 : f32
    %103 = vector.broadcast %cst_40 : f32 to vector<32x1xf32>
    %104 = arith.addf %100, %103 : vector<32x1xf32>
    %105 = math.rsqrt %104 : vector<32x1xf32>
    %106 = vector.broadcast %105 : vector<32x1xf32> to vector<32x32xf32>
    %107 = arith.mulf %102, %106 : vector<32x32xf32>
    %108 = vector.shape_cast %87 : vector<32xf32> to vector<1x32xf32>
    %109 = vector.broadcast %108 : vector<1x32xf32> to vector<32x32xf32>
    %110 = arith.mulf %107, %109 : vector<32x32xf32>
    %111 = vector.shape_cast %89 : vector<32xf32> to vector<1x32xf32>
    %112 = vector.broadcast %111 : vector<1x32xf32> to vector<32x32xf32>
    %113 = arith.addf %110, %112 : vector<32x32xf32>
    %c0_41 = arith.constant 0 : index
    %c0_42 = arith.constant 0 : index
    %c0_43 = arith.constant 0 : index
    %114 = vector.load %arg5[%c0_41, %c0_42, %c0_43] : memref<2x32x32xf32, #tpu.memory_space<vmem>>, vector<1x32x32xf32>
    %115 = vector.shape_cast %114 : vector<1x32x32xf32> to vector<32x32xf32>
    %c1_44 = arith.constant 1 : index
    %c0_45 = arith.constant 0 : index
    %116 = vector.load %arg6[%c1_44, %c0_45] : memref<7x32xf32, #tpu.memory_space<vmem>>, vector<1x32xf32>
    %117 = vector.shape_cast %116 : vector<1x32xf32> to vector<32xf32>
    %cst_46 = arith.constant dense<0.000000e+00> : vector<32x32xf32>
    %118 = tpu.matmul %113, %115, %cst_46 {dimension_numbers = #tpu.dot_dimension_numbers<[1], [0], [0], [1], [0, 0, 1, 1], [], []>} : vector<32x32xf32>, vector<32x32xf32>, vector<32x32xf32> -> vector<32x32xf32>
    %119 = vector.shape_cast %117 : vector<32xf32> to vector<1x32xf32>
    %120 = vector.broadcast %119 : vector<1x32xf32> to vector<32x32xf32>
    %121 = arith.addf %118, %120 : vector<32x32xf32>
    %cst_47 = arith.constant 0.000000e+00 : f32
    %122 = vector.broadcast %cst_47 : f32 to vector<32x32xf32>
    %123 = arith.maximumf %121, %122 : vector<32x32xf32>
    %c1_48 = arith.constant 1 : index
    %c0_49 = arith.constant 0 : index
    %c0_50 = arith.constant 0 : index
    %124 = vector.load %arg5[%c1_48, %c0_49, %c0_50] : memref<2x32x32xf32, #tpu.memory_space<vmem>>, vector<1x32x32xf32>
    %125 = vector.shape_cast %124 : vector<1x32x32xf32> to vector<32x32xf32>
    %c2_51 = arith.constant 2 : index
    %c0_52 = arith.constant 0 : index
    %126 = vector.load %arg6[%c2_51, %c0_52] : memref<7x32xf32, #tpu.memory_space<vmem>>, vector<1x32xf32>
    %127 = vector.shape_cast %126 : vector<1x32xf32> to vector<32xf32>
    %cst_53 = arith.constant dense<0.000000e+00> : vector<32x32xf32>
    %128 = tpu.matmul %123, %125, %cst_53 {dimension_numbers = #tpu.dot_dimension_numbers<[1], [0], [0], [1], [0, 0, 1, 1], [], []>} : vector<32x32xf32>, vector<32x32xf32>, vector<32x32xf32> -> vector<32x32xf32>
    %129 = vector.shape_cast %127 : vector<32xf32> to vector<1x32xf32>
    %130 = vector.broadcast %129 : vector<1x32xf32> to vector<32x32xf32>
    %131 = arith.addf %128, %130 : vector<32x32xf32>
    %132 = arith.addf %113, %131 : vector<32x32xf32>
    %c5 = arith.constant 5 : index
    %c0_54 = arith.constant 0 : index
    %133 = vector.load %arg6[%c5, %c0_54] : memref<7x32xf32, #tpu.memory_space<vmem>>, vector<1x32xf32>
    %134 = vector.shape_cast %133 : vector<1x32xf32> to vector<32xf32>
    %c6 = arith.constant 6 : index
    %c0_55 = arith.constant 0 : index
    %135 = vector.load %arg6[%c6, %c0_55] : memref<7x32xf32, #tpu.memory_space<vmem>>, vector<1x32xf32>
    %136 = vector.shape_cast %135 : vector<1x32xf32> to vector<32xf32>
    %cst_56 = arith.constant dense<0.000000e+00> : vector<32xf32>
    %137 = vector.multi_reduction <add>, %132, %cst_56 [1] : vector<32x32xf32> to vector<32xf32>
    %138 = vector.shape_cast %137 : vector<32xf32> to vector<32x1xf32>
    %cst_57 = arith.constant 3.200000e+01 : f32
    %139 = vector.broadcast %cst_57 : f32 to vector<32x1xf32>
    %140 = arith.divf %138, %139 : vector<32x1xf32>
    %141 = vector.broadcast %140 : vector<32x1xf32> to vector<32x32xf32>
    %142 = arith.subf %132, %141 : vector<32x32xf32>
    %143 = arith.mulf %142, %142 : vector<32x32xf32>
    %cst_58 = arith.constant dense<0.000000e+00> : vector<32xf32>
    %144 = vector.multi_reduction <add>, %143, %cst_58 [1] : vector<32x32xf32> to vector<32xf32>
    %145 = vector.shape_cast %144 : vector<32xf32> to vector<32x1xf32>
    %cst_59 = arith.constant 3.200000e+01 : f32
    %146 = vector.broadcast %cst_59 : f32 to vector<32x1xf32>
    %147 = arith.divf %145, %146 : vector<32x1xf32>
    %148 = vector.broadcast %140 : vector<32x1xf32> to vector<32x32xf32>
    %149 = arith.subf %132, %148 : vector<32x32xf32>
    %cst_60 = arith.constant 9.99999974E-6 : f32
    %150 = vector.broadcast %cst_60 : f32 to vector<32x1xf32>
    %151 = arith.addf %147, %150 : vector<32x1xf32>
    %152 = math.rsqrt %151 : vector<32x1xf32>
    %153 = vector.broadcast %152 : vector<32x1xf32> to vector<32x32xf32>
    %154 = arith.mulf %149, %153 : vector<32x32xf32>
    %155 = vector.shape_cast %134 : vector<32xf32> to vector<1x32xf32>
    %156 = vector.broadcast %155 : vector<1x32xf32> to vector<32x32xf32>
    %157 = arith.mulf %154, %156 : vector<32x32xf32>
    %158 = vector.shape_cast %136 : vector<32xf32> to vector<1x32xf32>
    %159 = vector.broadcast %158 : vector<1x32xf32> to vector<32x32xf32>
    %160 = arith.addf %157, %159 : vector<32x32xf32>
    %161 = vector.shape_cast %160 : vector<32x32xf32> to vector<4x8x32xf32>
    %c0_61 = arith.constant 0 : index
    %c0_62 = arith.constant 0 : index
    %c0_63 = arith.constant 0 : index
    %c0_64 = arith.constant 0 : index
    %162 = vector.load %arg7[%c0_61, %c0_62, %c0_63, %c0_64] : memref<1x4x8x32xf32, #tpu.memory_space<vmem>>, vector<1x4x8x32xf32>
    %163 = vector.shape_cast %162 : vector<1x4x8x32xf32> to vector<4x8x32xf32>
    %164 = vector.shape_cast %161 : vector<4x8x32xf32> to vector<1x4x8x32xf32>
    tpu.vector_store %arg7[%c0_61, %c0_62, %c0_63, %c0_64], %164 {strides = array<i32>} : memref<1x4x8x32xf32, #tpu.memory_space<vmem>>, vector<1x4x8x32xf32>,
    return
  }
  func.func @transform_0(%arg0: i32) -> (i32, i32, i32, i32) {
    %c0_i32 = arith.constant 0 : i32
    %c0_i32_0 = arith.constant 0 : i32
    %c0_i32_1 = arith.constant 0 : i32
    %c0_i32_2 = arith.constant 0 : i32
    return %arg0, %c0_i32, %c0_i32_0, %c0_i32_1 : i32, i32, i32, i32
  }
  func.func @transform_1(%arg0: i32) -> (i32, i32, i32, i32) {
    %c0_i32 = arith.constant 0 : i32
    %c0_i32_0 = arith.constant 0 : i32
    %c0_i32_1 = arith.constant 0 : i32
    %c0_i32_2 = arith.constant 0 : i32
    %c0_i32_3 = arith.constant 0 : i32
    return %c0_i32, %c0_i32_0, %c0_i32_1, %c0_i32_2 : i32, i32, i32, i32
  }
  func.func @transform_2(%arg0: i32) -> (i32, i32, i32) {
    %c0_i32 = arith.constant 0 : i32
    %c0_i32_0 = arith.constant 0 : i32
    %c0_i32_1 = arith.constant 0 : i32
    %c0_i32_2 = arith.constant 0 : i32
    return %c0_i32, %c0_i32_0, %c0_i32_1 : i32, i32, i32
  }
  func.func @transform_3(%arg0: i32) -> (i32, i32, i32) {
    %c0_i32 = arith.constant 0 : i32
    %c0_i32_0 = arith.constant 0 : i32
    %c0_i32_1 = arith.constant 0 : i32
    %c0_i32_2 = arith.constant 0 : i32
    return %c0_i32, %c0_i32_0, %c0_i32_1 : i32, i32, i32
  }
  func.func @transform_4(%arg0: i32) -> (i32, i32, i32) {
    %c0_i32 = arith.constant 0 : i32
    %c0_i32_0 = arith.constant 0 : i32
    %c0_i32_1 = arith.constant 0 : i32
    %c0_i32_2 = arith.constant 0 : i32
    return %c0_i32, %c0_i32_0, %c0_i32_1 : i32, i32, i32
  }
  func.func @transform_5(%arg0: i32) -> (i32, i32) {
    %c0_i32 = arith.constant 0 : i32
    %c0_i32_0 = arith.constant 0 : i32
    %c0_i32_1 = arith.constant 0 : i32
    return %c0_i32, %c0_i32_0 : i32, i32
  }
  func.func @transform_6(%arg0: i32) -> (i32, i32, i32, i32) {
    %c0_i32 = arith.constant 0 : i32
    %c0_i32_0 = arith.constant 0 : i32
    %c0_i32_1 = arith.constant 0 : i32
    %c0_i32_2 = arith.constant 0 : i32
    return %arg0, %c0_i32, %c0_i32_0, %c0_i32_1 : i32, i32, i32, i32
  }
}

</mosaic_0001>

<llo_original>
// kernel: tpu_custom_call.1
$region0: #{tpu_custom_call.1}
  #allocation0 [shape = 'u32[]', space=smem, size = 0x4, offset = 0x4, fixed_abs, tag = 'smem constant byte address 0x4 - core index']
  #allocation1 [shape = 'u32[72,128]{1,0:T(1,128)}', space=vmem, size = 0x9000, scoped, tag = 'internal scratch']
  %s0 = inlined_call_operand.vmem [shape: f32[2,4,8,32], index: 0, kind: input, shape index: {}]
  %s1 = inlined_call_operand.vmem [shape: f32[3,4,32,8], index: 1, kind: input, shape index: {}]
  %s2 = inlined_call_operand.vmem [shape: f32[3,4,8], index: 2, kind: input, shape index: {}]
  %s3 = inlined_call_operand.vmem [shape: f32[4,8,32], index: 3, kind: input, shape index: {}]
  %s4 = inlined_call_operand.vmem [shape: f32[2,32,32], index: 4, kind: input, shape index: {}]
  %s5 = inlined_call_operand.vmem [shape: f32[7,32], index: 5, kind: input, shape index: {}]
  %s6 = inlined_call_operand.hbm [shape: f32[2,4,8,32], index: 6, kind: output, shape index: {}]
  %s7 = sld [smem:[#allocation0]]
  $region57: #{tpu_custom_call.1} parent=0
    _
  %s9 = ssub.s32 1, %s7
  %s10 = scalar_select 0, %s9, %s7
  $region1: #{tpu_custom_call.1} parent=0
    #allocation2 [shape = 'u8[32768]{0}', space=vmem, size = 0x8000, scoped, tag = 'output window, operand 0']
    #allocation3 [shape = 's32[2]{0}', space=sflag, size = 0x8, scoped, tag = 'scoped memory for tpu_custom_call.1']
    %11 = vsyncpa [#allocation3], 0
    %s12 = scalar_lea.sflag [#allocation3], 1
    %13 = vsyncpa %s12, 0
    loop: start=0, step=1, limit=4
    $region2: #{tpu_custom_call.1} parent=1 // loop_pre_header
      _
    $region3: #{tpu_custom_call.1} parent=1 // loop_header
      %s15 = sphi 0, %s19
      %p16 = scmp.ge.s32.totalorder %s15, 4
      %s25 = sphi 0, %s27
      %s28 = sphi 0, %s25
      %s29 = sphi 0, %s28
      %s45 = sphi 0, %s29
      %s49 = sphi 0, %s49
      %s51 = sphi 0, %s49
      %s52 = sphi 0, %s51
      %s66 = sphi 0, %s52
      %s70 = sphi 0, %s70
      %s72 = sphi 0, %s70
      %s73 = sphi 0, %s72
      %s87 = sphi 0, %s73
      %s91 = sphi 0, %s91
      %s93 = sphi 0, %s91
      %s94 = sphi 0, %s93
      %s108 = sphi 0, %s94
      %s112 = sphi 0, %s112
      %s114 = sphi 0, %s112
      %s115 = sphi 0, %s114
      %s129 = sphi 0, %s115
      %s133 = sphi 0, %s133
      %s135 = sphi 0, %s133
      %s136 = sphi 0, %s135
      %s150 = sphi 0, %s136
      %s156 = sphi 0, %s158
      %s159 = sphi 0, %s156
      %s160 = sphi 0, %s159
      %s176 = sphi 0, %s160
    $region4: #{tpu_custom_call.1} parent=1 // loop_header_branch
      %18 = sbr.rel (%p16) target = $region8
    $region5: #{tpu_custom_call.1} parent=1 // loop_body
      %s20 = ssub.s32 %s15, 1
      %s21 = ssub.s32 %s15, 2
      %s22 = sadd.s32 %s15, 1
      %s23 = ssub.s32 %s15, %s22
      %p24 = scmp.eq.s32.totalorder %s23, 0
      %s26 = sadd.s32 %s25, 1
      %s27 = scalar_select %p24, %s25, %s26
      %p30 = pneg %p24
      %p31 = scmp.eq.s32.totalorder %s15, 1
      %p32 = por %p30, %p31
      %p33 = scmp.ne.s32.totalorder %s25, %s28
      %p34 = scmp.eq.s32.totalorder %s15, 0
      %p35 = por %p33, %p34
      %p36 = scmp.ne.s32.totalorder %s25, %s28
      %p37 = scmp.eq.s32.totalorder %s20, 1
      %p38 = por %p36, %p37
      %p39 = scmp.ne.s32.totalorder %s28, %s29
      %p40 = scmp.eq.s32.totalorder %s20, 0
      %p41 = por %p39, %p40
      %p42 = scmp.ne.s32.totalorder %s28, %s29
      %p43 = scmp.eq.s32.totalorder %s21, 1
      %p44 = por %p42, %p43
      %p46 = scmp.ne.s32.totalorder %s29, %s45
      %p47 = scmp.eq.s32.totalorder %s21, 0
      %p48 = por %p46, %p47
      %s50 = sadd.s32 %s49, 1
      %p53 = scmp.eq.s32.totalorder %s15, 1
      %p54 = scmp.ne.s32.totalorder %s49, %s51
      %p55 = scmp.eq.s32.totalorder %s15, 0
      %p56 = por %p54, %p55
      %p57 = scmp.ne.s32.totalorder %s49, %s51
      %p58 = scmp.eq.s32.totalorder %s20, 1
      %p59 = por %p57, %p58
      %p60 = scmp.ne.s32.totalorder %s51, %s52
      %p61 = scmp.eq.s32.totalorder %s20, 0
      %p62 = por %p60, %p61
      %p63 = scmp.ne.s32.totalorder %s51, %s52
      %p64 = scmp.eq.s32.totalorder %s21, 1
      %p65 = por %p63, %p64
      %p67 = scmp.ne.s32.totalorder %s52, %s66
      %p68 = scmp.eq.s32.totalorder %s21, 0
      %p69 = por %p67, %p68
      %s71 = sadd.s32 %s70, 1
      %p74 = scmp.eq.s32.totalorder %s15, 1
      %p75 = scmp.ne.s32.totalorder %s70, %s72
      %p76 = scmp.eq.s32.totalorder %s15, 0
      %p77 = por %p75, %p76
      %p78 = scmp.ne.s32.totalorder %s70, %s72
      %p79 = scmp.eq.s32.totalorder %s20, 1
      %p80 = por %p78, %p79
      %p81 = scmp.ne.s32.totalorder %s72, %s73
      %p82 = scmp.eq.s32.totalorder %s20, 0
      %p83 = por %p81, %p82
      %p84 = scmp.ne.s32.totalorder %s72, %s73
      %p85 = scmp.eq.s32.totalorder %s21, 1
      %p86 = por %p84, %p85
      %p88 = scmp.ne.s32.totalorder %s73, %s87
      %p89 = scmp.eq.s32.totalorder %s21, 0
      %p90 = por %p88, %p89
      %s92 = sadd.s32 %s91, 1
      %p95 = scmp.eq.s32.totalorder %s15, 1
      %p96 = scmp.ne.s32.totalorder %s91, %s93
      %p97 = scmp.eq.s32.totalorder %s15, 0
      %p98 = por %p96, %p97
      %p99 = scmp.ne.s32.totalorder %s91, %s93
      %p100 = scmp.eq.s32.totalorder %s20, 1
      %p101 = por %p99, %p100
      %p102 = scmp.ne.s32.totalorder %s93, %s94
      %p103 = scmp.eq.s32.totalorder %s20, 0
      %p104 = por %p102, %p103
      %p105 = scmp.ne.s32.totalorder %s93, %s94
      %p106 = scmp.eq.s32.totalorder %s21, 1
      %p107 = por %p105, %p106
      %p109 = scmp.ne.s32.totalorder %s94, %s108
      %p110 = scmp.eq.s32.totalorder %s21, 0
      %p111 = por %p109, %p110
      %s113 = sadd.s32 %s112, 1
      %p116 = scmp.eq.s32.totalorder %s15, 1
      %p117 = scmp.ne.s32.totalorder %s112, %s114
      %p118 = scmp.eq.s32.totalorder %s15, 0
      %p119 = por %p117, %p118
      %p120 = scmp.ne.s32.totalorder %s112, %s114
      %p121 = scmp.eq.s32.totalorder %s20, 1
      %p122 = por %p120, %p121
      %p123 = scmp.ne.s32.totalorder %s114, %s115
      %p124 = scmp.eq.s32.totalorder %s20, 0
      %p125 = por %p123, %p124
      %p126 = scmp.ne.s32.totalorder %s114, %s115
      %p127 = scmp.eq.s32.totalorder %s21, 1
      %p128 = por %p126, %p127
      %p130 = scmp.ne.s32.totalorder %s115, %s129
      %p131 = scmp.eq.s32.totalorder %s21, 0
      %p132 = por %p130, %p131
      %s134 = sadd.s32 %s133, 1
      %p137 = scmp.eq.s32.totalorder %s15, 1
      %p138 = scmp.ne.s32.totalorder %s133, %s135
      %p139 = scmp.eq.s32.totalorder %s15, 0
      %p140 = por %p138, %p139
      %p141 = scmp.ne.s32.totalorder %s133, %s135
      %p142 = scmp.eq.s32.totalorder %s20, 1
      %p143 = por %p141, %p142
      %p144 = scmp.ne.s32.totalorder %s135, %s136
      %p145 = scmp.eq.s32.totalorder %s20, 0
      %p146 = por %p144, %p145
      %p147 = scmp.ne.s32.totalorder %s135, %s136
      %p148 = scmp.eq.s32.totalorder %s21, 1
      %p149 = por %p147, %p148
      %p151 = scmp.ne.s32.totalorder %s136, %s150
      %p152 = scmp.eq.s32.totalorder %s21, 0
      %p153 = por %p151, %p152
      %s154 = ssub.s32 %s15, %s22
      %p155 = scmp.eq.s32.totalorder %s154, 0
      %s157 = sadd.s32 %s156, 1
      %s158 = scalar_select %p155, %s156, %s157
      %p161 = pneg %p155
      %p162 = scmp.eq.s32.totalorder %s15, 1
      %p163 = por %p161, %p162
      %p164 = scmp.ne.s32.totalorder %s156, %s159
      %p165 = scmp.eq.s32.totalorder %s15, 0
      %p166 = por %p164, %p165
      %p167 = scmp.ne.s32.totalorder %s156, %s159
      %p168 = scmp.eq.s32.totalorder %s20, 1
      %p169 = por %p167, %p168
      %p170 = scmp.ne.s32.totalorder %s159, %s160
      %p171 = scmp.eq.s32.totalorder %s20, 0
      %p172 = por %p170, %p171
      %p173 = scmp.ne.s32.totalorder %s159, %s160
      %p174 = scmp.eq.s32.totalorder %s21, 1
      %p175 = por %p173, %p174
      %p177 = scmp.ne.s32.totalorder %s160, %s176
      %p178 = scmp.eq.s32.totalorder %s21, 0
      %p179 = por %p177, %p178
      %p180 = scmp.le.s32.totalorder 1, %s15
      %p181 = scmp.lt.s32.totalorder %s15, 3
      %p182 = pnand %p180, %p181
      %p183 = pneg %p182
      // Predicated region
      $region9: #{tpu_custom_call.1} parent=5 // pred_check
        _
      $region10: #{tpu_custom_call.1} parent=5 // pred_check_branch
        %185 = sbr.rel (%p182) target = $region12
      $region11: #{tpu_custom_call.1} parent=5 // pred_region
        %s186 = ssub.s32 %s15, 1
        // Predicated region
        $region13: #{tpu_custom_call.1} parent=11 // pred_check
          %p187 = pneg %p62
        $region14: #{tpu_custom_call.1} parent=11 // pred_check_branch
          %189 = sbr.rel (%p187) target = $region16
        $region15: #{tpu_custom_call.1} parent=11 // pred_region
          _
        $region16: #{tpu_custom_call.1} parent=11 // pred_fallthru
          _
        // Predicated region
        $region17: #{tpu_custom_call.1} parent=11 // pred_check
          %p190 = pneg %p83
        $region18: #{tpu_custom_call.1} parent=11 // pred_check_branch
          %192 = sbr.rel (%p190) target = $region20
        $region19: #{tpu_custom_call.1} parent=11 // pred_region
          _
        $region20: #{tpu_custom_call.1} parent=11 // pred_fallthru
          _
        // Predicated region
        $region21: #{tpu_custom_call.1} parent=11 // pred_check
          %p193 = pneg %p104
        $region22: #{tpu_custom_call.1} parent=11 // pred_check_branch
          %195 = sbr.rel (%p193) target = $region24
        $region23: #{tpu_custom_call.1} parent=11 // pred_region
          _
        $region24: #{tpu_custom_call.1} parent=11 // pred_fallthru
          _
        // Predicated region
        $region25: #{tpu_custom_call.1} parent=11 // pred_check
          %p196 = pneg %p125
        $region26: #{tpu_custom_call.1} parent=11 // pred_check_branch
          %198 = sbr.rel (%p196) target = $region28
        $region27: #{tpu_custom_call.1} parent=11 // pred_region
          _
        $region28: #{tpu_custom_call.1} parent=11 // pred_fallthru
          _
        // Predicated region
        $region29: #{tpu_custom_call.1} parent=11 // pred_check
          %p199 = pneg %p146
        $region30: #{tpu_custom_call.1} parent=11 // pred_check_branch
          %201 = sbr.rel (%p199) target = $region32
        $region31: #{tpu_custom_call.1} parent=11 // pred_region
          _
        $region32: #{tpu_custom_call.1} parent=11 // pred_fallthru
          _
      $region12: #{tpu_custom_call.1} parent=5 // pred_fallthru
        _
      %p202 = scmp.lt.s32.totalorder %s15, 2
      // Predicated region
      $region33: #{tpu_custom_call.1} parent=5 // pred_check
        %p203 = pneg %p202
      $region34: #{tpu_custom_call.1} parent=5 // pred_check_branch
        %205 = sbr.rel (%p203) target = $region36
      $region35: #{tpu_custom_call.1} parent=5 // pred_region
        // Predicated region
        $region37: #{tpu_custom_call.1} parent=35 // pred_check
          %p206 = pneg %p35
        $region38: #{tpu_custom_call.1} parent=35 // pred_check_branch
          %208 = sbr.rel (%p206) target = $region40
        $region39: #{tpu_custom_call.1} parent=35 // pred_region
          %p209 = scmp.lt.s32.totalorder %s15, 1
          %s210 = scalar_select %p209, %s15, 1
          %s211 = smul.addr %s210, 4
          %s212 = smul.addr %s211, 8
          %s213 = scalar_lea.vmem %s0, %s212
        $region40: #{tpu_custom_call.1} parent=35 // pred_fallthru
          _
      $region36: #{tpu_custom_call.1} parent=5 // pred_fallthru
        _
      %p214 = scmp.le.s32.totalorder 1, %s15
      %p215 = scmp.lt.s32.totalorder %s15, 3
      %p216 = pnand %p214, %p215
      %p217 = pneg %p216
      // Predicated region
      $region41: #{tpu_custom_call.1} parent=5 // pred_check
        _
      $region42: #{tpu_custom_call.1} parent=5 // pred_check_branch
        %219 = sbr.rel (%p216) target = $region44
      $region43: #{tpu_custom_call.1} parent=5 // pred_region
        %s220 = ssub.s32 %s15, 1
        %p221 = scmp.lt.s32.totalorder %s20, 1
        %s222 = scalar_select %p221, %s20, 1
        %s223 = smul.addr %s222, 4
        %s224 = smul.addr %s223, 8
        %s225 = scalar_lea.vmem %s0, %s224
        %p226 = pneg %p41
        %p227 = pneg %p38
        %p228 = pneg %p62
        %p229 = pneg %p59
        %p230 = pneg %p83
        %p231 = pneg %p80
        %p232 = pneg %p104
        %p233 = pneg %p101
        %p234 = pneg %p125
        %p235 = pneg %p122
        %p236 = pneg %p146
        %p237 = pneg %p143
        %p238 = pneg %p172
        %p239 = pneg %p169
        %s240 = sand.u32 %s159, 1
        %s241 = scalar_lea.sflag [#allocation3], %s240
        %s242 = sand.u32 %s159, 1
        %s243 = smul.addr %s242, 32
        %s244 = scalar_lea.vmem [#allocation2], %s243
        %p245 = scmp.lt.s32.totalorder %s20, 1
        %s246 = scalar_select %p245, %s20, 1
        %s247 = smul.addr %s246, 4
        %s248 = smul.addr %s247, 8
        %s249 = scalar_lea.vmem %s0, %s248
        %v250 = vld [vmem:[%s249] sm:$0xff]
        %v251 = vld [vmem:[%s249 + $0x8] sm:$0xff]
        %v252 = vld [vmem:[%s249 + $0x10] sm:$0xff]
        %v253 = vld [vmem:[%s249 + $0x18] sm:$0xff]
        %v254 = vld [vmem:[%s1] sm:$0xff]
        %v255 = vld [vmem:[%s1 + $0x8] sm:$0xff]
        %v256 = vld [vmem:[%s1 + $0x10] sm:$0xff]
        %v257 = vld [vmem:[%s1 + $0x18] sm:$0xff]
        %v258 = vld [vmem:[%s1 + $0x20] sm:$0xff]
        %v259 = vld [vmem:[%s1 + $0x28] sm:$0xff]
        %v260 = vld [vmem:[%s1 + $0x30] sm:$0xff]
        %v261 = vld [vmem:[%s1 + $0x38] sm:$0xff]
        %v262 = vld [vmem:[%s1 + $0x40] sm:$0xff]
        %v263 = vld [vmem:[%s1 + $0x48] sm:$0xff]
        %v264 = vld [vmem:[%s1 + $0x50] sm:$0xff]
        %v265 = vld [vmem:[%s1 + $0x58] sm:$0xff]
        %v266 = vld [vmem:[%s1 + $0x60] sm:$0xff]
        %v267 = vld [vmem:[%s1 + $0x68] sm:$0xff]
        %v268 = vld [vmem:[%s1 + $0x70] sm:$0xff]
        %v269 = vld [vmem:[%s1 + $0x78] sm:$0xff]
        %v270 = vld [vmem:[%s2] sm:$0xf]
        %v272 = vrot.slane %v270, 1
        %v273 = vrot.slane %v270, 2
        %v274 = vrot.slane %v270, 3
        %v275 = vperm.slane %v270, 0
        %v276 = vperm.slane %v272, 0
        %v277 = vperm.slane %v273, 0
        %v278 = vperm.slane %v274, 0
        %vm283 = vcmask 261120
        %v285 = vsel %vm283, %v250, 0
        %287 = vmatpush.msra.mxu0 0.0
        %288 = vmatpush.msra.mxu0 0.0
        %289 = vmatpush.msra.mxu0 0.0
        %290 = vmatpush.msra.mxu0 0.0
        %291 = vmatpush.msra.mxu0 0.0
        %292 = vmatpush.msra.mxu0 0.0
        %293 = vmatpush.msra.mxu0 0.0
        %294 = vmatpush.msra.mxu0 0.0
        %295 = vmatpush.msra.mxu0 0.0
        %296 = vmatpush.msra.mxu0 0.0
        %297 = vmatpush.msra.mxu0 0.0
        %298 = vmatpush.msra.mxu0 0.0
        %299 = vmatpush.msra.mxu0 %v257
        %300 = vmatpush.msra.mxu0 %v256
        %301 = vmatpush.msra.mxu0 %v255
        %302 = vmatpush.msra.mxu0 %v254
        %303 = vmatmul.f32.gmra.mxu0 %v285
        %v304 = vpop.f32.mrf.mxu0
        %v305 = vadd.f32 %v275, %v304
        %306 = vdwg.mxu0
        %v308 = vsel %vm283, %v251, 0
        %310 = vmatpush.msra.mxu0 0.0
        %311 = vmatpush.msra.mxu0 0.0
        %312 = vmatpush.msra.mxu0 0.0
        %313 = vmatpush.msra.mxu0 0.0
        %314 = vmatpush.msra.mxu0 0.0
        %315 = vmatpush.msra.mxu0 0.0
        %316 = vmatpush.msra.mxu0 0.0
        %317 = vmatpush.msra.mxu0 0.0
        %318 = vmatpush.msra.mxu0 0.0
        %319 = vmatpush.msra.mxu0 0.0
        %320 = vmatpush.msra.mxu0 0.0
        %321 = vmatpush.msra.mxu0 0.0
        %322 = vmatpush.msra.mxu0 %v257
        %323 = vmatpush.msra.mxu0 %v256
        %324 = vmatpush.msra.mxu0 %v255
        %325 = vmatpush.msra.mxu0 %v254
        %326 = vmatmul.f32.gmra.mxu0 %v308
        %v327 = vpop.f32.mrf.mxu0
        %v328 = vadd.f32 %v275, %v327
        %329 = vdwg.mxu0
        %v331 = vsel %vm283, %v252, 0
        %333 = vmatpush.msra.mxu0 0.0
        %334 = vmatpush.msra.mxu0 0.0
        %335 = vmatpush.msra.mxu0 0.0
        %336 = vmatpush.msra.mxu0 0.0
        %337 = vmatpush.msra.mxu0 0.0
        %338 = vmatpush.msra.mxu0 0.0
        %339 = vmatpush.msra.mxu0 0.0
        %340 = vmatpush.msra.mxu0 0.0
        %341 = vmatpush.msra.mxu0 0.0
        %342 = vmatpush.msra.mxu0 0.0
        %343 = vmatpush.msra.mxu0 0.0
        %344 = vmatpush.msra.mxu0 0.0
        %345 = vmatpush.msra.mxu0 %v257
        %346 = vmatpush.msra.mxu0 %v256
        %347 = vmatpush.msra.mxu0 %v255
        %348 = vmatpush.msra.mxu0 %v254
        %349 = vmatmul.f32.gmra.mxu0 %v331
        %v350 = vpop.f32.mrf.mxu0
        %v351 = vadd.f32 %v275, %v350
        %352 = vdwg.mxu0
        %v354 = vsel %vm283, %v253, 0
        %356 = vmatpush.msra.mxu0 0.0
        %357 = vmatpush.msra.mxu0 0.0
        %358 = vmatpush.msra.mxu0 0.0
        %359 = vmatpush.msra.mxu0 0.0
        %360 = vmatpush.msra.mxu0 0.0
        %361 = vmatpush.msra.mxu0 0.0
        %362 = vmatpush.msra.mxu0 0.0
        %363 = vmatpush.msra.mxu0 0.0
        %364 = vmatpush.msra.mxu0 0.0
        %365 = vmatpush.msra.mxu0 0.0
        %366 = vmatpush.msra.mxu0 0.0
        %367 = vmatpush.msra.mxu0 0.0
        %368 = vmatpush.msra.mxu0 %v257
        %369 = vmatpush.msra.mxu0 %v256
        %370 = vmatpush.msra.mxu0 %v255
        %371 = vmatpush.msra.mxu0 %v254
        %372 = vmatmul.f32.gmra.mxu0 %v354
        %v373 = vpop.f32.mrf.mxu0
        %v374 = vadd.f32 %v275, %v373
        %375 = vdwg.mxu0
        %376 = vmatpush.msra.mxu0 0.0
        %377 = vmatpush.msra.mxu0 0.0
        %378 = vmatpush.msra.mxu0 0.0
        %379 = vmatpush.msra.mxu0 0.0
        %380 = vmatpush.msra.mxu0 0.0
        %381 = vmatpush.msra.mxu0 0.0
        %382 = vmatpush.msra.mxu0 0.0
        %383 = vmatpush.msra.mxu0 0.0
        %384 = vmatpush.msra.mxu0 0.0
        %385 = vmatpush.msra.mxu0 0.0
        %386 = vmatpush.msra.mxu0 0.0
        %387 = vmatpush.msra.mxu0 0.0
        %388 = vmatpush.msra.mxu0 %v261
        %389 = vmatpush.msra.mxu0 %v260
        %390 = vmatpush.msra.mxu0 %v259
        %391 = vmatpush.msra.mxu0 %v258
        %392 = vmatmul.f32.gmra.mxu0 %v285
        %v393 = vpop.f32.mrf.mxu0
        %v394 = vadd.f32 %v276, %v393
        %395 = vdwg.mxu0
        %396 = vmatpush.msra.mxu0 0.0
        %397 = vmatpush.msra.mxu0 0.0
        %398 = vmatpush.msra.mxu0 0.0
        %399 = vmatpush.msra.mxu0 0.0
        %400 = vmatpush.msra.mxu0 0.0
        %401 = vmatpush.msra.mxu0 0.0
        %402 = vmatpush.msra.mxu0 0.0
        %403 = vmatpush.msra.mxu0 0.0
        %404 = vmatpush.msra.mxu0 0.0
        %405 = vmatpush.msra.mxu0 0.0
        %406 = vmatpush.msra.mxu0 0.0
        %407 = vmatpush.msra.mxu0 0.0
        %408 = vmatpush.msra.mxu0 %v261
        %409 = vmatpush.msra.mxu0 %v260
        %410 = vmatpush.msra.mxu0 %v259
        %411 = vmatpush.msra.mxu0 %v258
        %412 = vmatmul.f32.gmra.mxu0 %v308
        %v413 = vpop.f32.mrf.mxu0
        %v414 = vadd.f32 %v276, %v413
        %415 = vdwg.mxu0
        %416 = vmatpush.msra.mxu0 0.0
        %417 = vmatpush.msra.mxu0 0.0
        %418 = vmatpush.msra.mxu0 0.0
        %419 = vmatpush.msra.mxu0 0.0
        %420 = vmatpush.msra.mxu0 0.0
        %421 = vmatpush.msra.mxu0 0.0
        %422 = vmatpush.msra.mxu0 0.0
        %423 = vmatpush.msra.mxu0 0.0
        %424 = vmatpush.msra.mxu0 0.0
        %425 = vmatpush.msra.mxu0 0.0
        %426 = vmatpush.msra.mxu0 0.0
        %427 = vmatpush.msra.mxu0 0.0
        %428 = vmatpush.msra.mxu0 %v261
        %429 = vmatpush.msra.mxu0 %v260
        %430 = vmatpush.msra.mxu0 %v259
        %431 = vmatpush.msra.mxu0 %v258
        %432 = vmatmul.f32.gmra.mxu0 %v331
        %v433 = vpop.f32.mrf.mxu0
        %v434 = vadd.f32 %v276, %v433
        %435 = vdwg.mxu0
        %436 = vmatpush.msra.mxu0 0.0
        %437 = vmatpush.msra.mxu0 0.0
        %438 = vmatpush.msra.mxu0 0.0
        %439 = vmatpush.msra.mxu0 0.0
        %440 = vmatpush.msra.mxu0 0.0
        %441 = vmatpush.msra.mxu0 0.0
        %442 = vmatpush.msra.mxu0 0.0
        %443 = vmatpush.msra.mxu0 0.0
        %444 = vmatpush.msra.mxu0 0.0
        %445 = vmatpush.msra.mxu0 0.0
        %446 = vmatpush.msra.mxu0 0.0
        %447 = vmatpush.msra.mxu0 0.0
        %448 = vmatpush.msra.mxu0 %v261
        %449 = vmatpush.msra.mxu0 %v260
        %450 = vmatpush.msra.mxu0 %v259
        %451 = vmatpush.msra.mxu0 %v258
        %452 = vmatmul.f32.gmra.mxu0 %v354
        %v453 = vpop.f32.mrf.mxu0
        %v454 = vadd.f32 %v276, %v453
        %455 = vdwg.mxu0
        %456 = vmatpush.msra.mxu0 0.0
        %457 = vmatpush.msra.mxu0 0.0
        %458 = vmatpush.msra.mxu0 0.0
        %459 = vmatpush.msra.mxu0 0.0
        %460 = vmatpush.msra.mxu0 0.0
        %461 = vmatpush.msra.mxu0 0.0
        %462 = vmatpush.msra.mxu0 0.0
        %463 = vmatpush.msra.mxu0 0.0
        %464 = vmatpush.msra.mxu0 0.0
        %465 = vmatpush.msra.mxu0 0.0
        %466 = vmatpush.msra.mxu0 0.0
        %467 = vmatpush.msra.mxu0 0.0
        %468 = vmatpush.msra.mxu0 %v265
        %469 = vmatpush.msra.mxu0 %v264
        %470 = vmatpush.msra.mxu0 %v263
        %471 = vmatpush.msra.mxu0 %v262
        %472 = vmatmul.f32.gmra.mxu0 %v285
        %v473 = vpop.f32.mrf.mxu0
        %v474 = vadd.f32 %v277, %v473
        %475 = vdwg.mxu0
        %476 = vmatpush.msra.mxu0 0.0
        %477 = vmatpush.msra.mxu0 0.0
        %478 = vmatpush.msra.mxu0 0.0
        %479 = vmatpush.msra.mxu0 0.0
        %480 = vmatpush.msra.mxu0 0.0
        %481 = vmatpush.msra.mxu0 0.0
        %482 = vmatpush.msra.mxu0 0.0
        %483 = vmatpush.msra.mxu0 0.0
        %484 = vmatpush.msra.mxu0 0.0
        %485 = vmatpush.msra.mxu0 0.0
        %486 = vmatpush.msra.mxu0 0.0
        %487 = vmatpush.msra.mxu0 0.0
        %488 = vmatpush.msra.mxu0 %v265
        %489 = vmatpush.msra.mxu0 %v264
        %490 = vmatpush.msra.mxu0 %v263
        %491 = vmatpush.msra.mxu0 %v262
        %492 = vmatmul.f32.gmra.mxu0 %v308
        %v493 = vpop.f32.mrf.mxu0
        %v494 = vadd.f32 %v277, %v493
        %495 = vdwg.mxu0
        %496 = vmatpush.msra.mxu0 0.0
        %497 = vmatpush.msra.mxu0 0.0
        %498 = vmatpush.msra.mxu0 0.0
        %499 = vmatpush.msra.mxu0 0.0
        %500 = vmatpush.msra.mxu0 0.0
        %501 = vmatpush.msra.mxu0 0.0
        %502 = vmatpush.msra.mxu0 0.0
        %503 = vmatpush.msra.mxu0 0.0
        %504 = vmatpush.msra.mxu0 0.0
        %505 = vmatpush.msra.mxu0 0.0
        %506 = vmatpush.msra.mxu0 0.0
        %507 = vmatpush.msra.mxu0 0.0
        %508 = vmatpush.msra.mxu0 %v265
        %509 = vmatpush.msra.mxu0 %v264
        %510 = vmatpush.msra.mxu0 %v263
        %511 = vmatpush.msra.mxu0 %v262
        %512 = vmatmul.f32.gmra.mxu0 %v331
        %v513 = vpop.f32.mrf.mxu0
        %v514 = vadd.f32 %v277, %v513
        %515 = vdwg.mxu0
        %516 = vmatpush.msra.mxu0 0.0
        %517 = vmatpush.msra.mxu0 0.0
        %518 = vmatpush.msra.mxu0 0.0
        %519 = vmatpush.msra.mxu0 0.0
        %520 = vmatpush.msra.mxu0 0.0
        %521 = vmatpush.msra.mxu0 0.0
        %522 = vmatpush.msra.mxu0 0.0
        %523 = vmatpush.msra.mxu0 0.0
        %524 = vmatpush.msra.mxu0 0.0
        %525 = vmatpush.msra.mxu0 0.0
        %526 = vmatpush.msra.mxu0 0.0
        %527 = vmatpush.msra.mxu0 0.0
        %528 = vmatpush.msra.mxu0 %v265
        %529 = vmatpush.msra.mxu0 %v264
        %530 = vmatpush.msra.mxu0 %v263
        %531 = vmatpush.msra.mxu0 %v262
        %532 = vmatmul.f32.gmra.mxu0 %v354
        %v533 = vpop.f32.mrf.mxu0
        %v534 = vadd.f32 %v277, %v533
        %535 = vdwg.mxu0
        %536 = vmatpush.msra.mxu0 0.0
        %537 = vmatpush.msra.mxu0 0.0
        %538 = vmatpush.msra.mxu0 0.0
        %539 = vmatpush.msra.mxu0 0.0
        %540 = vmatpush.msra.mxu0 0.0
        %541 = vmatpush.msra.mxu0 0.0
        %542 = vmatpush.msra.mxu0 0.0
        %543 = vmatpush.msra.mxu0 0.0
        %544 = vmatpush.msra.mxu0 0.0
        %545 = vmatpush.msra.mxu0 0.0
        %546 = vmatpush.msra.mxu0 0.0
        %547 = vmatpush.msra.mxu0 0.0
        %548 = vmatpush.msra.mxu0 %v269
        %549 = vmatpush.msra.mxu0 %v268
        %550 = vmatpush.msra.mxu0 %v267
        %551 = vmatpush.msra.mxu0 %v266
        %552 = vmatmul.f32.gmra.mxu0 %v285
        %v553 = vpop.f32.mrf.mxu0
        %v554 = vadd.f32 %v278, %v553
        %555 = vdwg.mxu0
        %556 = vmatpush.msra.mxu0 0.0
        %557 = vmatpush.msra.mxu0 0.0
        %558 = vmatpush.msra.mxu0 0.0
        %559 = vmatpush.msra.mxu0 0.0
        %560 = vmatpush.msra.mxu0 0.0
        %561 = vmatpush.msra.mxu0 0.0
        %562 = vmatpush.msra.mxu0 0.0
        %563 = vmatpush.msra.mxu0 0.0
        %564 = vmatpush.msra.mxu0 0.0
        %565 = vmatpush.msra.mxu0 0.0
        %566 = vmatpush.msra.mxu0 0.0
        %567 = vmatpush.msra.mxu0 0.0
        %568 = vmatpush.msra.mxu0 %v269
        %569 = vmatpush.msra.mxu0 %v268
        %570 = vmatpush.msra.mxu0 %v267
        %571 = vmatpush.msra.mxu0 %v266
        %572 = vmatmul.f32.gmra.mxu0 %v308
        %v573 = vpop.f32.mrf.mxu0
        %v574 = vadd.f32 %v278, %v573
        %575 = vdwg.mxu0
        %576 = vmatpush.msra.mxu0 0.0
        %577 = vmatpush.msra.mxu0 0.0
        %578 = vmatpush.msra.mxu0 0.0
        %579 = vmatpush.msra.mxu0 0.0
        %580 = vmatpush.msra.mxu0 0.0
        %581 = vmatpush.msra.mxu0 0.0
        %582 = vmatpush.msra.mxu0 0.0
        %583 = vmatpush.msra.mxu0 0.0
        %584 = vmatpush.msra.mxu0 0.0
        %585 = vmatpush.msra.mxu0 0.0
        %586 = vmatpush.msra.mxu0 0.0
        %587 = vmatpush.msra.mxu0 0.0
        %588 = vmatpush.msra.mxu0 %v269
        %589 = vmatpush.msra.mxu0 %v268
        %590 = vmatpush.msra.mxu0 %v267
        %591 = vmatpush.msra.mxu0 %v266
        %592 = vmatmul.f32.gmra.mxu0 %v331
        %v593 = vpop.f32.mrf.mxu0
        %v594 = vadd.f32 %v278, %v593
        %595 = vdwg.mxu0
        %596 = vmatpush.msra.mxu0 0.0
        %597 = vmatpush.msra.mxu0 0.0
        %598 = vmatpush.msra.mxu0 0.0
        %599 = vmatpush.msra.mxu0 0.0
        %600 = vmatpush.msra.mxu0 0.0
        %601 = vmatpush.msra.mxu0 0.0
        %602 = vmatpush.msra.mxu0 0.0
        %603 = vmatpush.msra.mxu0 0.0
        %604 = vmatpush.msra.mxu0 0.0
        %605 = vmatpush.msra.mxu0 0.0
        %606 = vmatpush.msra.mxu0 0.0
        %607 = vmatpush.msra.mxu0 0.0
        %608 = vmatpush.msra.mxu0 %v269
        %609 = vmatpush.msra.mxu0 %v268
        %610 = vmatpush.msra.mxu0 %v267
        %611 = vmatpush.msra.mxu0 %v266
        %612 = vmatmul.f32.gmra.mxu0 %v354
        %v613 = vpop.f32.mrf.mxu0
        %v614 = vadd.f32 %v278, %v613
        %615 = vdwg.mxu0
        %s616 = scalar_lea.vmem %s1, 128
        %v617 = vld [vmem:[%s616] sm:$0xff]
        %v618 = vld [vmem:[%s616 + $0x8] sm:$0xff]
        %v619 = vld [vmem:[%s616 + $0x10] sm:$0xff]
        %v620 = vld [vmem:[%s616 + $0x18] sm:$0xff]
        %v621 = vld [vmem:[%s616 + $0x20] sm:$0xff]
        %v622 = vld [vmem:[%s616 + $0x28] sm:$0xff]
        %v623 = vld [vmem:[%s616 + $0x30] sm:$0xff]
        %v624 = vld [vmem:[%s616 + $0x38] sm:$0xff]
        %v625 = vld [vmem:[%s616 + $0x40] sm:$0xff]
        %v626 = vld [vmem:[%s616 + $0x48] sm:$0xff]
        %v627 = vld [vmem:[%s616 + $0x50] sm:$0xff]
        %v628 = vld [vmem:[%s616 + $0x58] sm:$0xff]
        %v629 = vld [vmem:[%s616 + $0x60] sm:$0xff]
        %v630 = vld [vmem:[%s616 + $0x68] sm:$0xff]
        %v631 = vld [vmem:[%s616 + $0x70] sm:$0xff]
        %v632 = vld [vmem:[%s616 + $0x78] sm:$0xff]
        %s633 = scalar_lea.vmem %s2, 4
        %v634 = vld [vmem:[%s633] sm:$0xf]
        %v636 = vrot.slane %v634, 1
        %v637 = vrot.slane %v634, 2
        %v638 = vrot.slane %v634, 3
        %v639 = vperm.slane %v634, 0
        %v640 = vperm.slane %v636, 0
        %v641 = vperm.slane %v637, 0
        %v642 = vperm.slane %v638, 0
        %647 = vmatpush.msra.mxu0 0.0
        %648 = vmatpush.msra.mxu0 0.0
        %649 = vmatpush.msra.mxu0 0.0
        %650 = vmatpush.msra.mxu0 0.0
        %651 = vmatpush.msra.mxu0 0.0
        %652 = vmatpush.msra.mxu0 0.0
        %653 = vmatpush.msra.mxu0 0.0
        %654 = vmatpush.msra.mxu0 0.0
        %655 = vmatpush.msra.mxu0 0.0
        %656 = vmatpush.msra.mxu0 0.0
        %657 = vmatpush.msra.mxu0 0.0
        %658 = vmatpush.msra.mxu0 0.0
        %659 = vmatpush.msra.mxu0 %v620
        %660 = vmatpush.msra.mxu0 %v619
        %661 = vmatpush.msra.mxu0 %v618
        %662 = vmatpush.msra.mxu0 %v617
        %663 = vmatmul.f32.gmra.mxu0 %v285
        %v664 = vpop.f32.mrf.mxu0
        %v665 = vadd.f32 %v639, %v664
        %666 = vdwg.mxu0
        %667 = vmatpush.msra.mxu0 0.0
        %668 = vmatpush.msra.mxu0 0.0
        %669 = vmatpush.msra.mxu0 0.0
        %670 = vmatpush.msra.mxu0 0.0
        %671 = vmatpush.msra.mxu0 0.0
        %672 = vmatpush.msra.mxu0 0.0
        %673 = vmatpush.msra.mxu0 0.0
        %674 = vmatpush.msra.mxu0 0.0
        %675 = vmatpush.msra.mxu0 0.0
        %676 = vmatpush.msra.mxu0 0.0
        %677 = vmatpush.msra.mxu0 0.0
        %678 = vmatpush.msra.mxu0 0.0
        %679 = vmatpush.msra.mxu0 %v620
        %680 = vmatpush.msra.mxu0 %v619
        %681 = vmatpush.msra.mxu0 %v618
        %682 = vmatpush.msra.mxu0 %v617
        %683 = vmatmul.f32.gmra.mxu0 %v308
        %v684 = vpop.f32.mrf.mxu0
        %v685 = vadd.f32 %v639, %v684
        %686 = vdwg.mxu0
        %687 = vmatpush.msra.mxu0 0.0
        %688 = vmatpush.msra.mxu0 0.0
        %689 = vmatpush.msra.mxu0 0.0
        %690 = vmatpush.msra.mxu0 0.0
        %691 = vmatpush.msra.mxu0 0.0
        %692 = vmatpush.msra.mxu0 0.0
        %693 = vmatpush.msra.mxu0 0.0
        %694 = vmatpush.msra.mxu0 0.0
        %695 = vmatpush.msra.mxu0 0.0
        %696 = vmatpush.msra.mxu0 0.0
        %697 = vmatpush.msra.mxu0 0.0
        %698 = vmatpush.msra.mxu0 0.0
        %699 = vmatpush.msra.mxu0 %v620
        %700 = vmatpush.msra.mxu0 %v619
        %701 = vmatpush.msra.mxu0 %v618
        %702 = vmatpush.msra.mxu0 %v617
        %703 = vmatmul.f32.gmra.mxu0 %v331
        %v704 = vpop.f32.mrf.mxu0
        %v705 = vadd.f32 %v639, %v704
        %706 = vdwg.mxu0
        %707 = vmatpush.msra.mxu0 0.0
        %708 = vmatpush.msra.mxu0 0.0
        %709 = vmatpush.msra.mxu0 0.0
        %710 = vmatpush.msra.mxu0 0.0
        %711 = vmatpush.msra.mxu0 0.0
        %712 = vmatpush.msra.mxu0 0.0
        %713 = vmatpush.msra.mxu0 0.0
        %714 = vmatpush.msra.mxu0 0.0
        %715 = vmatpush.msra.mxu0 0.0
        %716 = vmatpush.msra.mxu0 0.0
        %717 = vmatpush.msra.mxu0 0.0
        %718 = vmatpush.msra.mxu0 0.0
        %719 = vmatpush.msra.mxu0 %v620
        %720 = vmatpush.msra.mxu0 %v619
        %721 = vmatpush.msra.mxu0 %v618
        %722 = vmatpush.msra.mxu0 %v617
        %723 = vmatmul.f32.gmra.mxu0 %v354
        %v724 = vpop.f32.mrf.mxu0
        %v725 = vadd.f32 %v639, %v724
        %726 = vdwg.mxu0
        %727 = vmatpush.msra.mxu0 0.0
        %728 = vmatpush.msra.mxu0 0.0
        %729 = vmatpush.msra.mxu0 0.0
        %730 = vmatpush.msra.mxu0 0.0
        %731 = vmatpush.msra.mxu0 0.0
        %732 = vmatpush.msra.mxu0 0.0
        %733 = vmatpush.msra.mxu0 0.0
        %734 = vmatpush.msra.mxu0 0.0
        %735 = vmatpush.msra.mxu0 0.0
        %736 = vmatpush.msra.mxu0 0.0
        %737 = vmatpush.msra.mxu0 0.0
        %738 = vmatpush.msra.mxu0 0.0
        %739 = vmatpush.msra.mxu0 %v624
        %740 = vmatpush.msra.mxu0 %v623
        %741 = vmatpush.msra.mxu0 %v622
        %742 = vmatpush.msra.mxu0 %v621
        %743 = vmatmul.f32.gmra.mxu0 %v285
        %v744 = vpop.f32.mrf.mxu0
        %v745 = vadd.f32 %v640, %v744
        %746 = vdwg.mxu0
        %747 = vmatpush.msra.mxu0 0.0
        %748 = vmatpush.msra.mxu0 0.0
        %749 = vmatpush.msra.mxu0 0.0
        %750 = vmatpush.msra.mxu0 0.0
        %751 = vmatpush.msra.mxu0 0.0
        %752 = vmatpush.msra.mxu0 0.0
        %753 = vmatpush.msra.mxu0 0.0
        %754 = vmatpush.msra.mxu0 0.0
        %755 = vmatpush.msra.mxu0 0.0
        %756 = vmatpush.msra.mxu0 0.0
        %757 = vmatpush.msra.mxu0 0.0
        %758 = vmatpush.msra.mxu0 0.0
        %759 = vmatpush.msra.mxu0 %v624
        %760 = vmatpush.msra.mxu0 %v623
        %761 = vmatpush.msra.mxu0 %v622
        %762 = vmatpush.msra.mxu0 %v621
        %763 = vmatmul.f32.gmra.mxu0 %v308
        %v764 = vpop.f32.mrf.mxu0
        %v765 = vadd.f32 %v640, %v764
        %766 = vdwg.mxu0
        %767 = vmatpush.msra.mxu0 0.0
        %768 = vmatpush.msra.mxu0 0.0
        %769 = vmatpush.msra.mxu0 0.0
        %770 = vmatpush.msra.mxu0 0.0
        %771 = vmatpush.msra.mxu0 0.0
        %772 = vmatpush.msra.mxu0 0.0
        %773 = vmatpush.msra.mxu0 0.0
        %774 = vmatpush.msra.mxu0 0.0
        %775 = vmatpush.msra.mxu0 0.0
        %776 = vmatpush.msra.mxu0 0.0
        %777 = vmatpush.msra.mxu0 0.0
        %778 = vmatpush.msra.mxu0 0.0
        %779 = vmatpush.msra.mxu0 %v624
        %780 = vmatpush.msra.mxu0 %v623
        %781 = vmatpush.msra.mxu0 %v622
        %782 = vmatpush.msra.mxu0 %v621
        %783 = vmatmul.f32.gmra.mxu0 %v331
        %v784 = vpop.f32.mrf.mxu0
        %v785 = vadd.f32 %v640, %v784
        %786 = vdwg.mxu0
        %787 = vmatpush.msra.mxu0 0.0
        %788 = vmatpush.msra.mxu0 0.0
        %789 = vmatpush.msra.mxu0 0.0
        %790 = vmatpush.msra.mxu0 0.0
        %791 = vmatpush.msra.mxu0 0.0
        %792 = vmatpush.msra.mxu0 0.0
        %793 = vmatpush.msra.mxu0 0.0
        %794 = vmatpush.msra.mxu0 0.0
        %795 = vmatpush.msra.mxu0 0.0
        %796 = vmatpush.msra.mxu0 0.0
        %797 = vmatpush.msra.mxu0 0.0
        %798 = vmatpush.msra.mxu0 0.0
        %799 = vmatpush.msra.mxu0 %v624
        %800 = vmatpush.msra.mxu0 %v623
        %801 = vmatpush.msra.mxu0 %v622
        %802 = vmatpush.msra.mxu0 %v621
        %803 = vmatmul.f32.gmra.mxu0 %v354
        %v804 = vpop.f32.mrf.mxu0
        %v805 = vadd.f32 %v640, %v804
        %806 = vdwg.mxu0
        %807 = vmatpush.msra.mxu0 0.0
        %808 = vmatpush.msra.mxu0 0.0
        %809 = vmatpush.msra.mxu0 0.0
        %810 = vmatpush.msra.mxu0 0.0
        %811 = vmatpush.msra.mxu0 0.0
        %812 = vmatpush.msra.mxu0 0.0
        %813 = vmatpush.msra.mxu0 0.0
        %814 = vmatpush.msra.mxu0 0.0
        %815 = vmatpush.msra.mxu0 0.0
        %816 = vmatpush.msra.mxu0 0.0
        %817 = vmatpush.msra.mxu0 0.0
        %818 = vmatpush.msra.mxu0 0.0
        %819 = vmatpush.msra.mxu0 %v628
        %820 = vmatpush.msra.mxu0 %v627
        %821 = vmatpush.msra.mxu0 %v626
        %822 = vmatpush.msra.mxu0 %v625
        %823 = vmatmul.f32.gmra.mxu0 %v285
        %v824 = vpop.f32.mrf.mxu0
        %v825 = vadd.f32 %v641, %v824
        %826 = vdwg.mxu0
        %827 = vmatpush.msra.mxu0 0.0
        %828 = vmatpush.msra.mxu0 0.0
        %829 = vmatpush.msra.mxu0 0.0
        %830 = vmatpush.msra.mxu0 0.0
        %831 = vmatpush.msra.mxu0 0.0
        %832 = vmatpush.msra.mxu0 0.0
        %833 = vmatpush.msra.mxu0 0.0
        %834 = vmatpush.msra.mxu0 0.0
        %835 = vmatpush.msra.mxu0 0.0
        %836 = vmatpush.msra.mxu0 0.0
        %837 = vmatpush.msra.mxu0 0.0
        %838 = vmatpush.msra.mxu0 0.0
        %839 = vmatpush.msra.mxu0 %v628
        %840 = vmatpush.msra.mxu0 %v627
        %841 = vmatpush.msra.mxu0 %v626
        %842 = vmatpush.msra.mxu0 %v625
        %843 = vmatmul.f32.gmra.mxu0 %v308
        %v844 = vpop.f32.mrf.mxu0
        %v845 = vadd.f32 %v641, %v844
        %846 = vdwg.mxu0
        %847 = vmatpush.msra.mxu0 0.0
        %848 = vmatpush.msra.mxu0 0.0
        %849 = vmatpush.msra.mxu0 0.0
        %850 = vmatpush.msra.mxu0 0.0
        %851 = vmatpush.msra.mxu0 0.0
        %852 = vmatpush.msra.mxu0 0.0
        %853 = vmatpush.msra.mxu0 0.0
        %854 = vmatpush.msra.mxu0 0.0
        %855 = vmatpush.msra.mxu0 0.0
        %856 = vmatpush.msra.mxu0 0.0
        %857 = vmatpush.msra.mxu0 0.0
        %858 = vmatpush.msra.mxu0 0.0
        %859 = vmatpush.msra.mxu0 %v628
        %860 = vmatpush.msra.mxu0 %v627
        %861 = vmatpush.msra.mxu0 %v626
        %862 = vmatpush.msra.mxu0 %v625
        %863 = vmatmul.f32.gmra.mxu0 %v331
        %v864 = vpop.f32.mrf.mxu0
        %v865 = vadd.f32 %v641, %v864
        %866 = vdwg.mxu0
        %867 = vmatpush.msra.mxu0 0.0
        %868 = vmatpush.msra.mxu0 0.0
        %869 = vmatpush.msra.mxu0 0.0
        %870 = vmatpush.msra.mxu0 0.0
        %871 = vmatpush.msra.mxu0 0.0
        %872 = vmatpush.msra.mxu0 0.0
        %873 = vmatpush.msra.mxu0 0.0
        %874 = vmatpush.msra.mxu0 0.0
        %875 = vmatpush.msra.mxu0 0.0
        %876 = vmatpush.msra.mxu0 0.0
        %877 = vmatpush.msra.mxu0 0.0
        %878 = vmatpush.msra.mxu0 0.0
        %879 = vmatpush.msra.mxu0 %v628
        %880 = vmatpush.msra.mxu0 %v627
        %881 = vmatpush.msra.mxu0 %v626
        %882 = vmatpush.msra.mxu0 %v625
        %883 = vmatmul.f32.gmra.mxu0 %v354
        %v884 = vpop.f32.mrf.mxu0
        %v885 = vadd.f32 %v641, %v884
        %886 = vdwg.mxu0
        %887 = vmatpush.msra.mxu0 0.0
        %888 = vmatpush.msra.mxu0 0.0
        %889 = vmatpush.msra.mxu0 0.0
        %890 = vmatpush.msra.mxu0 0.0
        %891 = vmatpush.msra.mxu0 0.0
        %892 = vmatpush.msra.mxu0 0.0
        %893 = vmatpush.msra.mxu0 0.0
        %894 = vmatpush.msra.mxu0 0.0
        %895 = vmatpush.msra.mxu0 0.0
        %896 = vmatpush.msra.mxu0 0.0
        %897 = vmatpush.msra.mxu0 0.0
        %898 = vmatpush.msra.mxu0 0.0
        %899 = vmatpush.msra.mxu0 %v632
        %900 = vmatpush.msra.mxu0 %v631
        %901 = vmatpush.msra.mxu0 %v630
        %902 = vmatpush.msra.mxu0 %v629
        %903 = vmatmul.f32.gmra.mxu0 %v285
        %v904 = vpop.f32.mrf.mxu0
        %v905 = vadd.f32 %v642, %v904
        %906 = vdwg.mxu0
        %907 = vmatpush.msra.mxu0 0.0
        %908 = vmatpush.msra.mxu0 0.0
        %909 = vmatpush.msra.mxu0 0.0
        %910 = vmatpush.msra.mxu0 0.0
        %911 = vmatpush.msra.mxu0 0.0
        %912 = vmatpush.msra.mxu0 0.0
        %913 = vmatpush.msra.mxu0 0.0
        %914 = vmatpush.msra.mxu0 0.0
        %915 = vmatpush.msra.mxu0 0.0
        %916 = vmatpush.msra.mxu0 0.0
        %917 = vmatpush.msra.mxu0 0.0
        %918 = vmatpush.msra.mxu0 0.0
        %919 = vmatpush.msra.mxu0 %v632
        %920 = vmatpush.msra.mxu0 %v631
        %921 = vmatpush.msra.mxu0 %v630
        %922 = vmatpush.msra.mxu0 %v629
        %923 = vmatmul.f32.gmra.mxu0 %v308
        %v924 = vpop.f32.mrf.mxu0
        %v925 = vadd.f32 %v642, %v924
        %926 = vdwg.mxu0
        %927 = vmatpush.msra.mxu0 0.0
        %928 = vmatpush.msra.mxu0 0.0
        %929 = vmatpush.msra.mxu0 0.0
        %930 = vmatpush.msra.mxu0 0.0
        %931 = vmatpush.msra.mxu0 0.0
        %932 = vmatpush.msra.mxu0 0.0
        %933 = vmatpush.msra.mxu0 0.0
        %934 = vmatpush.msra.mxu0 0.0
        %935 = vmatpush.msra.mxu0 0.0
        %936 = vmatpush.msra.mxu0 0.0
        %937 = vmatpush.msra.mxu0 0.0
        %938 = vmatpush.msra.mxu0 0.0
        %939 = vmatpush.msra.mxu0 %v632
        %940 = vmatpush.msra.mxu0 %v631
        %941 = vmatpush.msra.mxu0 %v630
        %942 = vmatpush.msra.mxu0 %v629
        %943 = vmatmul.f32.gmra.mxu0 %v331
        %v944 = vpop.f32.mrf.mxu0
        %v945 = vadd.f32 %v642, %v944
        %946 = vdwg.mxu0
        %947 = vmatpush.msra.mxu0 0.0
        %948 = vmatpush.msra.mxu0 0.0
        %949 = vmatpush.msra.mxu0 0.0
        %950 = vmatpush.msra.mxu0 0.0
        %951 = vmatpush.msra.mxu0 0.0
        %952 = vmatpush.msra.mxu0 0.0
        %953 = vmatpush.msra.mxu0 0.0
        %954 = vmatpush.msra.mxu0 0.0
        %955 = vmatpush.msra.mxu0 0.0
        %956 = vmatpush.msra.mxu0 0.0
        %957 = vmatpush.msra.mxu0 0.0
        %958 = vmatpush.msra.mxu0 0.0
        %959 = vmatpush.msra.mxu0 %v632
        %960 = vmatpush.msra.mxu0 %v631
        %961 = vmatpush.msra.mxu0 %v630
        %962 = vmatpush.msra.mxu0 %v629
        %963 = vmatmul.f32.gmra.mxu0 %v354
        %v964 = vpop.f32.mrf.mxu0
        %v965 = vadd.f32 %v642, %v964
        %966 = vdwg.mxu0
        %s967 = scalar_lea.vmem %s1, 256
        %v968 = vld [vmem:[%s967] sm:$0xff]
        %v969 = vld [vmem:[%s967 + $0x8] sm:$0xff]
        %v970 = vld [vmem:[%s967 + $0x10] sm:$0xff]
        %v971 = vld [vmem:[%s967 + $0x18] sm:$0xff]
        %v972 = vld [vmem:[%s967 + $0x20] sm:$0xff]
        %v973 = vld [vmem:[%s967 + $0x28] sm:$0xff]
        %v974 = vld [vmem:[%s967 + $0x30] sm:$0xff]
        %v975 = vld [vmem:[%s967 + $0x38] sm:$0xff]
        %v976 = vld [vmem:[%s967 + $0x40] sm:$0xff]
        %v977 = vld [vmem:[%s967 + $0x48] sm:$0xff]
        %v978 = vld [vmem:[%s967 + $0x50] sm:$0xff]
        %v979 = vld [vmem:[%s967 + $0x58] sm:$0xff]
        %v980 = vld [vmem:[%s967 + $0x60] sm:$0xff]
        %v981 = vld [vmem:[%s967 + $0x68] sm:$0xff]
        %v982 = vld [vmem:[%s967 + $0x70] sm:$0xff]
        %v983 = vld [vmem:[%s967 + $0x78] sm:$0xff]
        %s984 = scalar_lea.vmem %s2, 8
        %v985 = vld [vmem:[%s984] sm:$0xf]
        %v987 = vrot.slane %v985, 1
        %v988 = vrot.slane %v985, 2
        %v989 = vrot.slane %v985, 3
        %v990 = vperm.slane %v985, 0
        %v991 = vperm.slane %v987, 0
        %v992 = vperm.slane %v988, 0
        %v993 = vperm.slane %v989, 0
        %998 = vmatpush.msra.mxu0 0.0
        %999 = vmatpush.msra.mxu0 0.0
        %1000 = vmatpush.msra.mxu0 0.0
        %1001 = vmatpush.msra.mxu0 0.0
        %1002 = vmatpush.msra.mxu0 0.0
        %1003 = vmatpush.msra.mxu0 0.0
        %1004 = vmatpush.msra.mxu0 0.0
        %1005 = vmatpush.msra.mxu0 0.0
        %1006 = vmatpush.msra.mxu0 0.0
        %1007 = vmatpush.msra.mxu0 0.0
        %1008 = vmatpush.msra.mxu0 0.0
        %1009 = vmatpush.msra.mxu0 0.0
        %1010 = vmatpush.msra.mxu0 %v971
        %1011 = vmatpush.msra.mxu0 %v970
        %1012 = vmatpush.msra.mxu0 %v969
        %1013 = vmatpush.msra.mxu0 %v968
        %1014 = vmatmul.f32.gmra.mxu0 %v285
        %v1015 = vpop.f32.mrf.mxu0
        %v1016 = vadd.f32 %v990, %v1015
        %1017 = vdwg.mxu0
        %1018 = vmatpush.msra.mxu0 0.0
        %1019 = vmatpush.msra.mxu0 0.0
        %1020 = vmatpush.msra.mxu0 0.0
        %1021 = vmatpush.msra.mxu0 0.0
        %1022 = vmatpush.msra.mxu0 0.0
        %1023 = vmatpush.msra.mxu0 0.0
        %1024 = vmatpush.msra.mxu0 0.0
        %1025 = vmatpush.msra.mxu0 0.0
        %1026 = vmatpush.msra.mxu0 0.0
        %1027 = vmatpush.msra.mxu0 0.0
        %1028 = vmatpush.msra.mxu0 0.0
        %1029 = vmatpush.msra.mxu0 0.0
        %1030 = vmatpush.msra.mxu0 %v971
        %1031 = vmatpush.msra.mxu0 %v970
        %1032 = vmatpush.msra.mxu0 %v969
        %1033 = vmatpush.msra.mxu0 %v968
        %1034 = vmatmul.f32.gmra.mxu0 %v308
        %v1035 = vpop.f32.mrf.mxu0
        %v1036 = vadd.f32 %v990, %v1035
        %1037 = vdwg.mxu0
        %1038 = vmatpush.msra.mxu0 0.0
        %1039 = vmatpush.msra.mxu0 0.0
        %1040 = vmatpush.msra.mxu0 0.0
        %1041 = vmatpush.msra.mxu0 0.0
        %1042 = vmatpush.msra.mxu0 0.0
        %1043 = vmatpush.msra.mxu0 0.0
        %1044 = vmatpush.msra.mxu0 0.0
        %1045 = vmatpush.msra.mxu0 0.0
        %1046 = vmatpush.msra.mxu0 0.0
        %1047 = vmatpush.msra.mxu0 0.0
        %1048 = vmatpush.msra.mxu0 0.0
        %1049 = vmatpush.msra.mxu0 0.0
        %1050 = vmatpush.msra.mxu0 %v971
        %1051 = vmatpush.msra.mxu0 %v970
        %1052 = vmatpush.msra.mxu0 %v969
        %1053 = vmatpush.msra.mxu0 %v968
        %1054 = vmatmul.f32.gmra.mxu0 %v331
        %v1055 = vpop.f32.mrf.mxu0
        %v1056 = vadd.f32 %v990, %v1055
        %1057 = vdwg.mxu0
        %1058 = vmatpush.msra.mxu0 0.0
        %1059 = vmatpush.msra.mxu0 0.0
        %1060 = vmatpush.msra.mxu0 0.0
        %1061 = vmatpush.msra.mxu0 0.0
        %1062 = vmatpush.msra.mxu0 0.0
        %1063 = vmatpush.msra.mxu0 0.0
        %1064 = vmatpush.msra.mxu0 0.0
        %1065 = vmatpush.msra.mxu0 0.0
        %1066 = vmatpush.msra.mxu0 0.0
        %1067 = vmatpush.msra.mxu0 0.0
        %1068 = vmatpush.msra.mxu0 0.0
        %1069 = vmatpush.msra.mxu0 0.0
        %1070 = vmatpush.msra.mxu0 %v971
        %1071 = vmatpush.msra.mxu0 %v970
        %1072 = vmatpush.msra.mxu0 %v969
        %1073 = vmatpush.msra.mxu0 %v968
        %1074 = vmatmul.f32.gmra.mxu0 %v354
        %v1075 = vpop.f32.mrf.mxu0
        %v1076 = vadd.f32 %v990, %v1075
        %1077 = vdwg.mxu0
        %1078 = vmatpush.msra.mxu0 0.0
        %1079 = vmatpush.msra.mxu0 0.0
        %1080 = vmatpush.msra.mxu0 0.0
        %1081 = vmatpush.msra.mxu0 0.0
        %1082 = vmatpush.msra.mxu0 0.0
        %1083 = vmatpush.msra.mxu0 0.0
        %1084 = vmatpush.msra.mxu0 0.0
        %1085 = vmatpush.msra.mxu0 0.0
        %1086 = vmatpush.msra.mxu0 0.0
        %1087 = vmatpush.msra.mxu0 0.0
        %1088 = vmatpush.msra.mxu0 0.0
        %1089 = vmatpush.msra.mxu0 0.0
        %1090 = vmatpush.msra.mxu0 %v975
        %1091 = vmatpush.msra.mxu0 %v974
        %1092 = vmatpush.msra.mxu0 %v973
        %1093 = vmatpush.msra.mxu0 %v972
        %1094 = vmatmul.f32.gmra.mxu0 %v285
        %v1095 = vpop.f32.mrf.mxu0
        %v1096 = vadd.f32 %v991, %v1095
        %1097 = vdwg.mxu0
        %1098 = vmatpush.msra.mxu0 0.0
        %1099 = vmatpush.msra.mxu0 0.0
        %1100 = vmatpush.msra.mxu0 0.0
        %1101 = vmatpush.msra.mxu0 0.0
        %1102 = vmatpush.msra.mxu0 0.0
        %1103 = vmatpush.msra.mxu0 0.0
        %1104 = vmatpush.msra.mxu0 0.0
        %1105 = vmatpush.msra.mxu0 0.0
        %1106 = vmatpush.msra.mxu0 0.0
        %1107 = vmatpush.msra.mxu0 0.0
        %1108 = vmatpush.msra.mxu0 0.0
        %1109 = vmatpush.msra.mxu0 0.0
        %1110 = vmatpush.msra.mxu0 %v975
        %1111 = vmatpush.msra.mxu0 %v974
        %1112 = vmatpush.msra.mxu0 %v973
        %1113 = vmatpush.msra.mxu0 %v972
        %1114 = vmatmul.f32.gmra.mxu0 %v308
        %v1115 = vpop.f32.mrf.mxu0
        %v1116 = vadd.f32 %v991, %v1115
        %1117 = vdwg.mxu0
        %1118 = vmatpush.msra.mxu0 0.0
        %1119 = vmatpush.msra.mxu0 0.0
        %1120 = vmatpush.msra.mxu0 0.0
        %1121 = vmatpush.msra.mxu0 0.0
        %1122 = vmatpush.msra.mxu0 0.0
        %1123 = vmatpush.msra.mxu0 0.0
        %1124 = vmatpush.msra.mxu0 0.0
        %1125 = vmatpush.msra.mxu0 0.0
        %1126 = vmatpush.msra.mxu0 0.0
        %1127 = vmatpush.msra.mxu0 0.0
        %1128 = vmatpush.msra.mxu0 0.0
        %1129 = vmatpush.msra.mxu0 0.0
        %1130 = vmatpush.msra.mxu0 %v975
        %1131 = vmatpush.msra.mxu0 %v974
        %1132 = vmatpush.msra.mxu0 %v973
        %1133 = vmatpush.msra.mxu0 %v972
        %1134 = vmatmul.f32.gmra.mxu0 %v331
        %v1135 = vpop.f32.mrf.mxu0
        %v1136 = vadd.f32 %v991, %v1135
        %1137 = vdwg.mxu0
        %1138 = vmatpush.msra.mxu0 0.0
        %1139 = vmatpush.msra.mxu0 0.0
        %1140 = vmatpush.msra.mxu0 0.0
        %1141 = vmatpush.msra.mxu0 0.0
        %1142 = vmatpush.msra.mxu0 0.0
        %1143 = vmatpush.msra.mxu0 0.0
        %1144 = vmatpush.msra.mxu0 0.0
        %1145 = vmatpush.msra.mxu0 0.0
        %1146 = vmatpush.msra.mxu0 0.0
        %1147 = vmatpush.msra.mxu0 0.0
        %1148 = vmatpush.msra.mxu0 0.0
        %1149 = vmatpush.msra.mxu0 0.0
        %1150 = vmatpush.msra.mxu0 %v975
        %1151 = vmatpush.msra.mxu0 %v974
        %1152 = vmatpush.msra.mxu0 %v973
        %1153 = vmatpush.msra.mxu0 %v972
        %1154 = vmatmul.f32.gmra.mxu0 %v354
        %v1155 = vpop.f32.mrf.mxu0
        %v1156 = vadd.f32 %v991, %v1155
        %1157 = vdwg.mxu0
        %1158 = vmatpush.msra.mxu0 0.0
        %1159 = vmatpush.msra.mxu0 0.0
        %1160 = vmatpush.msra.mxu0 0.0
        %1161 = vmatpush.msra.mxu0 0.0
        %1162 = vmatpush.msra.mxu0 0.0
        %1163 = vmatpush.msra.mxu0 0.0
        %1164 = vmatpush.msra.mxu0 0.0
        %1165 = vmatpush.msra.mxu0 0.0
        %1166 = vmatpush.msra.mxu0 0.0
        %1167 = vmatpush.msra.mxu0 0.0
        %1168 = vmatpush.msra.mxu0 0.0
        %1169 = vmatpush.msra.mxu0 0.0
        %1170 = vmatpush.msra.mxu0 %v979
        %1171 = vmatpush.msra.mxu0 %v978
        %1172 = vmatpush.msra.mxu0 %v977
        %1173 = vmatpush.msra.mxu0 %v976
        %1174 = vmatmul.f32.gmra.mxu0 %v285
        %v1175 = vpop.f32.mrf.mxu0
        %v1176 = vadd.f32 %v992, %v1175
        %1177 = vdwg.mxu0
        %1178 = vmatpush.msra.mxu0 0.0
        %1179 = vmatpush.msra.mxu0 0.0
        %1180 = vmatpush.msra.mxu0 0.0
        %1181 = vmatpush.msra.mxu0 0.0
        %1182 = vmatpush.msra.mxu0 0.0
        %1183 = vmatpush.msra.mxu0 0.0
        %1184 = vmatpush.msra.mxu0 0.0
        %1185 = vmatpush.msra.mxu0 0.0
        %1186 = vmatpush.msra.mxu0 0.0
        %1187 = vmatpush.msra.mxu0 0.0
        %1188 = vmatpush.msra.mxu0 0.0
        %1189 = vmatpush.msra.mxu0 0.0
        %1190 = vmatpush.msra.mxu0 %v979
        %1191 = vmatpush.msra.mxu0 %v978
        %1192 = vmatpush.msra.mxu0 %v977
        %1193 = vmatpush.msra.mxu0 %v976
        %1194 = vmatmul.f32.gmra.mxu0 %v308
        %v1195 = vpop.f32.mrf.mxu0
        %v1196 = vadd.f32 %v992, %v1195
        %1197 = vdwg.mxu0
        %1198 = vmatpush.msra.mxu0 0.0
        %1199 = vmatpush.msra.mxu0 0.0
        %1200 = vmatpush.msra.mxu0 0.0
        %1201 = vmatpush.msra.mxu0 0.0
        %1202 = vmatpush.msra.mxu0 0.0
        %1203 = vmatpush.msra.mxu0 0.0
        %1204 = vmatpush.msra.mxu0 0.0
        %1205 = vmatpush.msra.mxu0 0.0
        %1206 = vmatpush.msra.mxu0 0.0
        %1207 = vmatpush.msra.mxu0 0.0
        %1208 = vmatpush.msra.mxu0 0.0
        %1209 = vmatpush.msra.mxu0 0.0
        %1210 = vmatpush.msra.mxu0 %v979
        %1211 = vmatpush.msra.mxu0 %v978
        %1212 = vmatpush.msra.mxu0 %v977
        %1213 = vmatpush.msra.mxu0 %v976
        %1214 = vmatmul.f32.gmra.mxu0 %v331
        %v1215 = vpop.f32.mrf.mxu0
        %v1216 = vadd.f32 %v992, %v1215
        %1217 = vdwg.mxu0
        %1218 = vmatpush.msra.mxu0 0.0
        %1219 = vmatpush.msra.mxu0 0.0
        %1220 = vmatpush.msra.mxu0 0.0
        %1221 = vmatpush.msra.mxu0 0.0
        %1222 = vmatpush.msra.mxu0 0.0
        %1223 = vmatpush.msra.mxu0 0.0
        %1224 = vmatpush.msra.mxu0 0.0
        %1225 = vmatpush.msra.mxu0 0.0
        %1226 = vmatpush.msra.mxu0 0.0
        %1227 = vmatpush.msra.mxu0 0.0
        %1228 = vmatpush.msra.mxu0 0.0
        %1229 = vmatpush.msra.mxu0 0.0
        %1230 = vmatpush.msra.mxu0 %v979
        %1231 = vmatpush.msra.mxu0 %v978
        %1232 = vmatpush.msra.mxu0 %v977
        %1233 = vmatpush.msra.mxu0 %v976
        %1234 = vmatmul.f32.gmra.mxu0 %v354
        %v1235 = vpop.f32.mrf.mxu0
        %v1236 = vadd.f32 %v992, %v1235
        %1237 = vdwg.mxu0
        %1238 = vmatpush.msra.mxu0 0.0
        %1239 = vmatpush.msra.mxu0 0.0
        %1240 = vmatpush.msra.mxu0 0.0
        %1241 = vmatpush.msra.mxu0 0.0
        %1242 = vmatpush.msra.mxu0 0.0
        %1243 = vmatpush.msra.mxu0 0.0
        %1244 = vmatpush.msra.mxu0 0.0
        %1245 = vmatpush.msra.mxu0 0.0
        %1246 = vmatpush.msra.mxu0 0.0
        %1247 = vmatpush.msra.mxu0 0.0
        %1248 = vmatpush.msra.mxu0 0.0
        %1249 = vmatpush.msra.mxu0 0.0
        %1250 = vmatpush.msra.mxu0 %v983
        %1251 = vmatpush.msra.mxu0 %v982
        %1252 = vmatpush.msra.mxu0 %v981
        %1253 = vmatpush.msra.mxu0 %v980
        %1254 = vmatmul.f32.gmra.mxu0 %v285
        %v1255 = vpop.f32.mrf.mxu0
        %v1256 = vadd.f32 %v993, %v1255
        %1257 = vdwg.mxu0
        %1258 = vmatpush.msra.mxu0 0.0
        %1259 = vmatpush.msra.mxu0 0.0
        %1260 = vmatpush.msra.mxu0 0.0
        %1261 = vmatpush.msra.mxu0 0.0
        %1262 = vmatpush.msra.mxu0 0.0
        %1263 = vmatpush.msra.mxu0 0.0
        %1264 = vmatpush.msra.mxu0 0.0
        %1265 = vmatpush.msra.mxu0 0.0
        %1266 = vmatpush.msra.mxu0 0.0
        %1267 = vmatpush.msra.mxu0 0.0
        %1268 = vmatpush.msra.mxu0 0.0
        %1269 = vmatpush.msra.mxu0 0.0
        %1270 = vmatpush.msra.mxu0 %v983
        %1271 = vmatpush.msra.mxu0 %v982
        %1272 = vmatpush.msra.mxu0 %v981
        %1273 = vmatpush.msra.mxu0 %v980
        %1274 = vmatmul.f32.gmra.mxu0 %v308
        %v1275 = vpop.f32.mrf.mxu0
        %v1276 = vadd.f32 %v993, %v1275
        %1277 = vdwg.mxu0
        %1278 = vmatpush.msra.mxu0 0.0
        %1279 = vmatpush.msra.mxu0 0.0
        %1280 = vmatpush.msra.mxu0 0.0
        %1281 = vmatpush.msra.mxu0 0.0
        %1282 = vmatpush.msra.mxu0 0.0
        %1283 = vmatpush.msra.mxu0 0.0
        %1284 = vmatpush.msra.mxu0 0.0
        %1285 = vmatpush.msra.mxu0 0.0
        %1286 = vmatpush.msra.mxu0 0.0
        %1287 = vmatpush.msra.mxu0 0.0
        %1288 = vmatpush.msra.mxu0 0.0
        %1289 = vmatpush.msra.mxu0 0.0
        %1290 = vmatpush.msra.mxu0 %v983
        %1291 = vmatpush.msra.mxu0 %v982
        %1292 = vmatpush.msra.mxu0 %v981
        %1293 = vmatpush.msra.mxu0 %v980
        %1294 = vmatmul.f32.gmra.mxu0 %v331
        %v1295 = vpop.f32.mrf.mxu0
        %v1296 = vadd.f32 %v993, %v1295
        %1297 = vdwg.mxu0
        %1298 = vmatpush.msra.mxu0 0.0
        %1299 = vmatpush.msra.mxu0 0.0
        %1300 = vmatpush.msra.mxu0 0.0
        %1301 = vmatpush.msra.mxu0 0.0
        %1302 = vmatpush.msra.mxu0 0.0
        %1303 = vmatpush.msra.mxu0 0.0
        %1304 = vmatpush.msra.mxu0 0.0
        %1305 = vmatpush.msra.mxu0 0.0
        %1306 = vmatpush.msra.mxu0 0.0
        %1307 = vmatpush.msra.mxu0 0.0
        %1308 = vmatpush.msra.mxu0 0.0
        %1309 = vmatpush.msra.mxu0 0.0
        %1310 = vmatpush.msra.mxu0 %v983
        %1311 = vmatpush.msra.mxu0 %v982
        %1312 = vmatpush.msra.mxu0 %v981
        %1313 = vmatpush.msra.mxu0 %v980
        %1314 = vmatmul.f32.gmra.mxu0 %v354
        %v1315 = vpop.f32.mrf.mxu0
        %v1316 = vadd.f32 %v993, %v1315
        %1317 = vdwg.mxu0
        %vm1318 = vcmask 64512
        %v1320 = vsel %vm1318, %v305, 0
        %v1323 = vsel %vm1318, %v665, 0
        %1325 = vmatpush.xpose.msra.mxu0 0.0
        %1326 = vmatpush.xpose.msra.mxu0 0.0
        %1327 = vmatpush.xpose.msra.mxu0 0.0
        %1328 = vmatpush.xpose.msra.mxu0 0.0
        %1329 = vmatpush.xpose.msra.mxu0 0.0
        %1330 = vmatpush.xpose.msra.mxu0 0.0
        %1331 = vmatpush.xpose.msra.mxu0 0.0
        %1332 = vmatpush.xpose.msra.mxu0 0.0
        %1333 = vmatpush.xpose.msra.mxu0 0.0
        %1334 = vmatpush.xpose.msra.mxu0 0.0
        %1335 = vmatpush.xpose.msra.mxu0 0.0
        %1336 = vmatpush.xpose.msra.mxu0 0.0
        %1337 = vmatpush.xpose.msra.mxu0 0.0
        %1338 = vmatpush.xpose.msra.mxu0 0.0
        %1339 = vmatpush.xpose.msra.mxu0 0.0
        %1340 = vmatpush.xpose.msra.mxu0 %v1323
        %1341 = vmatmul.f32.gmra.mxu0 %v1320
        %v1342 = vpop.f32.mrf.mxu0
        %v1343 = vadd.f32 0.0, %v1342
        %1344 = vdwg.mxu0
        %v1346 = vsel %vm1318, %v328, 0
        %v1349 = vsel %vm1318, %v685, 0
        %1351 = vmatpush.xpose.msra.mxu0 0.0
        %1352 = vmatpush.xpose.msra.mxu0 0.0
        %1353 = vmatpush.xpose.msra.mxu0 0.0
        %1354 = vmatpush.xpose.msra.mxu0 0.0
        %1355 = vmatpush.xpose.msra.mxu0 0.0
        %1356 = vmatpush.xpose.msra.mxu0 0.0
        %1357 = vmatpush.xpose.msra.mxu0 0.0
        %1358 = vmatpush.xpose.msra.mxu0 0.0
        %1359 = vmatpush.xpose.msra.mxu0 0.0
        %1360 = vmatpush.xpose.msra.mxu0 0.0
        %1361 = vmatpush.xpose.msra.mxu0 0.0
        %1362 = vmatpush.xpose.msra.mxu0 0.0
        %1363 = vmatpush.xpose.msra.mxu0 0.0
        %1364 = vmatpush.xpose.msra.mxu0 0.0
        %1365 = vmatpush.xpose.msra.mxu0 0.0
        %1366 = vmatpush.xpose.msra.mxu0 %v1349
        %1367 = vmatmul.f32.gmra.mxu0 %v1346
        %v1368 = vpop.f32.mrf.mxu0
        %v1369 = vadd.f32 0.0, %v1368
        %1370 = vdwg.mxu0
        %v1372 = vsel %vm1318, %v351, 0
        %v1375 = vsel %vm1318, %v705, 0
        %1377 = vmatpush.xpose.msra.mxu0 0.0
        %1378 = vmatpush.xpose.msra.mxu0 0.0
        %1379 = vmatpush.xpose.msra.mxu0 0.0
        %1380 = vmatpush.xpose.msra.mxu0 0.0
        %1381 = vmatpush.xpose.msra.mxu0 0.0
        %1382 = vmatpush.xpose.msra.mxu0 0.0
        %1383 = vmatpush.xpose.msra.mxu0 0.0
        %1384 = vmatpush.xpose.msra.mxu0 0.0
        %1385 = vmatpush.xpose.msra.mxu0 0.0
        %1386 = vmatpush.xpose.msra.mxu0 0.0
        %1387 = vmatpush.xpose.msra.mxu0 0.0
        %1388 = vmatpush.xpose.msra.mxu0 0.0
        %1389 = vmatpush.xpose.msra.mxu0 0.0
        %1390 = vmatpush.xpose.msra.mxu0 0.0
        %1391 = vmatpush.xpose.msra.mxu0 0.0
        %1392 = vmatpush.xpose.msra.mxu0 %v1375
        %1393 = vmatmul.f32.gmra.mxu0 %v1372
        %v1394 = vpop.f32.mrf.mxu0
        %v1395 = vadd.f32 0.0, %v1394
        %1396 = vdwg.mxu0
        %v1398 = vsel %vm1318, %v374, 0
        %v1401 = vsel %vm1318, %v725, 0
        %1403 = vmatpush.xpose.msra.mxu0 0.0
        %1404 = vmatpush.xpose.msra.mxu0 0.0
        %1405 = vmatpush.xpose.msra.mxu0 0.0
        %1406 = vmatpush.xpose.msra.mxu0 0.0
        %1407 = vmatpush.xpose.msra.mxu0 0.0
        %1408 = vmatpush.xpose.msra.mxu0 0.0
        %1409 = vmatpush.xpose.msra.mxu0 0.0
        %1410 = vmatpush.xpose.msra.mxu0 0.0
        %1411 = vmatpush.xpose.msra.mxu0 0.0
        %1412 = vmatpush.xpose.msra.mxu0 0.0
        %1413 = vmatpush.xpose.msra.mxu0 0.0
        %1414 = vmatpush.xpose.msra.mxu0 0.0
        %1415 = vmatpush.xpose.msra.mxu0 0.0
        %1416 = vmatpush.xpose.msra.mxu0 0.0
        %1417 = vmatpush.xpose.msra.mxu0 0.0
        %1418 = vmatpush.xpose.msra.mxu0 %v1401
        %1419 = vmatmul.f32.gmra.mxu0 %v1398
        %v1420 = vpop.f32.mrf.mxu0
        %v1421 = vadd.f32 0.0, %v1420
        %1422 = vdwg.mxu0
        %v1424 = vsel %vm1318, %v394, 0
        %v1427 = vsel %vm1318, %v745, 0
        %1429 = vmatpush.xpose.msra.mxu0 0.0
        %1430 = vmatpush.xpose.msra.mxu0 0.0
        %1431 = vmatpush.xpose.msra.mxu0 0.0
        %1432 = vmatpush.xpose.msra.mxu0 0.0
        %1433 = vmatpush.xpose.msra.mxu0 0.0
        %1434 = vmatpush.xpose.msra.mxu0 0.0
        %1435 = vmatpush.xpose.msra.mxu0 0.0
        %1436 = vmatpush.xpose.msra.mxu0 0.0
        %1437 = vmatpush.xpose.msra.mxu0 0.0
        %1438 = vmatpush.xpose.msra.mxu0 0.0
        %1439 = vmatpush.xpose.msra.mxu0 0.0
        %1440 = vmatpush.xpose.msra.mxu0 0.0
        %1441 = vmatpush.xpose.msra.mxu0 0.0
        %1442 = vmatpush.xpose.msra.mxu0 0.0
        %1443 = vmatpush.xpose.msra.mxu0 0.0
        %1444 = vmatpush.xpose.msra.mxu0 %v1427
        %1445 = vmatmul.f32.gmra.mxu0 %v1424
        %v1446 = vpop.f32.mrf.mxu0
        %v1447 = vadd.f32 0.0, %v1446
        %1448 = vdwg.mxu0
        %v1450 = vsel %vm1318, %v414, 0
        %v1453 = vsel %vm1318, %v765, 0
        %1455 = vmatpush.xpose.msra.mxu0 0.0
        %1456 = vmatpush.xpose.msra.mxu0 0.0
        %1457 = vmatpush.xpose.msra.mxu0 0.0
        %1458 = vmatpush.xpose.msra.mxu0 0.0
        %1459 = vmatpush.xpose.msra.mxu0 0.0
        %1460 = vmatpush.xpose.msra.mxu0 0.0
        %1461 = vmatpush.xpose.msra.mxu0 0.0
        %1462 = vmatpush.xpose.msra.mxu0 0.0
        %1463 = vmatpush.xpose.msra.mxu0 0.0
        %1464 = vmatpush.xpose.msra.mxu0 0.0
        %1465 = vmatpush.xpose.msra.mxu0 0.0
        %1466 = vmatpush.xpose.msra.mxu0 0.0
        %1467 = vmatpush.xpose.msra.mxu0 0.0
        %1468 = vmatpush.xpose.msra.mxu0 0.0
        %1469 = vmatpush.xpose.msra.mxu0 0.0
        %1470 = vmatpush.xpose.msra.mxu0 %v1453
        %1471 = vmatmul.f32.gmra.mxu0 %v1450
        %v1472 = vpop.f32.mrf.mxu0
        %v1473 = vadd.f32 0.0, %v1472
        %1474 = vdwg.mxu0
        %v1476 = vsel %vm1318, %v434, 0
        %v1479 = vsel %vm1318, %v785, 0
        %1481 = vmatpush.xpose.msra.mxu0 0.0
        %1482 = vmatpush.xpose.msra.mxu0 0.0
        %1483 = vmatpush.xpose.msra.mxu0 0.0
        %1484 = vmatpush.xpose.msra.mxu0 0.0
        %1485 = vmatpush.xpose.msra.mxu0 0.0
        %1486 = vmatpush.xpose.msra.mxu0 0.0
        %1487 = vmatpush.xpose.msra.mxu0 0.0
        %1488 = vmatpush.xpose.msra.mxu0 0.0
        %1489 = vmatpush.xpose.msra.mxu0 0.0
        %1490 = vmatpush.xpose.msra.mxu0 0.0
        %1491 = vmatpush.xpose.msra.mxu0 0.0
        %1492 = vmatpush.xpose.msra.mxu0 0.0
        %1493 = vmatpush.xpose.msra.mxu0 0.0
        %1494 = vmatpush.xpose.msra.mxu0 0.0
        %1495 = vmatpush.xpose.msra.mxu0 0.0
        %1496 = vmatpush.xpose.msra.mxu0 %v1479
        %1497 = vmatmul.f32.gmra.mxu0 %v1476
        %v1498 = vpop.f32.mrf.mxu0
        %v1499 = vadd.f32 0.0, %v1498
        %1500 = vdwg.mxu0
        %v1502 = vsel %vm1318, %v454, 0
        %v1505 = vsel %vm1318, %v805, 0
        %1507 = vmatpush.xpose.msra.mxu0 0.0
        %1508 = vmatpush.xpose.msra.mxu0 0.0
        %1509 = vmatpush.xpose.msra.mxu0 0.0
        %1510 = vmatpush.xpose.msra.mxu0 0.0
        %1511 = vmatpush.xpose.msra.mxu0 0.0
        %1512 = vmatpush.xpose.msra.mxu0 0.0
        %1513 = vmatpush.xpose.msra.mxu0 0.0
        %1514 = vmatpush.xpose.msra.mxu0 0.0
        %1515 = vmatpush.xpose.msra.mxu0 0.0
        %1516 = vmatpush.xpose.msra.mxu0 0.0
        %1517 = vmatpush.xpose.msra.mxu0 0.0
        %1518 = vmatpush.xpose.msra.mxu0 0.0
        %1519 = vmatpush.xpose.msra.mxu0 0.0
        %1520 = vmatpush.xpose.msra.mxu0 0.0
        %1521 = vmatpush.xpose.msra.mxu0 0.0
        %1522 = vmatpush.xpose.msra.mxu0 %v1505
        %1523 = vmatmul.f32.gmra.mxu0 %v1502
        %v1524 = vpop.f32.mrf.mxu0
        %v1525 = vadd.f32 0.0, %v1524
        %1526 = vdwg.mxu0
        %v1528 = vsel %vm1318, %v474, 0
        %v1531 = vsel %vm1318, %v825, 0
        %1533 = vmatpush.xpose.msra.mxu0 0.0
        %1534 = vmatpush.xpose.msra.mxu0 0.0
        %1535 = vmatpush.xpose.msra.mxu0 0.0
        %1536 = vmatpush.xpose.msra.mxu0 0.0
        %1537 = vmatpush.xpose.msra.mxu0 0.0
        %1538 = vmatpush.xpose.msra.mxu0 0.0
        %1539 = vmatpush.xpose.msra.mxu0 0.0
        %1540 = vmatpush.xpose.msra.mxu0 0.0
        %1541 = vmatpush.xpose.msra.mxu0 0.0
        %1542 = vmatpush.xpose.msra.mxu0 0.0
        %1543 = vmatpush.xpose.msra.mxu0 0.0
        %1544 = vmatpush.xpose.msra.mxu0 0.0
        %1545 = vmatpush.xpose.msra.mxu0 0.0
        %1546 = vmatpush.xpose.msra.mxu0 0.0
        %1547 = vmatpush.xpose.msra.mxu0 0.0
        %1548 = vmatpush.xpose.msra.mxu0 %v1531
        %1549 = vmatmul.f32.gmra.mxu0 %v1528
        %v1550 = vpop.f32.mrf.mxu0
        %v1551 = vadd.f32 0.0, %v1550
        %1552 = vdwg.mxu0
        %v1554 = vsel %vm1318, %v494, 0
        %v1557 = vsel %vm1318, %v845, 0
        %1559 = vmatpush.xpose.msra.mxu0 0.0
        %1560 = vmatpush.xpose.msra.mxu0 0.0
        %1561 = vmatpush.xpose.msra.mxu0 0.0
        %1562 = vmatpush.xpose.msra.mxu0 0.0
        %1563 = vmatpush.xpose.msra.mxu0 0.0
        %1564 = vmatpush.xpose.msra.mxu0 0.0
        %1565 = vmatpush.xpose.msra.mxu0 0.0
        %1566 = vmatpush.xpose.msra.mxu0 0.0
        %1567 = vmatpush.xpose.msra.mxu0 0.0
        %1568 = vmatpush.xpose.msra.mxu0 0.0
        %1569 = vmatpush.xpose.msra.mxu0 0.0
        %1570 = vmatpush.xpose.msra.mxu0 0.0
        %1571 = vmatpush.xpose.msra.mxu0 0.0
        %1572 = vmatpush.xpose.msra.mxu0 0.0
        %1573 = vmatpush.xpose.msra.mxu0 0.0
        %1574 = vmatpush.xpose.msra.mxu0 %v1557
        %1575 = vmatmul.f32.gmra.mxu0 %v1554
        %v1576 = vpop.f32.mrf.mxu0
        %v1577 = vadd.f32 0.0, %v1576
        %1578 = vdwg.mxu0
        %v1580 = vsel %vm1318, %v514, 0
        %v1583 = vsel %vm1318, %v865, 0
        %1585 = vmatpush.xpose.msra.mxu0 0.0
        %1586 = vmatpush.xpose.msra.mxu0 0.0
        %1587 = vmatpush.xpose.msra.mxu0 0.0
        %1588 = vmatpush.xpose.msra.mxu0 0.0
        %1589 = vmatpush.xpose.msra.mxu0 0.0
        %1590 = vmatpush.xpose.msra.mxu0 0.0
        %1591 = vmatpush.xpose.msra.mxu0 0.0
        %1592 = vmatpush.xpose.msra.mxu0 0.0
        %1593 = vmatpush.xpose.msra.mxu0 0.0
        %1594 = vmatpush.xpose.msra.mxu0 0.0
        %1595 = vmatpush.xpose.msra.mxu0 0.0
        %1596 = vmatpush.xpose.msra.mxu0 0.0
        %1597 = vmatpush.xpose.msra.mxu0 0.0
        %1598 = vmatpush.xpose.msra.mxu0 0.0
        %1599 = vmatpush.xpose.msra.mxu0 0.0
        %1600 = vmatpush.xpose.msra.mxu0 %v1583
        %1601 = vmatmul.f32.gmra.mxu0 %v1580
        %v1602 = vpop.f32.mrf.mxu0
        %v1603 = vadd.f32 0.0, %v1602
        %1604 = vdwg.mxu0
        %v1606 = vsel %vm1318, %v534, 0
        %v1609 = vsel %vm1318, %v885, 0
        %1611 = vmatpush.xpose.msra.mxu0 0.0
        %1612 = vmatpush.xpose.msra.mxu0 0.0
        %1613 = vmatpush.xpose.msra.mxu0 0.0
        %1614 = vmatpush.xpose.msra.mxu0 0.0
        %1615 = vmatpush.xpose.msra.mxu0 0.0
        %1616 = vmatpush.xpose.msra.mxu0 0.0
        %1617 = vmatpush.xpose.msra.mxu0 0.0
        %1618 = vmatpush.xpose.msra.mxu0 0.0
        %1619 = vmatpush.xpose.msra.mxu0 0.0
        %1620 = vmatpush.xpose.msra.mxu0 0.0
        %1621 = vmatpush.xpose.msra.mxu0 0.0
        %1622 = vmatpush.xpose.msra.mxu0 0.0
        %1623 = vmatpush.xpose.msra.mxu0 0.0
        %1624 = vmatpush.xpose.msra.mxu0 0.0
        %1625 = vmatpush.xpose.msra.mxu0 0.0
        %1626 = vmatpush.xpose.msra.mxu0 %v1609
        %1627 = vmatmul.f32.gmra.mxu0 %v1606
        %v1628 = vpop.f32.mrf.mxu0
        %v1629 = vadd.f32 0.0, %v1628
        %1630 = vdwg.mxu0
        %v1632 = vsel %vm1318, %v554, 0
        %v1635 = vsel %vm1318, %v905, 0
        %1637 = vmatpush.xpose.msra.mxu0 0.0
        %1638 = vmatpush.xpose.msra.mxu0 0.0
        %1639 = vmatpush.xpose.msra.mxu0 0.0
        %1640 = vmatpush.xpose.msra.mxu0 0.0
        %1641 = vmatpush.xpose.msra.mxu0 0.0
        %1642 = vmatpush.xpose.msra.mxu0 0.0
        %1643 = vmatpush.xpose.msra.mxu0 0.0
        %1644 = vmatpush.xpose.msra.mxu0 0.0
        %1645 = vmatpush.xpose.msra.mxu0 0.0
        %1646 = vmatpush.xpose.msra.mxu0 0.0
        %1647 = vmatpush.xpose.msra.mxu0 0.0
        %1648 = vmatpush.xpose.msra.mxu0 0.0
        %1649 = vmatpush.xpose.msra.mxu0 0.0
        %1650 = vmatpush.xpose.msra.mxu0 0.0
        %1651 = vmatpush.xpose.msra.mxu0 0.0
        %1652 = vmatpush.xpose.msra.mxu0 %v1635
        %1653 = vmatmul.f32.gmra.mxu0 %v1632
        %v1654 = vpop.f32.mrf.mxu0
        %v1655 = vadd.f32 0.0, %v1654
        %1656 = vdwg.mxu0
        %v1658 = vsel %vm1318, %v574, 0
        %v1661 = vsel %vm1318, %v925, 0
        %1663 = vmatpush.xpose.msra.mxu0 0.0
        %1664 = vmatpush.xpose.msra.mxu0 0.0
        %1665 = vmatpush.xpose.msra.mxu0 0.0
        %1666 = vmatpush.xpose.msra.mxu0 0.0
        %1667 = vmatpush.xpose.msra.mxu0 0.0
        %1668 = vmatpush.xpose.msra.mxu0 0.0
        %1669 = vmatpush.xpose.msra.mxu0 0.0
        %1670 = vmatpush.xpose.msra.mxu0 0.0
        %1671 = vmatpush.xpose.msra.mxu0 0.0
        %1672 = vmatpush.xpose.msra.mxu0 0.0
        %1673 = vmatpush.xpose.msra.mxu0 0.0
        %1674 = vmatpush.xpose.msra.mxu0 0.0
        %1675 = vmatpush.xpose.msra.mxu0 0.0
        %1676 = vmatpush.xpose.msra.mxu0 0.0
        %1677 = vmatpush.xpose.msra.mxu0 0.0
        %1678 = vmatpush.xpose.msra.mxu0 %v1661
        %1679 = vmatmul.f32.gmra.mxu0 %v1658
        %v1680 = vpop.f32.mrf.mxu0
        %v1681 = vadd.f32 0.0, %v1680
        %1682 = vdwg.mxu0
        %v1684 = vsel %vm1318, %v594, 0
        %v1687 = vsel %vm1318, %v945, 0
        %1689 = vmatpush.xpose.msra.mxu0 0.0
        %1690 = vmatpush.xpose.msra.mxu0 0.0
        %1691 = vmatpush.xpose.msra.mxu0 0.0
        %1692 = vmatpush.xpose.msra.mxu0 0.0
        %1693 = vmatpush.xpose.msra.mxu0 0.0
        %1694 = vmatpush.xpose.msra.mxu0 0.0
        %1695 = vmatpush.xpose.msra.mxu0 0.0
        %1696 = vmatpush.xpose.msra.mxu0 0.0
        %1697 = vmatpush.xpose.msra.mxu0 0.0
        %1698 = vmatpush.xpose.msra.mxu0 0.0
        %1699 = vmatpush.xpose.msra.mxu0 0.0
        %1700 = vmatpush.xpose.msra.mxu0 0.0
        %1701 = vmatpush.xpose.msra.mxu0 0.0
        %1702 = vmatpush.xpose.msra.mxu0 0.0
        %1703 = vmatpush.xpose.msra.mxu0 0.0
        %1704 = vmatpush.xpose.msra.mxu0 %v1687
        %1705 = vmatmul.f32.gmra.mxu0 %v1684
        %v1706 = vpop.f32.mrf.mxu0
        %v1707 = vadd.f32 0.0, %v1706
        %1708 = vdwg.mxu0
        %v1710 = vsel %vm1318, %v614, 0
        %v1713 = vsel %vm1318, %v965, 0
        %1715 = vmatpush.xpose.msra.mxu0 0.0
        %1716 = vmatpush.xpose.msra.mxu0 0.0
        %1717 = vmatpush.xpose.msra.mxu0 0.0
        %1718 = vmatpush.xpose.msra.mxu0 0.0
        %1719 = vmatpush.xpose.msra.mxu0 0.0
        %1720 = vmatpush.xpose.msra.mxu0 0.0
        %1721 = vmatpush.xpose.msra.mxu0 0.0
        %1722 = vmatpush.xpose.msra.mxu0 0.0
        %1723 = vmatpush.xpose.msra.mxu0 0.0
        %1724 = vmatpush.xpose.msra.mxu0 0.0
        %1725 = vmatpush.xpose.msra.mxu0 0.0
        %1726 = vmatpush.xpose.msra.mxu0 0.0
        %1727 = vmatpush.xpose.msra.mxu0 0.0
        %1728 = vmatpush.xpose.msra.mxu0 0.0
        %1729 = vmatpush.xpose.msra.mxu0 0.0
        %1730 = vmatpush.xpose.msra.mxu0 %v1713
        %1731 = vmatmul.f32.gmra.mxu0 %v1710
        %v1732 = vpop.f32.mrf.mxu0
        %v1733 = vadd.f32 0.0, %v1732
        %1734 = vdwg.mxu0
        %v1735 = vsel %vm1318, %v1343, -inf
        %1736 = vmax.xlane.f32.xlu0 %v1735
        %v1737 = vpop.xlane.xlu0 %1736
        %v1738 = vsel %vm1318, %v1369, -inf
        %1739 = vmax.xlane.f32.xlu0 %v1738
        %v1740 = vpop.xlane.xlu0 %1739
        %v1741 = vsel %vm1318, %v1395, -inf
        %1742 = vmax.xlane.f32.xlu0 %v1741
        %v1743 = vpop.xlane.xlu0 %1742
        %v1744 = vsel %vm1318, %v1421, -inf
        %1745 = vmax.xlane.f32.xlu0 %v1744
        %v1746 = vpop.xlane.xlu0 %1745
        %v1747 = vsel %vm1318, %v1447, -inf
        %1748 = vmax.xlane.f32.xlu0 %v1747
        %v1749 = vpop.xlane.xlu0 %1748
        %v1750 = vsel %vm1318, %v1473, -inf
        %1751 = vmax.xlane.f32.xlu0 %v1750
        %v1752 = vpop.xlane.xlu0 %1751
        %v1753 = vsel %vm1318, %v1499, -inf
        %1754 = vmax.xlane.f32.xlu0 %v1753
        %v1755 = vpop.xlane.xlu0 %1754
        %v1756 = vsel %vm1318, %v1525, -inf
        %1757 = vmax.xlane.f32.xlu0 %v1756
        %v1758 = vpop.xlane.xlu0 %1757
        %v1759 = vsel %vm1318, %v1551, -inf
        %1760 = vmax.xlane.f32.xlu0 %v1759
        %v1761 = vpop.xlane.xlu0 %1760
        %v1762 = vsel %vm1318, %v1577, -inf
        %1763 = vmax.xlane.f32.xlu0 %v1762
        %v1764 = vpop.xlane.xlu0 %1763
        %v1765 = vsel %vm1318, %v1603, -inf
        %1766 = vmax.xlane.f32.xlu0 %v1765
        %v1767 = vpop.xlane.xlu0 %1766
        %v1768 = vsel %vm1318, %v1629, -inf
        %1769 = vmax.xlane.f32.xlu0 %v1768
        %v1770 = vpop.xlane.xlu0 %1769
        %v1771 = vsel %vm1318, %v1655, -inf
        %1772 = vmax.xlane.f32.xlu0 %v1771
        %v1773 = vpop.xlane.xlu0 %1772
        %v1774 = vsel %vm1318, %v1681, -inf
        %1775 = vmax.xlane.f32.xlu0 %v1774
        %v1776 = vpop.xlane.xlu0 %1775
        %v1777 = vsel %vm1318, %v1707, -inf
        %1778 = vmax.xlane.f32.xlu0 %v1777
        %v1779 = vpop.xlane.xlu0 %1778
        %v1780 = vsel %vm1318, %v1733, -inf
        %1781 = vmax.xlane.f32.xlu0 %v1780
        %v1782 = vpop.xlane.xlu0 %1781
        %v1783 = vsub.f32 %v1343, %v1737
        %v1784 = vsub.f32 %v1369, %v1740
        %v1785 = vsub.f32 %v1395, %v1743
        %v1786 = vsub.f32 %v1421, %v1746
        %v1787 = vsub.f32 %v1447, %v1749
        %v1788 = vsub.f32 %v1473, %v1752
        %v1789 = vsub.f32 %v1499, %v1755
        %v1790 = vsub.f32 %v1525, %v1758
        %v1791 = vsub.f32 %v1551, %v1761
        %v1792 = vsub.f32 %v1577, %v1764
        %v1793 = vsub.f32 %v1603, %v1767
        %v1794 = vsub.f32 %v1629, %v1770
        %v1795 = vsub.f32 %v1655, %v1773
        %v1796 = vsub.f32 %v1681, %v1776
        %v1797 = vsub.f32 %v1707, %v1779
        %v1798 = vsub.f32 %v1733, %v1782
        %v1799 = vmul.f32 %v1783, 1.442695
        %v1800 = vpow.pop %v1799
        %v1801 = vmul.f32 %v1784, 1.442695
        %v1802 = vpow.pop %v1801
        %v1803 = vmul.f32 %v1785, 1.442695
        %v1804 = vpow.pop %v1803
        %v1805 = vmul.f32 %v1786, 1.442695
        %v1806 = vpow.pop %v1805
        %v1807 = vmul.f32 %v1787, 1.442695
        %v1808 = vpow.pop %v1807
        %v1809 = vmul.f32 %v1788, 1.442695
        %v1810 = vpow.pop %v1809
        %v1811 = vmul.f32 %v1789, 1.442695
        %v1812 = vpow.pop %v1811
        %v1813 = vmul.f32 %v1790, 1.442695
        %v1814 = vpow.pop %v1813
        %v1815 = vmul.f32 %v1791, 1.442695
        %v1816 = vpow.pop %v1815
        %v1817 = vmul.f32 %v1792, 1.442695
        %v1818 = vpow.pop %v1817
        %v1819 = vmul.f32 %v1793, 1.442695
        %v1820 = vpow.pop %v1819
        %v1821 = vmul.f32 %v1794, 1.442695
        %v1822 = vpow.pop %v1821
        %v1823 = vmul.f32 %v1795, 1.442695
        %v1824 = vpow.pop %v1823
        %v1825 = vmul.f32 %v1796, 1.442695
        %v1826 = vpow.pop %v1825
        %v1827 = vmul.f32 %v1797, 1.442695
        %v1828 = vpow.pop %v1827
        %v1829 = vmul.f32 %v1798, 1.442695
        %v1830 = vpow.pop %v1829
        %v1831 = vsel %vm1318, %v1800, 0.0
        %1832 = vadd.xlane.f32.xlu0 %v1831
        %v1833 = vpop.xlane.xlu0 %1832
        %v1834 = vsel %vm1318, %v1802, 0.0
        %1835 = vadd.xlane.f32.xlu0 %v1834
        %v1836 = vpop.xlane.xlu0 %1835
        %v1837 = vsel %vm1318, %v1804, 0.0
        %1838 = vadd.xlane.f32.xlu0 %v1837
        %v1839 = vpop.xlane.xlu0 %1838
        %v1840 = vsel %vm1318, %v1806, 0.0
        %1841 = vadd.xlane.f32.xlu0 %v1840
        %v1842 = vpop.xlane.xlu0 %1841
        %v1843 = vsel %vm1318, %v1808, 0.0
        %1844 = vadd.xlane.f32.xlu0 %v1843
        %v1845 = vpop.xlane.xlu0 %1844
        %v1846 = vsel %vm1318, %v1810, 0.0
        %1847 = vadd.xlane.f32.xlu0 %v1846
        %v1848 = vpop.xlane.xlu0 %1847
        %v1849 = vsel %vm1318, %v1812, 0.0
        %1850 = vadd.xlane.f32.xlu0 %v1849
        %v1851 = vpop.xlane.xlu0 %1850
        %v1852 = vsel %vm1318, %v1814, 0.0
        %1853 = vadd.xlane.f32.xlu0 %v1852
        %v1854 = vpop.xlane.xlu0 %1853
        %v1855 = vsel %vm1318, %v1816, 0.0
        %1856 = vadd.xlane.f32.xlu0 %v1855
        %v1857 = vpop.xlane.xlu0 %1856
        %v1858 = vsel %vm1318, %v1818, 0.0
        %1859 = vadd.xlane.f32.xlu0 %v1858
        %v1860 = vpop.xlane.xlu0 %1859
        %v1861 = vsel %vm1318, %v1820, 0.0
        %1862 = vadd.xlane.f32.xlu0 %v1861
        %v1863 = vpop.xlane.xlu0 %1862
        %v1864 = vsel %vm1318, %v1822, 0.0
        %1865 = vadd.xlane.f32.xlu0 %v1864
        %v1866 = vpop.xlane.xlu0 %1865
        %v1867 = vsel %vm1318, %v1824, 0.0
        %1868 = vadd.xlane.f32.xlu0 %v1867
        %v1869 = vpop.xlane.xlu0 %1868
        %v1870 = vsel %vm1318, %v1826, 0.0
        %1871 = vadd.xlane.f32.xlu0 %v1870
        %v1872 = vpop.xlane.xlu0 %1871
        %v1873 = vsel %vm1318, %v1828, 0.0
        %1874 = vadd.xlane.f32.xlu0 %v1873
        %v1875 = vpop.xlane.xlu0 %1874
        %v1876 = vsel %vm1318, %v1830, 0.0
        %1877 = vadd.xlane.f32.xlu0 %v1876
        %v1878 = vpop.xlane.xlu0 %1877
        %v1879 = vrcp.pop %v1833
        %v1880 = vrcp.pop %v1836
        %v1881 = vrcp.pop %v1839
        %v1882 = vrcp.pop %v1842
        %v1883 = vrcp.pop %v1845
        %v1884 = vrcp.pop %v1848
        %v1885 = vrcp.pop %v1851
        %v1886 = vrcp.pop %v1854
        %v1887 = vrcp.pop %v1857
        %v1888 = vrcp.pop %v1860
        %v1889 = vrcp.pop %v1863
        %v1890 = vrcp.pop %v1866
        %v1891 = vrcp.pop %v1869
        %v1892 = vrcp.pop %v1872
        %v1893 = vrcp.pop %v1875
        %v1894 = vrcp.pop %v1878
        %v1895 = vmul.f32 %v1800, %v1879
        %v1896 = vmul.f32 %v1802, %v1880
        %v1897 = vmul.f32 %v1804, %v1881
        %v1898 = vmul.f32 %v1806, %v1882
        %v1899 = vmul.f32 %v1808, %v1883
        %v1900 = vmul.f32 %v1810, %v1884
        %v1901 = vmul.f32 %v1812, %v1885
        %v1902 = vmul.f32 %v1814, %v1886
        %v1903 = vmul.f32 %v1816, %v1887
        %v1904 = vmul.f32 %v1818, %v1888
        %v1905 = vmul.f32 %v1820, %v1889
        %v1906 = vmul.f32 %v1822, %v1890
        %v1907 = vmul.f32 %v1824, %v1891
        %v1908 = vmul.f32 %v1826, %v1892
        %v1909 = vmul.f32 %v1828, %v1893
        %v1910 = vmul.f32 %v1830, %v1894
        %v1912 = vsel %vm1318, %v1895, 0
        %1914 = vmatpush.msra.mxu0 0.0
        %1915 = vmatpush.msra.mxu0 0.0
        %1916 = vmatpush.msra.mxu0 0.0
        %1917 = vmatpush.msra.mxu0 0.0
        %1918 = vmatpush.msra.mxu0 0.0
        %1919 = vmatpush.msra.mxu0 0.0
        %1920 = vmatpush.msra.mxu0 0.0
        %1921 = vmatpush.msra.mxu0 0.0
        %1922 = vmatpush.msra.mxu0 0.0
        %1923 = vmatpush.msra.mxu0 0.0
        %1924 = vmatpush.msra.mxu0 0.0
        %1925 = vmatpush.msra.mxu0 0.0
        %1926 = vmatpush.msra.mxu0 0.0
        %1927 = vmatpush.msra.mxu0 0.0
        %1928 = vmatpush.msra.mxu0 0.0
        %1929 = vmatpush.msra.mxu0 %v1016
        %1930 = vmatmul.f32.gmra.mxu0 %v1912
        %v1931 = vpop.f32.mrf.mxu0
        %v1932 = vadd.f32 0.0, %v1931
        %1933 = vdwg.mxu0
        %v1935 = vsel %vm1318, %v1896, 0
        %1937 = vmatpush.msra.mxu0 0.0
        %1938 = vmatpush.msra.mxu0 0.0
        %1939 = vmatpush.msra.mxu0 0.0
        %1940 = vmatpush.msra.mxu0 0.0
        %1941 = vmatpush.msra.mxu0 0.0
        %1942 = vmatpush.msra.mxu0 0.0
        %1943 = vmatpush.msra.mxu0 0.0
        %1944 = vmatpush.msra.mxu0 0.0
        %1945 = vmatpush.msra.mxu0 0.0
        %1946 = vmatpush.msra.mxu0 0.0
        %1947 = vmatpush.msra.mxu0 0.0
        %1948 = vmatpush.msra.mxu0 0.0
        %1949 = vmatpush.msra.mxu0 0.0
        %1950 = vmatpush.msra.mxu0 0.0
        %1951 = vmatpush.msra.mxu0 0.0
        %1952 = vmatpush.msra.mxu0 %v1036
        %1953 = vmatmul.f32.gmra.mxu0 %v1935
        %v1954 = vpop.f32.mrf.mxu0
        %v1955 = vadd.f32 0.0, %v1954
        %1956 = vdwg.mxu0
        %v1958 = vsel %vm1318, %v1897, 0
        %1960 = vmatpush.msra.mxu0 0.0
        %1961 = vmatpush.msra.mxu0 0.0
        %1962 = vmatpush.msra.mxu0 0.0
        %1963 = vmatpush.msra.mxu0 0.0
        %1964 = vmatpush.msra.mxu0 0.0
        %1965 = vmatpush.msra.mxu0 0.0
        %1966 = vmatpush.msra.mxu0 0.0
        %1967 = vmatpush.msra.mxu0 0.0
        %1968 = vmatpush.msra.mxu0 0.0
        %1969 = vmatpush.msra.mxu0 0.0
        %1970 = vmatpush.msra.mxu0 0.0
        %1971 = vmatpush.msra.mxu0 0.0
        %1972 = vmatpush.msra.mxu0 0.0
        %1973 = vmatpush.msra.mxu0 0.0
        %1974 = vmatpush.msra.mxu0 0.0
        %1975 = vmatpush.msra.mxu0 %v1056
        %1976 = vmatmul.f32.gmra.mxu0 %v1958
        %v1977 = vpop.f32.mrf.mxu0
        %v1978 = vadd.f32 0.0, %v1977
        %1979 = vdwg.mxu0
        %v1981 = vsel %vm1318, %v1898, 0
        %1983 = vmatpush.msra.mxu0 0.0
        %1984 = vmatpush.msra.mxu0 0.0
        %1985 = vmatpush.msra.mxu0 0.0
        %1986 = vmatpush.msra.mxu0 0.0
        %1987 = vmatpush.msra.mxu0 0.0
        %1988 = vmatpush.msra.mxu0 0.0
        %1989 = vmatpush.msra.mxu0 0.0
        %1990 = vmatpush.msra.mxu0 0.0
        %1991 = vmatpush.msra.mxu0 0.0
        %1992 = vmatpush.msra.mxu0 0.0
        %1993 = vmatpush.msra.mxu0 0.0
        %1994 = vmatpush.msra.mxu0 0.0
        %1995 = vmatpush.msra.mxu0 0.0
        %1996 = vmatpush.msra.mxu0 0.0
        %1997 = vmatpush.msra.mxu0 0.0
        %1998 = vmatpush.msra.mxu0 %v1076
        %1999 = vmatmul.f32.gmra.mxu0 %v1981
        %v2000 = vpop.f32.mrf.mxu0
        %v2001 = vadd.f32 0.0, %v2000
        %2002 = vdwg.mxu0
        %v2004 = vsel %vm1318, %v1899, 0
        %2006 = vmatpush.msra.mxu0 0.0
        %2007 = vmatpush.msra.mxu0 0.0
        %2008 = vmatpush.msra.mxu0 0.0
        %2009 = vmatpush.msra.mxu0 0.0
        %2010 = vmatpush.msra.mxu0 0.0
        %2011 = vmatpush.msra.mxu0 0.0
        %2012 = vmatpush.msra.mxu0 0.0
        %2013 = vmatpush.msra.mxu0 0.0
        %2014 = vmatpush.msra.mxu0 0.0
        %2015 = vmatpush.msra.mxu0 0.0
        %2016 = vmatpush.msra.mxu0 0.0
        %2017 = vmatpush.msra.mxu0 0.0
        %2018 = vmatpush.msra.mxu0 0.0
        %2019 = vmatpush.msra.mxu0 0.0
        %2020 = vmatpush.msra.mxu0 0.0
        %2021 = vmatpush.msra.mxu0 %v1096
        %2022 = vmatmul.f32.gmra.mxu0 %v2004
        %v2023 = vpop.f32.mrf.mxu0
        %v2024 = vadd.f32 0.0, %v2023
        %2025 = vdwg.mxu0
        %v2027 = vsel %vm1318, %v1900, 0
        %2029 = vmatpush.msra.mxu0 0.0
        %2030 = vmatpush.msra.mxu0 0.0
        %2031 = vmatpush.msra.mxu0 0.0
        %2032 = vmatpush.msra.mxu0 0.0
        %2033 = vmatpush.msra.mxu0 0.0
        %2034 = vmatpush.msra.mxu0 0.0
        %2035 = vmatpush.msra.mxu0 0.0
        %2036 = vmatpush.msra.mxu0 0.0
        %2037 = vmatpush.msra.mxu0 0.0
        %2038 = vmatpush.msra.mxu0 0.0
        %2039 = vmatpush.msra.mxu0 0.0
        %2040 = vmatpush.msra.mxu0 0.0
        %2041 = vmatpush.msra.mxu0 0.0
        %2042 = vmatpush.msra.mxu0 0.0
        %2043 = vmatpush.msra.mxu0 0.0
        %2044 = vmatpush.msra.mxu0 %v1116
        %2045 = vmatmul.f32.gmra.mxu0 %v2027
        %v2046 = vpop.f32.mrf.mxu0
        %v2047 = vadd.f32 0.0, %v2046
        %2048 = vdwg.mxu0
        %v2050 = vsel %vm1318, %v1901, 0
        %2052 = vmatpush.msra.mxu0 0.0
        %2053 = vmatpush.msra.mxu0 0.0
        %2054 = vmatpush.msra.mxu0 0.0
        %2055 = vmatpush.msra.mxu0 0.0
        %2056 = vmatpush.msra.mxu0 0.0
        %2057 = vmatpush.msra.mxu0 0.0
        %2058 = vmatpush.msra.mxu0 0.0
        %2059 = vmatpush.msra.mxu0 0.0
        %2060 = vmatpush.msra.mxu0 0.0
        %2061 = vmatpush.msra.mxu0 0.0
        %2062 = vmatpush.msra.mxu0 0.0
        %2063 = vmatpush.msra.mxu0 0.0
        %2064 = vmatpush.msra.mxu0 0.0
        %2065 = vmatpush.msra.mxu0 0.0
        %2066 = vmatpush.msra.mxu0 0.0
        %2067 = vmatpush.msra.mxu0 %v1136
        %2068 = vmatmul.f32.gmra.mxu0 %v2050
        %v2069 = vpop.f32.mrf.mxu0
        %v2070 = vadd.f32 0.0, %v2069
        %2071 = vdwg.mxu0
        %v2073 = vsel %vm1318, %v1902, 0
        %2075 = vmatpush.msra.mxu0 0.0
        %2076 = vmatpush.msra.mxu0 0.0
        %2077 = vmatpush.msra.mxu0 0.0
        %2078 = vmatpush.msra.mxu0 0.0
        %2079 = vmatpush.msra.mxu0 0.0
        %2080 = vmatpush.msra.mxu0 0.0
        %2081 = vmatpush.msra.mxu0 0.0
        %2082 = vmatpush.msra.mxu0 0.0
        %2083 = vmatpush.msra.mxu0 0.0
        %2084 = vmatpush.msra.mxu0 0.0
        %2085 = vmatpush.msra.mxu0 0.0
        %2086 = vmatpush.msra.mxu0 0.0
        %2087 = vmatpush.msra.mxu0 0.0
        %2088 = vmatpush.msra.mxu0 0.0
        %2089 = vmatpush.msra.mxu0 0.0
        %2090 = vmatpush.msra.mxu0 %v1156
        %2091 = vmatmul.f32.gmra.mxu0 %v2073
        %v2092 = vpop.f32.mrf.mxu0
        %v2093 = vadd.f32 0.0, %v2092
        %2094 = vdwg.mxu0
        %v2096 = vsel %vm1318, %v1903, 0
        %2098 = vmatpush.msra.mxu0 0.0
        %2099 = vmatpush.msra.mxu0 0.0
        %2100 = vmatpush.msra.mxu0 0.0
        %2101 = vmatpush.msra.mxu0 0.0
        %2102 = vmatpush.msra.mxu0 0.0
        %2103 = vmatpush.msra.mxu0 0.0
        %2104 = vmatpush.msra.mxu0 0.0
        %2105 = vmatpush.msra.mxu0 0.0
        %2106 = vmatpush.msra.mxu0 0.0
        %2107 = vmatpush.msra.mxu0 0.0
        %2108 = vmatpush.msra.mxu0 0.0
        %2109 = vmatpush.msra.mxu0 0.0
        %2110 = vmatpush.msra.mxu0 0.0
        %2111 = vmatpush.msra.mxu0 0.0
        %2112 = vmatpush.msra.mxu0 0.0
        %2113 = vmatpush.msra.mxu0 %v1176
        %2114 = vmatmul.f32.gmra.mxu0 %v2096
        %v2115 = vpop.f32.mrf.mxu0
        %v2116 = vadd.f32 0.0, %v2115
        %2117 = vdwg.mxu0
        %v2119 = vsel %vm1318, %v1904, 0
        %2121 = vmatpush.msra.mxu0 0.0
        %2122 = vmatpush.msra.mxu0 0.0
        %2123 = vmatpush.msra.mxu0 0.0
        %2124 = vmatpush.msra.mxu0 0.0
        %2125 = vmatpush.msra.mxu0 0.0
        %2126 = vmatpush.msra.mxu0 0.0
        %2127 = vmatpush.msra.mxu0 0.0
        %2128 = vmatpush.msra.mxu0 0.0
        %2129 = vmatpush.msra.mxu0 0.0
        %2130 = vmatpush.msra.mxu0 0.0
        %2131 = vmatpush.msra.mxu0 0.0
        %2132 = vmatpush.msra.mxu0 0.0
        %2133 = vmatpush.msra.mxu0 0.0
        %2134 = vmatpush.msra.mxu0 0.0
        %2135 = vmatpush.msra.mxu0 0.0
        %2136 = vmatpush.msra.mxu0 %v1196
        %2137 = vmatmul.f32.gmra.mxu0 %v2119
        %v2138 = vpop.f32.mrf.mxu0
        %v2139 = vadd.f32 0.0, %v2138
        %2140 = vdwg.mxu0
        %v2142 = vsel %vm1318, %v1905, 0
        %2144 = vmatpush.msra.mxu0 0.0
        %2145 = vmatpush.msra.mxu0 0.0
        %2146 = vmatpush.msra.mxu0 0.0
        %2147 = vmatpush.msra.mxu0 0.0
        %2148 = vmatpush.msra.mxu0 0.0
        %2149 = vmatpush.msra.mxu0 0.0
        %2150 = vmatpush.msra.mxu0 0.0
        %2151 = vmatpush.msra.mxu0 0.0
        %2152 = vmatpush.msra.mxu0 0.0
        %2153 = vmatpush.msra.mxu0 0.0
        %2154 = vmatpush.msra.mxu0 0.0
        %2155 = vmatpush.msra.mxu0 0.0
        %2156 = vmatpush.msra.mxu0 0.0
        %2157 = vmatpush.msra.mxu0 0.0
        %2158 = vmatpush.msra.mxu0 0.0
        %2159 = vmatpush.msra.mxu0 %v1216
        %2160 = vmatmul.f32.gmra.mxu0 %v2142
        %v2161 = vpop.f32.mrf.mxu0
        %v2162 = vadd.f32 0.0, %v2161
        %2163 = vdwg.mxu0
        %v2165 = vsel %vm1318, %v1906, 0
        %2167 = vmatpush.msra.mxu0 0.0
        %2168 = vmatpush.msra.mxu0 0.0
        %2169 = vmatpush.msra.mxu0 0.0
        %2170 = vmatpush.msra.mxu0 0.0
        %2171 = vmatpush.msra.mxu0 0.0
        %2172 = vmatpush.msra.mxu0 0.0
        %2173 = vmatpush.msra.mxu0 0.0
        %2174 = vmatpush.msra.mxu0 0.0
        %2175 = vmatpush.msra.mxu0 0.0
        %2176 = vmatpush.msra.mxu0 0.0
        %2177 = vmatpush.msra.mxu0 0.0
        %2178 = vmatpush.msra.mxu0 0.0
        %2179 = vmatpush.msra.mxu0 0.0
        %2180 = vmatpush.msra.mxu0 0.0
        %2181 = vmatpush.msra.mxu0 0.0
        %2182 = vmatpush.msra.mxu0 %v1236
        %2183 = vmatmul.f32.gmra.mxu0 %v2165
        %v2184 = vpop.f32.mrf.mxu0
        %v2185 = vadd.f32 0.0, %v2184
        %2186 = vdwg.mxu0
        %v2188 = vsel %vm1318, %v1907, 0
        %2190 = vmatpush.msra.mxu0 0.0
        %2191 = vmatpush.msra.mxu0 0.0
        %2192 = vmatpush.msra.mxu0 0.0
        %2193 = vmatpush.msra.mxu0 0.0
        %2194 = vmatpush.msra.mxu0 0.0
        %2195 = vmatpush.msra.mxu0 0.0
        %2196 = vmatpush.msra.mxu0 0.0
        %2197 = vmatpush.msra.mxu0 0.0
        %2198 = vmatpush.msra.mxu0 0.0
        %2199 = vmatpush.msra.mxu0 0.0
        %2200 = vmatpush.msra.mxu0 0.0
        %2201 = vmatpush.msra.mxu0 0.0
        %2202 = vmatpush.msra.mxu0 0.0
        %2203 = vmatpush.msra.mxu0 0.0
        %2204 = vmatpush.msra.mxu0 0.0
        %2205 = vmatpush.msra.mxu0 %v1256
        %2206 = vmatmul.f32.gmra.mxu0 %v2188
        %v2207 = vpop.f32.mrf.mxu0
        %v2208 = vadd.f32 0.0, %v2207
        %2209 = vdwg.mxu0
        %v2211 = vsel %vm1318, %v1908, 0
        %2213 = vmatpush.msra.mxu0 0.0
        %2214 = vmatpush.msra.mxu0 0.0
        %2215 = vmatpush.msra.mxu0 0.0
        %2216 = vmatpush.msra.mxu0 0.0
        %2217 = vmatpush.msra.mxu0 0.0
        %2218 = vmatpush.msra.mxu0 0.0
        %2219 = vmatpush.msra.mxu0 0.0
        %2220 = vmatpush.msra.mxu0 0.0
        %2221 = vmatpush.msra.mxu0 0.0
        %2222 = vmatpush.msra.mxu0 0.0
        %2223 = vmatpush.msra.mxu0 0.0
        %2224 = vmatpush.msra.mxu0 0.0
        %2225 = vmatpush.msra.mxu0 0.0
        %2226 = vmatpush.msra.mxu0 0.0
        %2227 = vmatpush.msra.mxu0 0.0
        %2228 = vmatpush.msra.mxu0 %v1276
        %2229 = vmatmul.f32.gmra.mxu0 %v2211
        %v2230 = vpop.f32.mrf.mxu0
        %v2231 = vadd.f32 0.0, %v2230
        %2232 = vdwg.mxu0
        %v2234 = vsel %vm1318, %v1909, 0
        %2236 = vmatpush.msra.mxu0 0.0
        %2237 = vmatpush.msra.mxu0 0.0
        %2238 = vmatpush.msra.mxu0 0.0
        %2239 = vmatpush.msra.mxu0 0.0
        %2240 = vmatpush.msra.mxu0 0.0
        %2241 = vmatpush.msra.mxu0 0.0
        %2242 = vmatpush.msra.mxu0 0.0
        %2243 = vmatpush.msra.mxu0 0.0
        %2244 = vmatpush.msra.mxu0 0.0
        %2245 = vmatpush.msra.mxu0 0.0
        %2246 = vmatpush.msra.mxu0 0.0
        %2247 = vmatpush.msra.mxu0 0.0
        %2248 = vmatpush.msra.mxu0 0.0
        %2249 = vmatpush.msra.mxu0 0.0
        %2250 = vmatpush.msra.mxu0 0.0
        %2251 = vmatpush.msra.mxu0 %v1296
        %2252 = vmatmul.f32.gmra.mxu0 %v2234
        %v2253 = vpop.f32.mrf.mxu0
        %v2254 = vadd.f32 0.0, %v2253
        %2255 = vdwg.mxu0
        %v2257 = vsel %vm1318, %v1910, 0
        %2259 = vmatpush.msra.mxu0 0.0
        %2260 = vmatpush.msra.mxu0 0.0
        %2261 = vmatpush.msra.mxu0 0.0
        %2262 = vmatpush.msra.mxu0 0.0
        %2263 = vmatpush.msra.mxu0 0.0
        %2264 = vmatpush.msra.mxu0 0.0
        %2265 = vmatpush.msra.mxu0 0.0
        %2266 = vmatpush.msra.mxu0 0.0
        %2267 = vmatpush.msra.mxu0 0.0
        %2268 = vmatpush.msra.mxu0 0.0
        %2269 = vmatpush.msra.mxu0 0.0
        %2270 = vmatpush.msra.mxu0 0.0
        %2271 = vmatpush.msra.mxu0 0.0
        %2272 = vmatpush.msra.mxu0 0.0
        %2273 = vmatpush.msra.mxu0 0.0
        %2274 = vmatpush.msra.mxu0 %v1316
        %2275 = vmatmul.f32.gmra.mxu0 %v2257
        %v2276 = vpop.f32.mrf.mxu0
        %v2277 = vadd.f32 0.0, %v2276
        %2278 = vdwg.mxu0
        %v2279 = vld [vmem:[%s3] sm:$0xff]
        %v2280 = vld [vmem:[%s3 + $0x8] sm:$0xff]
        %v2281 = vld [vmem:[%s3 + $0x10] sm:$0xff]
        %v2282 = vld [vmem:[%s3 + $0x18] sm:$0xff]
        %v2284 = vsel %vm1318, %v1932, 0
        %2286 = vmatpush.msra.mxu0 0.0
        %2287 = vmatpush.msra.mxu0 0.0
        %2288 = vmatpush.msra.mxu0 0.0
        %2289 = vmatpush.msra.mxu0 0.0
        %2290 = vmatpush.msra.mxu0 0.0
        %2291 = vmatpush.msra.mxu0 0.0
        %2292 = vmatpush.msra.mxu0 0.0
        %2293 = vmatpush.msra.mxu0 0.0
        %2294 = vmatpush.msra.mxu0 0.0
        %2295 = vmatpush.msra.mxu0 0.0
        %2296 = vmatpush.msra.mxu0 0.0
        %2297 = vmatpush.msra.mxu0 0.0
        %2298 = vmatpush.msra.mxu0 0.0
        %2299 = vmatpush.msra.mxu0 0.0
        %2300 = vmatpush.msra.mxu0 0.0
        %2301 = vmatpush.msra.mxu0 %v2279
        %2302 = vmatmul.f32.gmra.mxu0 %v2284
        %v2303 = vpop.f32.mrf.mxu0
        %v2304 = vadd.f32 0.0, %v2303
        %2305 = vdwg.mxu0
        %v2307 = vsel %vm1318, %v1955, 0
        %2309 = vmatpush.msra.mxu0 0.0
        %2310 = vmatpush.msra.mxu0 0.0
        %2311 = vmatpush.msra.mxu0 0.0
        %2312 = vmatpush.msra.mxu0 0.0
        %2313 = vmatpush.msra.mxu0 0.0
        %2314 = vmatpush.msra.mxu0 0.0
        %2315 = vmatpush.msra.mxu0 0.0
        %2316 = vmatpush.msra.mxu0 0.0
        %2317 = vmatpush.msra.mxu0 0.0
        %2318 = vmatpush.msra.mxu0 0.0
        %2319 = vmatpush.msra.mxu0 0.0
        %2320 = vmatpush.msra.mxu0 0.0
        %2321 = vmatpush.msra.mxu0 0.0
        %2322 = vmatpush.msra.mxu0 0.0
        %2323 = vmatpush.msra.mxu0 0.0
        %2324 = vmatpush.msra.mxu0 %v2279
        %2325 = vmatmul.f32.gmra.mxu0 %v2307
        %v2326 = vpop.f32.mrf.mxu0
        %v2327 = vadd.f32 0.0, %v2326
        %2328 = vdwg.mxu0
        %v2330 = vsel %vm1318, %v1978, 0
        %2332 = vmatpush.msra.mxu0 0.0
        %2333 = vmatpush.msra.mxu0 0.0
        %2334 = vmatpush.msra.mxu0 0.0
        %2335 = vmatpush.msra.mxu0 0.0
        %2336 = vmatpush.msra.mxu0 0.0
        %2337 = vmatpush.msra.mxu0 0.0
        %2338 = vmatpush.msra.mxu0 0.0
        %2339 = vmatpush.msra.mxu0 0.0
        %2340 = vmatpush.msra.mxu0 0.0
        %2341 = vmatpush.msra.mxu0 0.0
        %2342 = vmatpush.msra.mxu0 0.0
        %2343 = vmatpush.msra.mxu0 0.0
        %2344 = vmatpush.msra.mxu0 0.0
        %2345 = vmatpush.msra.mxu0 0.0
        %2346 = vmatpush.msra.mxu0 0.0
        %2347 = vmatpush.msra.mxu0 %v2279
        %2348 = vmatmul.f32.gmra.mxu0 %v2330
        %v2349 = vpop.f32.mrf.mxu0
        %v2350 = vadd.f32 0.0, %v2349
        %2351 = vdwg.mxu0
        %v2353 = vsel %vm1318, %v2001, 0
        %2355 = vmatpush.msra.mxu0 0.0
        %2356 = vmatpush.msra.mxu0 0.0
        %2357 = vmatpush.msra.mxu0 0.0
        %2358 = vmatpush.msra.mxu0 0.0
        %2359 = vmatpush.msra.mxu0 0.0
        %2360 = vmatpush.msra.mxu0 0.0
        %2361 = vmatpush.msra.mxu0 0.0
        %2362 = vmatpush.msra.mxu0 0.0
        %2363 = vmatpush.msra.mxu0 0.0
        %2364 = vmatpush.msra.mxu0 0.0
        %2365 = vmatpush.msra.mxu0 0.0
        %2366 = vmatpush.msra.mxu0 0.0
        %2367 = vmatpush.msra.mxu0 0.0
        %2368 = vmatpush.msra.mxu0 0.0
        %2369 = vmatpush.msra.mxu0 0.0
        %2370 = vmatpush.msra.mxu0 %v2279
        %2371 = vmatmul.f32.gmra.mxu0 %v2353
        %v2372 = vpop.f32.mrf.mxu0
        %v2373 = vadd.f32 0.0, %v2372
        %2374 = vdwg.mxu0
        %v2376 = vsel %vm1318, %v2024, 0
        %2378 = vmatpush.msra.mxu0 0.0
        %2379 = vmatpush.msra.mxu0 0.0
        %2380 = vmatpush.msra.mxu0 0.0
        %2381 = vmatpush.msra.mxu0 0.0
        %2382 = vmatpush.msra.mxu0 0.0
        %2383 = vmatpush.msra.mxu0 0.0
        %2384 = vmatpush.msra.mxu0 0.0
        %2385 = vmatpush.msra.mxu0 0.0
        %2386 = vmatpush.msra.mxu0 0.0
        %2387 = vmatpush.msra.mxu0 0.0
        %2388 = vmatpush.msra.mxu0 0.0
        %2389 = vmatpush.msra.mxu0 0.0
        %2390 = vmatpush.msra.mxu0 0.0
        %2391 = vmatpush.msra.mxu0 0.0
        %2392 = vmatpush.msra.mxu0 0.0
        %2393 = vmatpush.msra.mxu0 %v2280
        %2394 = vmatmul.f32.gmra.mxu0 %v2376
        %v2395 = vpop.f32.mrf.mxu0
        %v2396 = vadd.f32 0.0, %v2395
        %2397 = vdwg.mxu0
        %v2399 = vsel %vm1318, %v2047, 0
        %2401 = vmatpush.msra.mxu0 0.0
        %2402 = vmatpush.msra.mxu0 0.0
        %2403 = vmatpush.msra.mxu0 0.0
        %2404 = vmatpush.msra.mxu0 0.0
        %2405 = vmatpush.msra.mxu0 0.0
        %2406 = vmatpush.msra.mxu0 0.0
        %2407 = vmatpush.msra.mxu0 0.0
        %2408 = vmatpush.msra.mxu0 0.0
        %2409 = vmatpush.msra.mxu0 0.0
        %2410 = vmatpush.msra.mxu0 0.0
        %2411 = vmatpush.msra.mxu0 0.0
        %2412 = vmatpush.msra.mxu0 0.0
        %2413 = vmatpush.msra.mxu0 0.0
        %2414 = vmatpush.msra.mxu0 0.0
        %2415 = vmatpush.msra.mxu0 0.0
        %2416 = vmatpush.msra.mxu0 %v2280
        %2417 = vmatmul.f32.gmra.mxu0 %v2399
        %v2418 = vpop.f32.mrf.mxu0
        %v2419 = vadd.f32 0.0, %v2418
        %2420 = vdwg.mxu0
        %v2422 = vsel %vm1318, %v2070, 0
        %2424 = vmatpush.msra.mxu0 0.0
        %2425 = vmatpush.msra.mxu0 0.0
        %2426 = vmatpush.msra.mxu0 0.0
        %2427 = vmatpush.msra.mxu0 0.0
        %2428 = vmatpush.msra.mxu0 0.0
        %2429 = vmatpush.msra.mxu0 0.0
        %2430 = vmatpush.msra.mxu0 0.0
        %2431 = vmatpush.msra.mxu0 0.0
        %2432 = vmatpush.msra.mxu0 0.0
        %2433 = vmatpush.msra.mxu0 0.0
        %2434 = vmatpush.msra.mxu0 0.0
        %2435 = vmatpush.msra.mxu0 0.0
        %2436 = vmatpush.msra.mxu0 0.0
        %2437 = vmatpush.msra.mxu0 0.0
        %2438 = vmatpush.msra.mxu0 0.0
        %2439 = vmatpush.msra.mxu0 %v2280
        %2440 = vmatmul.f32.gmra.mxu0 %v2422
        %v2441 = vpop.f32.mrf.mxu0
        %v2442 = vadd.f32 0.0, %v2441
        %2443 = vdwg.mxu0
        %v2445 = vsel %vm1318, %v2093, 0
        %2447 = vmatpush.msra.mxu0 0.0
        %2448 = vmatpush.msra.mxu0 0.0
        %2449 = vmatpush.msra.mxu0 0.0
        %2450 = vmatpush.msra.mxu0 0.0
        %2451 = vmatpush.msra.mxu0 0.0
        %2452 = vmatpush.msra.mxu0 0.0
        %2453 = vmatpush.msra.mxu0 0.0
        %2454 = vmatpush.msra.mxu0 0.0
        %2455 = vmatpush.msra.mxu0 0.0
        %2456 = vmatpush.msra.mxu0 0.0
        %2457 = vmatpush.msra.mxu0 0.0
        %2458 = vmatpush.msra.mxu0 0.0
        %2459 = vmatpush.msra.mxu0 0.0
        %2460 = vmatpush.msra.mxu0 0.0
        %2461 = vmatpush.msra.mxu0 0.0
        %2462 = vmatpush.msra.mxu0 %v2280
        %2463 = vmatmul.f32.gmra.mxu0 %v2445
        %v2464 = vpop.f32.mrf.mxu0
        %v2465 = vadd.f32 0.0, %v2464
        %2466 = vdwg.mxu0
        %v2468 = vsel %vm1318, %v2116, 0
        %2470 = vmatpush.msra.mxu0 0.0
        %2471 = vmatpush.msra.mxu0 0.0
        %2472 = vmatpush.msra.mxu0 0.0
        %2473 = vmatpush.msra.mxu0 0.0
        %2474 = vmatpush.msra.mxu0 0.0
        %2475 = vmatpush.msra.mxu0 0.0
        %2476 = vmatpush.msra.mxu0 0.0
        %2477 = vmatpush.msra.mxu0 0.0
        %2478 = vmatpush.msra.mxu0 0.0
        %2479 = vmatpush.msra.mxu0 0.0
        %2480 = vmatpush.msra.mxu0 0.0
        %2481 = vmatpush.msra.mxu0 0.0
        %2482 = vmatpush.msra.mxu0 0.0
        %2483 = vmatpush.msra.mxu0 0.0
        %2484 = vmatpush.msra.mxu0 0.0
        %2485 = vmatpush.msra.mxu0 %v2281
        %2486 = vmatmul.f32.gmra.mxu0 %v2468
        %v2487 = vpop.f32.mrf.mxu0
        %v2488 = vadd.f32 0.0, %v2487
        %2489 = vdwg.mxu0
        %v2491 = vsel %vm1318, %v2139, 0
        %2493 = vmatpush.msra.mxu0 0.0
        %2494 = vmatpush.msra.mxu0 0.0
        %2495 = vmatpush.msra.mxu0 0.0
        %2496 = vmatpush.msra.mxu0 0.0
        %2497 = vmatpush.msra.mxu0 0.0
        %2498 = vmatpush.msra.mxu0 0.0
        %2499 = vmatpush.msra.mxu0 0.0
        %2500 = vmatpush.msra.mxu0 0.0
        %2501 = vmatpush.msra.mxu0 0.0
        %2502 = vmatpush.msra.mxu0 0.0
        %2503 = vmatpush.msra.mxu0 0.0
        %2504 = vmatpush.msra.mxu0 0.0
        %2505 = vmatpush.msra.mxu0 0.0
        %2506 = vmatpush.msra.mxu0 0.0
        %2507 = vmatpush.msra.mxu0 0.0
        %2508 = vmatpush.msra.mxu0 %v2281
        %2509 = vmatmul.f32.gmra.mxu0 %v2491
        %v2510 = vpop.f32.mrf.mxu0
        %v2511 = vadd.f32 0.0, %v2510
        %2512 = vdwg.mxu0
        %v2514 = vsel %vm1318, %v2162, 0
        %2516 = vmatpush.msra.mxu0 0.0
        %2517 = vmatpush.msra.mxu0 0.0
        %2518 = vmatpush.msra.mxu0 0.0
        %2519 = vmatpush.msra.mxu0 0.0
        %2520 = vmatpush.msra.mxu0 0.0
        %2521 = vmatpush.msra.mxu0 0.0
        %2522 = vmatpush.msra.mxu0 0.0
        %2523 = vmatpush.msra.mxu0 0.0
        %2524 = vmatpush.msra.mxu0 0.0
        %2525 = vmatpush.msra.mxu0 0.0
        %2526 = vmatpush.msra.mxu0 0.0
        %2527 = vmatpush.msra.mxu0 0.0
        %2528 = vmatpush.msra.mxu0 0.0
        %2529 = vmatpush.msra.mxu0 0.0
        %2530 = vmatpush.msra.mxu0 0.0
        %2531 = vmatpush.msra.mxu0 %v2281
        %2532 = vmatmul.f32.gmra.mxu0 %v2514
        %v2533 = vpop.f32.mrf.mxu0
        %v2534 = vadd.f32 0.0, %v2533
        %2535 = vdwg.mxu0
        %v2537 = vsel %vm1318, %v2185, 0
        %2539 = vmatpush.msra.mxu0 0.0
        %2540 = vmatpush.msra.mxu0 0.0
        %2541 = vmatpush.msra.mxu0 0.0
        %2542 = vmatpush.msra.mxu0 0.0
        %2543 = vmatpush.msra.mxu0 0.0
        %2544 = vmatpush.msra.mxu0 0.0
        %2545 = vmatpush.msra.mxu0 0.0
        %2546 = vmatpush.msra.mxu0 0.0
        %2547 = vmatpush.msra.mxu0 0.0
        %2548 = vmatpush.msra.mxu0 0.0
        %2549 = vmatpush.msra.mxu0 0.0
        %2550 = vmatpush.msra.mxu0 0.0
        %2551 = vmatpush.msra.mxu0 0.0
        %2552 = vmatpush.msra.mxu0 0.0
        %2553 = vmatpush.msra.mxu0 0.0
        %2554 = vmatpush.msra.mxu0 %v2281
        %2555 = vmatmul.f32.gmra.mxu0 %v2537
        %v2556 = vpop.f32.mrf.mxu0
        %v2557 = vadd.f32 0.0, %v2556
        %2558 = vdwg.mxu0
        %v2560 = vsel %vm1318, %v2208, 0
        %2562 = vmatpush.msra.mxu0 0.0
        %2563 = vmatpush.msra.mxu0 0.0
        %2564 = vmatpush.msra.mxu0 0.0
        %2565 = vmatpush.msra.mxu0 0.0
        %2566 = vmatpush.msra.mxu0 0.0
        %2567 = vmatpush.msra.mxu0 0.0
        %2568 = vmatpush.msra.mxu0 0.0
        %2569 = vmatpush.msra.mxu0 0.0
        %2570 = vmatpush.msra.mxu0 0.0
        %2571 = vmatpush.msra.mxu0 0.0
        %2572 = vmatpush.msra.mxu0 0.0
        %2573 = vmatpush.msra.mxu0 0.0
        %2574 = vmatpush.msra.mxu0 0.0
        %2575 = vmatpush.msra.mxu0 0.0
        %2576 = vmatpush.msra.mxu0 0.0
        %2577 = vmatpush.msra.mxu0 %v2282
        %2578 = vmatmul.f32.gmra.mxu0 %v2560
        %v2579 = vpop.f32.mrf.mxu0
        %v2580 = vadd.f32 0.0, %v2579
        %2581 = vdwg.mxu0
        %v2583 = vsel %vm1318, %v2231, 0
        %2585 = vmatpush.msra.mxu0 0.0
        %2586 = vmatpush.msra.mxu0 0.0
        %2587 = vmatpush.msra.mxu0 0.0
        %2588 = vmatpush.msra.mxu0 0.0
        %2589 = vmatpush.msra.mxu0 0.0
        %2590 = vmatpush.msra.mxu0 0.0
        %2591 = vmatpush.msra.mxu0 0.0
        %2592 = vmatpush.msra.mxu0 0.0
        %2593 = vmatpush.msra.mxu0 0.0
        %2594 = vmatpush.msra.mxu0 0.0
        %2595 = vmatpush.msra.mxu0 0.0
        %2596 = vmatpush.msra.mxu0 0.0
        %2597 = vmatpush.msra.mxu0 0.0
        %2598 = vmatpush.msra.mxu0 0.0
        %2599 = vmatpush.msra.mxu0 0.0
        %2600 = vmatpush.msra.mxu0 %v2282
        %2601 = vmatmul.f32.gmra.mxu0 %v2583
        %v2602 = vpop.f32.mrf.mxu0
        %v2603 = vadd.f32 0.0, %v2602
        %2604 = vdwg.mxu0
        %v2606 = vsel %vm1318, %v2254, 0
        %2608 = vmatpush.msra.mxu0 0.0
        %2609 = vmatpush.msra.mxu0 0.0
        %2610 = vmatpush.msra.mxu0 0.0
        %2611 = vmatpush.msra.mxu0 0.0
        %2612 = vmatpush.msra.mxu0 0.0
        %2613 = vmatpush.msra.mxu0 0.0
        %2614 = vmatpush.msra.mxu0 0.0
        %2615 = vmatpush.msra.mxu0 0.0
        %2616 = vmatpush.msra.mxu0 0.0
        %2617 = vmatpush.msra.mxu0 0.0
        %2618 = vmatpush.msra.mxu0 0.0
        %2619 = vmatpush.msra.mxu0 0.0
        %2620 = vmatpush.msra.mxu0 0.0
        %2621 = vmatpush.msra.mxu0 0.0
        %2622 = vmatpush.msra.mxu0 0.0
        %2623 = vmatpush.msra.mxu0 %v2282
        %2624 = vmatmul.f32.gmra.mxu0 %v2606
        %v2625 = vpop.f32.mrf.mxu0
        %v2626 = vadd.f32 0.0, %v2625
        %2627 = vdwg.mxu0
        %v2629 = vsel %vm1318, %v2277, 0
        %2631 = vmatpush.msra.mxu0 0.0
        %2632 = vmatpush.msra.mxu0 0.0
        %2633 = vmatpush.msra.mxu0 0.0
        %2634 = vmatpush.msra.mxu0 0.0
        %2635 = vmatpush.msra.mxu0 0.0
        %2636 = vmatpush.msra.mxu0 0.0
        %2637 = vmatpush.msra.mxu0 0.0
        %2638 = vmatpush.msra.mxu0 0.0
        %2639 = vmatpush.msra.mxu0 0.0
        %2640 = vmatpush.msra.mxu0 0.0
        %2641 = vmatpush.msra.mxu0 0.0
        %2642 = vmatpush.msra.mxu0 0.0
        %2643 = vmatpush.msra.mxu0 0.0
        %2644 = vmatpush.msra.mxu0 0.0
        %2645 = vmatpush.msra.mxu0 0.0
        %2646 = vmatpush.msra.mxu0 %v2282
        %2647 = vmatmul.f32.gmra.mxu0 %v2629
        %v2648 = vpop.f32.mrf.mxu0
        %v2649 = vadd.f32 0.0, %v2648
        %2650 = vdwg.mxu0
        %v2651 = vadd.f32 %v2304, %v2396
        %v2652 = vadd.f32 %v2327, %v2419
        %v2653 = vadd.f32 %v2350, %v2442
        %v2654 = vadd.f32 %v2373, %v2465
        %v2655 = vadd.f32 %v2651, %v2488
        %v2656 = vadd.f32 %v2652, %v2511
        %v2657 = vadd.f32 %v2653, %v2534
        %v2658 = vadd.f32 %v2654, %v2557
        %v2659 = vadd.f32 %v2655, %v2580
        %v2660 = vadd.f32 %v2656, %v2603
        %v2661 = vadd.f32 %v2657, %v2626
        %v2662 = vadd.f32 %v2658, %v2649
        %v2663 = vld [vmem:[%s5] sm:$0x1]
        %v2664 = vperm.slane %v2663, 0
        %v2665 = vadd.f32 %v2659, %v2664
        %v2666 = vadd.f32 %v2660, %v2664
        %v2667 = vadd.f32 %v2661, %v2664
        %v2668 = vadd.f32 %v2662, %v2664
        %v2669 = vadd.f32 %v250, %v2665
        %v2670 = vadd.f32 %v251, %v2666
        %v2671 = vadd.f32 %v252, %v2667
        %v2672 = vadd.f32 %v253, %v2668
        %v2673 = vld [vmem:[%s5 + $0x3] sm:$0x1]
        %v2674 = vld [vmem:[%s5 + $0x4] sm:$0x1]
        %v2675 = vsel %vm283, %v2669, 0.0
        %2676 = vadd.xlane.f32.xlu0 %v2675
        %v2677 = vpop.xlane.xlu0 %2676
        %v2678 = vsel %vm283, %v2670, 0.0
        %2679 = vadd.xlane.f32.xlu0 %v2678
        %v2680 = vpop.xlane.xlu0 %2679
        %v2681 = vsel %vm283, %v2671, 0.0
        %2682 = vadd.xlane.f32.xlu0 %v2681
        %v2683 = vpop.xlane.xlu0 %2682
        %v2684 = vsel %vm283, %v2672, 0.0
        %2685 = vadd.xlane.f32.xlu0 %v2684
        %v2686 = vpop.xlane.xlu0 %2685
        %v2687 = vrcp.pop 32.0
        %v2688 = vmul.f32 32.0, %v2687
        %v2689 = vsub.f32 1.0, %v2688
        %v2690 = vmul.f32 %v2687, %v2689
        %v2691 = vadd.f32 %v2687, %v2690
        %vm2692 = vweird.f32 %v2687
        %v2693 = vsel %vm2692, %v2687, %v2691
        %v2694 = vmul.f32 %v2677, %v2693
        %v2695 = vmul.f32 %v2680, %v2693
        %v2696 = vmul.f32 %v2683, %v2693
        %v2697 = vmul.f32 %v2686, %v2693
        %v2698 = vsub.f32 %v2669, %v2694
        %v2699 = vsub.f32 %v2670, %v2695
        %v2700 = vsub.f32 %v2671, %v2696
        %v2701 = vsub.f32 %v2672, %v2697
        %v2702 = vmul.f32 %v2698, %v2698
        %v2703 = vmul.f32 %v2699, %v2699
        %v2704 = vmul.f32 %v2700, %v2700
        %v2705 = vmul.f32 %v2701, %v2701
        %v2706 = vsel %vm283, %v2702, 0.0
        %2707 = vadd.xlane.f32.xlu0 %v2706
        %v2708 = vpop.xlane.xlu0 %2707
        %v2709 = vsel %vm283, %v2703, 0.0
        %2710 = vadd.xlane.f32.xlu0 %v2709
        %v2711 = vpop.xlane.xlu0 %2710
        %v2712 = vsel %vm283, %v2704, 0.0
        %2713 = vadd.xlane.f32.xlu0 %v2712
        %v2714 = vpop.xlane.xlu0 %2713
        %v2715 = vsel %vm283, %v2705, 0.0
        %2716 = vadd.xlane.f32.xlu0 %v2715
        %v2717 = vpop.xlane.xlu0 %2716
        %v2718 = vmul.f32 %v2708, %v2693
        %v2719 = vmul.f32 %v2711, %v2693
        %v2720 = vmul.f32 %v2714, %v2693
        %v2721 = vmul.f32 %v2717, %v2693
        %v2722 = vadd.f32 %v2718, 1e-05
        %v2723 = vadd.f32 %v2719, 1e-05
        %v2724 = vadd.f32 %v2720, 1e-05
        %v2725 = vadd.f32 %v2721, 1e-05
        %v2726 = vrsqrt.pop %v2722
        %v2727 = vmul.f32 %v2726, %v2722
        %v2728 = vmul.f32 %v2727, %v2726
        %v2729 = vmul.f32 0.5, %v2728
        %v2730 = vsub.f32 1.5, %v2729
        %v2731 = vmul.f32 %v2726, %v2730
        %vm2732 = vweird.f32 %v2722
        %vm2733 = vweird.f32 %v2726
        %vm2734 = vmor %vm2732, %vm2733
        %v2735 = vsel %vm2734, %v2726, %v2731
        %v2736 = vrsqrt.pop %v2723
        %v2737 = vmul.f32 %v2736, %v2723
        %v2738 = vmul.f32 %v2737, %v2736
        %v2739 = vmul.f32 0.5, %v2738
        %v2740 = vsub.f32 1.5, %v2739
        %v2741 = vmul.f32 %v2736, %v2740
        %vm2742 = vweird.f32 %v2723
        %vm2743 = vweird.f32 %v2736
        %vm2744 = vmor %vm2742, %vm2743
        %v2745 = vsel %vm2744, %v2736, %v2741
        %v2746 = vrsqrt.pop %v2724
        %v2747 = vmul.f32 %v2746, %v2724
        %v2748 = vmul.f32 %v2747, %v2746
        %v2749 = vmul.f32 0.5, %v2748
        %v2750 = vsub.f32 1.5, %v2749
        %v2751 = vmul.f32 %v2746, %v2750
        %vm2752 = vweird.f32 %v2724
        %vm2753 = vweird.f32 %v2746
        %vm2754 = vmor %vm2752, %vm2753
        %v2755 = vsel %vm2754, %v2746, %v2751
        %v2756 = vrsqrt.pop %v2725
        %v2757 = vmul.f32 %v2756, %v2725
        %v2758 = vmul.f32 %v2757, %v2756
        %v2759 = vmul.f32 0.5, %v2758
        %v2760 = vsub.f32 1.5, %v2759
        %v2761 = vmul.f32 %v2756, %v2760
        %vm2762 = vweird.f32 %v2725
        %vm2763 = vweird.f32 %v2756
        %vm2764 = vmor %vm2762, %vm2763
        %v2765 = vsel %vm2764, %v2756, %v2761
        %v2766 = vmul.f32 %v2698, %v2735
        %v2767 = vmul.f32 %v2699, %v2745
        %v2768 = vmul.f32 %v2700, %v2755
        %v2769 = vmul.f32 %v2701, %v2765
        %v2770 = vperm.slane %v2673, 0
        %v2771 = vmul.f32 %v2766, %v2770
        %v2772 = vmul.f32 %v2767, %v2770
        %v2773 = vmul.f32 %v2768, %v2770
        %v2774 = vmul.f32 %v2769, %v2770
        %v2775 = vperm.slane %v2674, 0
        %v2776 = vadd.f32 %v2771, %v2775
        %v2777 = vadd.f32 %v2772, %v2775
        %v2778 = vadd.f32 %v2773, %v2775
        %v2779 = vadd.f32 %v2774, %v2775
        %v2780 = vld [vmem:[%s4] sm:$0xff]
        %v2781 = vld [vmem:[%s4 + $0x8] sm:$0xff]
        %v2782 = vld [vmem:[%s4 + $0x10] sm:$0xff]
        %v2783 = vld [vmem:[%s4 + $0x18] sm:$0xff]
        %v2784 = vld [vmem:[%s5 + $0x1] sm:$0x1]
        %v2785 = vperm.slane %v2784, 0
        %v2787 = vsel %vm283, %v2776, 0
        %v2790 = vsel %vm283, %v2777, 0
        %v2793 = vsel %vm283, %v2778, 0
        %v2796 = vsel %vm283, %v2779, 0
        %2798 = vmatpush.msra.mxu0 0.0
        %2799 = vmatpush.msra.mxu0 0.0
        %2800 = vmatpush.msra.mxu0 0.0
        %2801 = vmatpush.msra.mxu0 0.0
        %2802 = vmatpush.msra.mxu0 0.0
        %2803 = vmatpush.msra.mxu0 0.0
        %2804 = vmatpush.msra.mxu0 0.0
        %2805 = vmatpush.msra.mxu0 0.0
        %2806 = vmatpush.msra.mxu0 0.0
        %2807 = vmatpush.msra.mxu0 0.0
        %2808 = vmatpush.msra.mxu0 0.0
        %2809 = vmatpush.msra.mxu0 0.0
        %2810 = vmatpush.msra.mxu0 %v2783
        %2811 = vmatpush.msra.mxu0 %v2782
        %2812 = vmatpush.msra.mxu0 %v2781
        %2813 = vmatpush.msra.mxu0 %v2780
        %2814 = vmatmul.f32.gmra.mxu0 %v2787
        %v2815 = vpop.f32.mrf.mxu0
        %v2816 = vadd.f32 %v2785, %v2815
        %2817 = vmatmul.f32.gmra.mxu0 %v2790
        %v2818 = vpop.f32.mrf.mxu0
        %v2819 = vadd.f32 %v2785, %v2818
        %2820 = vmatmul.f32.gmra.mxu0 %v2793
        %v2821 = vpop.f32.mrf.mxu0
        %v2822 = vadd.f32 %v2785, %v2821
        %2823 = vmatmul.f32.gmra.mxu0 %v2796
        %v2824 = vpop.f32.mrf.mxu0
        %v2825 = vadd.f32 %v2785, %v2824
        %2826 = vdwg.mxu0
        %v2827 = vmax.f32 %v2816, 0.0
        %v2828 = vmax.f32 %v2819, 0.0
        %v2829 = vmax.f32 %v2822, 0.0
        %v2830 = vmax.f32 %v2825, 0.0
        %s2831 = scalar_lea.vmem %s4, 32
        %v2832 = vld [vmem:[%s2831] sm:$0xff]
        %v2833 = vld [vmem:[%s2831 + $0x8] sm:$0xff]
        %v2834 = vld [vmem:[%s2831 + $0x10] sm:$0xff]
        %v2835 = vld [vmem:[%s2831 + $0x18] sm:$0xff]
        %v2836 = vld [vmem:[%s5 + $0x2] sm:$0x1]
        %v2837 = vperm.slane %v2836, 0
        %v2839 = vsel %vm283, %v2827, 0
        %v2842 = vsel %vm283, %v2828, 0
        %v2845 = vsel %vm283, %v2829, 0
        %v2848 = vsel %vm283, %v2830, 0
        %2850 = vmatpush.msra.mxu0 0.0
        %2851 = vmatpush.msra.mxu0 0.0
        %2852 = vmatpush.msra.mxu0 0.0
        %2853 = vmatpush.msra.mxu0 0.0
        %2854 = vmatpush.msra.mxu0 0.0
        %2855 = vmatpush.msra.mxu0 0.0
        %2856 = vmatpush.msra.mxu0 0.0
        %2857 = vmatpush.msra.mxu0 0.0
        %2858 = vmatpush.msra.mxu0 0.0
        %2859 = vmatpush.msra.mxu0 0.0
        %2860 = vmatpush.msra.mxu0 0.0
        %2861 = vmatpush.msra.mxu0 0.0
        %2862 = vmatpush.msra.mxu0 %v2835
        %2863 = vmatpush.msra.mxu0 %v2834
        %2864 = vmatpush.msra.mxu0 %v2833
        %2865 = vmatpush.msra.mxu0 %v2832
        %2866 = vmatmul.f32.gmra.mxu0 %v2839
        %v2867 = vpop.f32.mrf.mxu0
        %v2868 = vadd.f32 %v2837, %v2867
        %2869 = vmatmul.f32.gmra.mxu0 %v2842
        %v2870 = vpop.f32.mrf.mxu0
        %v2871 = vadd.f32 %v2837, %v2870
        %2872 = vmatmul.f32.gmra.mxu0 %v2845
        %v2873 = vpop.f32.mrf.mxu0
        %v2874 = vadd.f32 %v2837, %v2873
        %2875 = vmatmul.f32.gmra.mxu0 %v2848
        %v2876 = vpop.f32.mrf.mxu0
        %v2877 = vadd.f32 %v2837, %v2876
        %2878 = vdwg.mxu0
        %v2879 = vadd.f32 %v2776, %v2868
        %v2880 = vadd.f32 %v2777, %v2871
        %v2881 = vadd.f32 %v2778, %v2874
        %v2882 = vadd.f32 %v2779, %v2877
        %v2883 = vld [vmem:[%s5 + $0x5] sm:$0x1]
        %v2884 = vld [vmem:[%s5 + $0x6] sm:$0x1]
        %v2885 = vsel %vm283, %v2879, 0.0
        %2886 = vadd.xlane.f32.xlu0 %v2885
        %v2887 = vpop.xlane.xlu0 %2886
        %v2888 = vsel %vm283, %v2880, 0.0
        %2889 = vadd.xlane.f32.xlu0 %v2888
        %v2890 = vpop.xlane.xlu0 %2889
        %v2891 = vsel %vm283, %v2881, 0.0
        %2892 = vadd.xlane.f32.xlu0 %v2891
        %v2893 = vpop.xlane.xlu0 %2892
        %v2894 = vsel %vm283, %v2882, 0.0
        %2895 = vadd.xlane.f32.xlu0 %v2894
        %v2896 = vpop.xlane.xlu0 %2895
        %v2897 = vmul.f32 %v2887, %v2693
        %v2898 = vmul.f32 %v2890, %v2693
        %v2899 = vmul.f32 %v2893, %v2693
        %v2900 = vmul.f32 %v2896, %v2693
        %v2901 = vsub.f32 %v2879, %v2897
        %v2902 = vsub.f32 %v2880, %v2898
        %v2903 = vsub.f32 %v2881, %v2899
        %v2904 = vsub.f32 %v2882, %v2900
        %v2905 = vmul.f32 %v2901, %v2901
        %v2906 = vmul.f32 %v2902, %v2902
        %v2907 = vmul.f32 %v2903, %v2903
        %v2908 = vmul.f32 %v2904, %v2904
        %v2909 = vsel %vm283, %v2905, 0.0
        %2910 = vadd.xlane.f32.xlu0 %v2909
        %v2911 = vpop.xlane.xlu0 %2910
        %v2912 = vsel %vm283, %v2906, 0.0
        %2913 = vadd.xlane.f32.xlu0 %v2912
        %v2914 = vpop.xlane.xlu0 %2913
        %v2915 = vsel %vm283, %v2907, 0.0
        %2916 = vadd.xlane.f32.xlu0 %v2915
        %v2917 = vpop.xlane.xlu0 %2916
        %v2918 = vsel %vm283, %v2908, 0.0
        %2919 = vadd.xlane.f32.xlu0 %v2918
        %v2920 = vpop.xlane.xlu0 %2919
        %v2921 = vmul.f32 %v2911, %v2693
        %v2922 = vmul.f32 %v2914, %v2693
        %v2923 = vmul.f32 %v2917, %v2693
        %v2924 = vmul.f32 %v2920, %v2693
        %v2925 = vadd.f32 %v2921, 1e-05
        %v2926 = vadd.f32 %v2922, 1e-05
        %v2927 = vadd.f32 %v2923, 1e-05
        %v2928 = vadd.f32 %v2924, 1e-05
        %v2929 = vrsqrt.pop %v2925
        %v2930 = vmul.f32 %v2929, %v2925
        %v2931 = vmul.f32 %v2930, %v2929
        %v2932 = vmul.f32 0.5, %v2931
        %v2933 = vsub.f32 1.5, %v2932
        %v2934 = vmul.f32 %v2929, %v2933
        %vm2935 = vweird.f32 %v2925
        %vm2936 = vweird.f32 %v2929
        %vm2937 = vmor %vm2935, %vm2936
        %v2938 = vsel %vm2937, %v2929, %v2934
        %v2939 = vrsqrt.pop %v2926
        %v2940 = vmul.f32 %v2939, %v2926
        %v2941 = vmul.f32 %v2940, %v2939
        %v2942 = vmul.f32 0.5, %v2941
        %v2943 = vsub.f32 1.5, %v2942
        %v2944 = vmul.f32 %v2939, %v2943
        %vm2945 = vweird.f32 %v2926
        %vm2946 = vweird.f32 %v2939
        %vm2947 = vmor %vm2945, %vm2946
        %v2948 = vsel %vm2947, %v2939, %v2944
        %v2949 = vrsqrt.pop %v2927
        %v2950 = vmul.f32 %v2949, %v2927
        %v2951 = vmul.f32 %v2950, %v2949
        %v2952 = vmul.f32 0.5, %v2951
        %v2953 = vsub.f32 1.5, %v2952
        %v2954 = vmul.f32 %v2949, %v2953
        %vm2955 = vweird.f32 %v2927
        %vm2956 = vweird.f32 %v2949
        %vm2957 = vmor %vm2955, %vm2956
        %v2958 = vsel %vm2957, %v2949, %v2954
        %v2959 = vrsqrt.pop %v2928
        %v2960 = vmul.f32 %v2959, %v2928
        %v2961 = vmul.f32 %v2960, %v2959
        %v2962 = vmul.f32 0.5, %v2961
        %v2963 = vsub.f32 1.5, %v2962
        %v2964 = vmul.f32 %v2959, %v2963
        %vm2965 = vweird.f32 %v2928
        %vm2966 = vweird.f32 %v2959
        %vm2967 = vmor %vm2965, %vm2966
        %v2968 = vsel %vm2967, %v2959, %v2964
        %v2969 = vmul.f32 %v2901, %v2938
        %v2970 = vmul.f32 %v2902, %v2948
        %v2971 = vmul.f32 %v2903, %v2958
        %v2972 = vmul.f32 %v2904, %v2968
        %v2973 = vperm.slane %v2883, 0
        %v2974 = vmul.f32 %v2969, %v2973
        %v2975 = vmul.f32 %v2970, %v2973
        %v2976 = vmul.f32 %v2971, %v2973
        %v2977 = vmul.f32 %v2972, %v2973
        %v2978 = vperm.slane %v2884, 0
        %v2979 = vadd.f32 %v2974, %v2978
        %v2980 = vadd.f32 %v2975, %v2978
        %v2981 = vadd.f32 %v2976, %v2978
        %v2982 = vadd.f32 %v2977, %v2978
        %2983 = vst.msk [vmem:[%s244] sm:$0xff] %vm283, %v2979
        %2984 = vst.msk [vmem:[%s244 + $0x8] sm:$0xff] %vm283, %v2980
        %2985 = vst.msk [vmem:[%s244 + $0x10] sm:$0xff] %vm283, %v2981
        %2986 = vst.msk [vmem:[%s244 + $0x18] sm:$0xff] %vm283, %v2982
        %s2987 = sand.u32 %s159, 1
        %s2988 = scalar_lea.sflag [#allocation3], %s2987
        %s2989 = sand.u32 %s159, 1
        %s2990 = smul.addr %s2989, 32
        %s2991 = scalar_lea.vmem [#allocation2], %s2990
        // Predicated region
        $region45: #{tpu_custom_call.1} parent=43 // pred_check
          %p2992 = pneg %p169
        $region46: #{tpu_custom_call.1} parent=43 // pred_check_branch
          %2994 = sbr.rel (%p2992) target = $region48
        $region47: #{tpu_custom_call.1} parent=43 // pred_region
          %2996 = vsyncadd %s2988, 0
          %s2997 = smul.addr %s20, 4
          %s2998 = smul.addr %s2997, 8
          %s2999 = scalar_lea.hbm %s6, %s2998
          %s3000 = sshll.u32 %s2991, 4
          %s3001 = int_to_ptr.vmem [resolvable:$true] %s3000
          %s3002 = sshll.u32 %s2999, 4
          %s3003 = int_to_ptr.hbm [resolvable:$true] %s3002
          %3008 = dma.vmem_to_hbm [thread:$0]  %s3001, 512, %s3003, %s2988, 128, 128, 8
        $region48: #{tpu_custom_call.1} parent=43 // pred_fallthru
          _
      $region44: #{tpu_custom_call.1} parent=5 // pred_fallthru
        _
      %p3009 = scmp.le.s32.totalorder 2, %s15
      // Predicated region
      $region49: #{tpu_custom_call.1} parent=5 // pred_check
        %p3010 = pneg %p3009
      $region50: #{tpu_custom_call.1} parent=5 // pred_check_branch
        %3012 = sbr.rel (%p3010) target = $region52
      $region51: #{tpu_custom_call.1} parent=5 // pred_region
        %s3013 = ssub.s32 %s15, 2
        // Predicated region
        $region53: #{tpu_custom_call.1} parent=51 // pred_check
          %p3014 = pneg %p175
        $region54: #{tpu_custom_call.1} parent=51 // pred_check_branch
          %3016 = sbr.rel (%p3014) target = $region56
        $region55: #{tpu_custom_call.1} parent=51 // pred_region
          %s3017 = sand.u32 %s160, 1
          %s3018 = scalar_lea.sflag [#allocation3], %s3017
          %s3019 = sand.u32 %s160, 1
          %s3020 = smul.addr %s3019, 32
          %s3021 = scalar_lea.vmem [#allocation2], %s3020
          %3023 = dma.done %s3018, 512
        $region56: #{tpu_custom_call.1} parent=51 // pred_fallthru
          _
      $region52: #{tpu_custom_call.1} parent=5 // pred_fallthru
        _
    $region6: #{tpu_custom_call.1} parent=1 // loop_footer
      %s19 = sadd.s32 1, %s15
    $region7: #{tpu_custom_call.1} parent=1 // loop_footer_branch
      %14 = sbr.rel target = $region3
    $region8: #{tpu_custom_call.1} parent=1 // loop_exit
      _
    %3024 = vsyncpa [#allocation3], 1
    %s3025 = scalar_lea.sflag [#allocation3], 1
    %3026 = vsyncpa %s3025, 1

</llo_original>
